<compile_context>
chip_gen: v7x
topology: tpu7x:2x2x1
jax: 0.10.0
libtpu: 0.0.40
codegen_flags: <defaults>
</compile_context>

<pallas_src>
import functools

import jax
import jax.numpy as jnp
from jax import lax
from jax.experimental import pallas as pl
from jax.experimental.pallas import tpu as pltpu


# ----------------------------------------------------------------------------
# Fused kernel: all layers, all timesteps, one batch element per grid step.
# ----------------------------------------------------------------------------
def _encoder_kernel(*refs, num_layers, cheb_k, embed_dim, out_dim, seq_len,
                    node_num):
    K, D, O, T, N = cheb_k, embed_dim, out_dim, seq_len, node_num
    GW = 2 * D * O                     # gate M-slab width, layout [d, g, o]
    UW = D * O                         # candidate M-slab width, layout [d, o]

    it = iter(refs)
    xaug0_ref = next(it)               # (1, T*N, K*Din0) bf16  [k-major cols]
    h0_ref = next(it)                  # (L, 1, N, O) f32
    sup_ref = next(it)                 # (max(K-1,1), N, N) bf16 (S_1..S_{K-1})
    ewg_ref = next(it)                 # (N, GW) f32  E broadcast over [d,g,o]
    ewu_ref = next(it)                 # (N, UW) f32  E broadcast over [d,o]
    layers = [tuple(next(it) for _ in range(5)) for _ in range(num_layers)]
    out_seq_ref = next(it)             # (1, T, N, O) f32  (last layer sequence)
    out_ht_ref = next(it)              # (L, 1, N, O) f32  (final state / layer)
    mx_ref = next(it)                  # (T*N, GW+UW) f32 scratch (x path)
    xh_ref = next(it)                  # (T*N, K*O) bf16 scratch (next layer x)

    def dsum(p, width):
        """Sum the D lane-blocks of `width` lanes each (embed-dim contraction).

        Doubling all-reduce with pltpu.roll: result valid in p[:, :width];
        direction-agnostic because total == D * width and D is a power of two.
        """
        total = p.shape[-1]
        if D & (D - 1) == 0:
            s = width
            while s < total:
                p = p + pltpu.roll(p, s, axis=1)
                s *= 2
            return p[:, :width]
        acc = p[:, :width]                              # generic fallback
        for d in range(1, D):
            acc = acc + p[:, d * width:(d + 1) * width]
        return acc

    def make_hh(h):
        """Channel-stacked supports [S_0 h | S_1 h | ...] in bf16, (N, K*O)."""
        h_bf = h.astype(jnp.bfloat16)
        parts = [h_bf]
        for k in range(K - 1):
            sk = jnp.dot(sup_ref[k], h_bf, preferred_element_type=jnp.float32)
            parts.append(sk.astype(jnp.bfloat16))
        return jnp.concatenate(parts, axis=1) if len(parts) > 1 else h_bf

    for l in range(num_layers):
        pxall_ref, phg_ref, phu_ref, bg_ref, bu_ref = layers[l]
        is_last = l == num_layers - 1

        # ---- hoisted x path: one M=T*N-row MXU matmul for every timestep ----
        xaug = xaug0_ref[0] if l == 0 else xh_ref[...]
        mx_ref[...] = jnp.dot(xaug, pxall_ref[...],
                              preferred_element_type=jnp.float32)

        h0 = h0_ref[l, 0]                               # (N, O) f32
        hh0 = make_hh(h0)                               # (N, K*O) bf16

        def step(t, carry):
            h, hh = carry
            row = pl.multiple_of(t * N, N)
            mx_t = mx_ref[pl.ds(row, N), :]             # (N, GW+UW) f32

            # z | r gate: one wide MXU issue on the h path, E-weighted
            # lane-block reduction, one sigmoid over the contiguous 2*O slab.
            m_zr = mx_t[:, :GW] + jnp.dot(hh, phg_ref[...],
                                          preferred_element_type=jnp.float32)
            zr = jax.nn.sigmoid(bg_ref[...] + dsum(m_zr * ewg_ref[...], 2 * O))
            z, r = zr[:, :O], zr[:, O:]

            # candidate
            zhh = make_hh(z * h)
            m_u = mx_t[:, GW:GW + UW] + jnp.dot(
                zhh, phu_ref[...], preferred_element_type=jnp.float32)
            hc = jnp.tanh(bu_ref[...] + dsum(m_u * ewu_ref[...], O))

            h_new = r * h + (1.0 - r) * hc
            hh_new = make_hh(h_new)     # reused by next step and next layer
            if is_last:
                out_seq_ref[0, t] = h_new
            else:
                xh_ref[pl.ds(row, N), :] = hh_new
            return h_new, hh_new

        h_fin, _ = lax.fori_loop(0, T, step, (h0, hh0))
        out_ht_ref[l, 0] = h_fin


def _const_spec(arr):
    nd = arr.ndim
    return pl.BlockSpec(arr.shape, lambda b, _nd=nd: (0,) * _nd)


def encoder_pallas(xaug0, init_state, sup, ewg, ewu, layer_params, *,
                   cheb_k, embed_dim, out_dim, seq_len, node_num):
    """One fused pallas_call covering every layer and timestep."""
    B = xaug0.shape[0]
    num_layers = init_state.shape[0]
    T, N, O, D, K = seq_len, node_num, out_dim, embed_dim, cheb_k
    flat = [a for lp in layer_params for a in lp]

    kernel = functools.partial(
        _encoder_kernel, num_layers=num_layers, cheb_k=K, embed_dim=D,
        out_dim=O, seq_len=T, node_num=N)

    in_specs = [
        pl.BlockSpec((1, T * N, xaug0.shape[-1]), lambda b: (b, 0, 0)),
        pl.BlockSpec((num_layers, 1, N, O), lambda b: (0, b, 0, 0)),
        _const_spec(sup), _const_spec(ewg), _const_spec(ewu),
    ] + [_const_spec(a) for a in flat]

    out_seq, out_ht = pl.pallas_call(
        kernel,
        out_shape=(jax.ShapeDtypeStruct((B, T, N, O), jnp.float32),
                   jax.ShapeDtypeStruct((num_layers, B, N, O), jnp.float32)),
        grid=(B,),
        in_specs=in_specs,
        out_specs=(pl.BlockSpec((1, T, N, O), lambda b: (b, 0, 0, 0)),
                   pl.BlockSpec((num_layers, 1, N, O), lambda b: (0, b, 0, 0))),
        scratch_shapes=[
            pltpu.VMEM((T * N, 3 * D * O), jnp.float32),   # Mx for all t
            pltpu.VMEM((T * N, K * O), jnp.bfloat16),      # next-layer x-aug
        ],
        # Batch axis -> megacore ("parallel"): one TC per batch elem on v7x.
        # (On single-TC v5e/v6e this is a 2-iteration serial loop; footprint
        #  is <1 MiB so no VMEM tuning is needed on any generation.)
        compiler_params=pltpu.CompilerParams(
            dimension_semantics=("parallel",)),
    )(xaug0, init_state, sup, ewg, ewu, *flat)
    return out_seq, out_ht


# ----------------------------------------------------------------------------
# Parameter / support construction (wrapper side, runs in XLA under jit).
# ----------------------------------------------------------------------------
def build_supports(node_embeddings, cheb_k):
    """Chebyshev support stack: [I, A, 2A*S[-1]-S[-2], ...]."""
    N = node_embeddings.shape[0]
    A = jax.nn.softmax(jax.nn.relu(node_embeddings @ node_embeddings.T), axis=1)
    supports = [jnp.eye(N, dtype=jnp.float32), A]
    for _ in range(2, cheb_k):
        supports.append(2.0 * A @ supports[-1] - supports[-2])
    return jnp.stack(supports[:cheb_k], axis=0)             # (K, N, N)


def make_params(key, in_dim, out_dim, cheb_k, embed_dim, num_layers):
    """Deterministic synthetic GCGRU parameters (weight/bias pools per layer)."""
    params = []
    dims_in = [in_dim] + [out_dim] * (num_layers - 1)
    for layer, di in enumerate(dims_in):
        kk = jax.random.fold_in(key, layer)
        k1, k2, k3, k4 = jax.random.split(kk, 4)
        params.append(dict(
            Wg_pool=0.1 * jax.random.normal(
                k1, (embed_dim, cheb_k, di + out_dim, 2 * out_dim), jnp.float32),
            bg_pool=0.1 * jax.random.normal(
                k2, (embed_dim, 2 * out_dim), jnp.float32),
            Wu_pool=0.1 * jax.random.normal(
                k3, (embed_dim, cheb_k, di + out_dim, out_dim), jnp.float32),
            bu_pool=0.1 * jax.random.normal(
                k4, (embed_dim, out_dim), jnp.float32),
        ))
    return params


@functools.partial(jax.jit, static_argnames=('cheb_k',))
def encoder_forward(x, init_state, node_embeddings, params, cheb_k):
    """Encoder.forward (default flags): (all-step outputs, [final state / layer])."""
    B, T, N, Din0 = x.shape
    D = node_embeddings.shape[1]
    num_layers = len(params)
    O = params[0]['bu_pool'].shape[-1]

    supports = build_supports(node_embeddings, cheb_k)       # (K, N, N) f32

    # Layer-0 x-path graph conv hoisted to XLA; columns ordered [k, c].
    xg = jnp.einsum('knm,btmc->btnkc', supports, x)
    xaug0 = xg.reshape(B, T * N, cheb_k * Din0).astype(jnp.bfloat16)

    sup = supports[1:] if cheb_k > 1 else jnp.zeros((1, N, N), jnp.float32)
    sup = sup.astype(jnp.bfloat16)

    # E pre-broadcast across the wide M layouts ([d,g,o] gate / [d,o] cand).
    ewg = jnp.broadcast_to(node_embeddings[:, :, None],
                           (N, D, 2 * O)).reshape(N, 2 * D * O)
    ewu = jnp.broadcast_to(node_embeddings[:, :, None],
                           (N, D, O)).reshape(N, D * O)

    layer_params = []
    for l, p in enumerate(params):
        Din = Din0 if l == 0 else O
        C = Din + O
        # Gate pool -> (K, C, [d, g, o]); candidate pool -> (K, C, [d, o]).
        Wg = p['Wg_pool'].reshape(D, cheb_k, C, 2, O)
        Pg = jnp.transpose(Wg, (1, 2, 0, 3, 4)).reshape(cheb_k, C, 2 * D * O)
        Pu = jnp.transpose(p['Wu_pool'], (1, 2, 0, 3)).reshape(cheb_k, C, D * O)
        pgx = Pg[:, :Din, :].reshape(cheb_k * Din, 2 * D * O)
        pux = Pu[:, :Din, :].reshape(cheb_k * Din, D * O)
        pxall = jnp.concatenate([pgx, pux], axis=1).astype(jnp.bfloat16)
        phg = Pg[:, Din:, :].reshape(cheb_k * O, 2 * D * O).astype(jnp.bfloat16)
        phu = Pu[:, Din:, :].reshape(cheb_k * O, D * O).astype(jnp.bfloat16)
        bg = node_embeddings @ p['bg_pool']                  # (N, 2O) [z | r]
        bu = node_embeddings @ p['bu_pool']                  # (N, O)
        layer_params.append((pxall, phg, phu, bg, bu))

    out_seq, out_ht = encoder_pallas(
        xaug0, init_state, sup, ewg, ewu, layer_params,
        cheb_k=cheb_k, embed_dim=D, out_dim=O, seq_len=T, node_num=N)
    return out_seq, [out_ht[l] for l in range(num_layers)]


# ----------------------------------------------------------------------------
# Pure-JAX reference (mirrors the PyTorch module's default-flag forward).
# ----------------------------------------------------------------------------
def encoder_reference(x, init_state, node_embeddings, params, cheb_k):
    supports = build_supports(node_embeddings, cheb_k)
    E = node_embeddings
    current = x
    out_hidden = []
    for l, p in enumerate(params):
        O = p['bu_pool'].shape[-1]
        Wg = jnp.einsum('nd,dkco->nkco', E, p['Wg_pool'])
        Wu = jnp.einsum('nd,dkco->nkco', E, p['Wu_pool'])
        bg = E @ p['bg_pool']
        bu = E @ p['bu_pool']
        h = init_state[l]
        outs = []
        for t in range(current.shape[1]):
            xt = current[:, t]
            inp = jnp.concatenate([xt, h], axis=-1)
            xg = jnp.einsum('knm,bmc->bknc', supports, inp)
            zr = jax.nn.sigmoid(jnp.einsum('bknc,nkco->bno', xg, Wg) + bg)
            z, r = zr[..., :O], zr[..., O:]
            inp2 = jnp.concatenate([xt, z * h], axis=-1)
            xg2 = jnp.einsum('knm,bmc->bknc', supports, inp2)
            hc = jnp.tanh(jnp.einsum('bknc,nkco->bno', xg2, Wu) + bu)
            h = r * h + (1.0 - r) * hc
            outs.append(h)
        current = jnp.stack(outs, axis=1)
        out_hidden.append(h)
    return current, out_hidden


if __name__ == "__main__":
    # Small shapes consistent with the module.
    B, T, N = 2, 8, 16
    in_dim, out_dim, cheb_k, embed_dim, num_layers = 2, 32, 2, 8, 2

    key = jax.random.PRNGKey(0)
    kx, ke, kp = jax.random.split(key, 3)

    x = jax.random.normal(kx, (B, T, N, in_dim), jnp.float32)
    node_embeddings = jax.random.normal(ke, (N, embed_dim), jnp.float32)
    init_state = jnp.zeros((num_layers, B, N, out_dim), jnp.float32)
    params = make_params(kp, in_dim, out_dim, cheb_k, embed_dim, num_layers)

    outputs, output_hidden = encoder_forward(
        x, init_state, node_embeddings, params, cheb_k=cheb_k)
    jax.block_until_ready(outputs)
    for h in output_hidden:
        jax.block_until_ready(h)

    assert outputs.shape == (B, T, N, out_dim)
    assert len(output_hidden) == num_layers
    assert all(h.shape == (B, N, out_dim) for h in output_hidden)

    # Correctness vs pure-JAX reference (bf16 matmuls -> loose tolerance).
    ref_seq, ref_hidden = encoder_reference(
        x, init_state, node_embeddings, params, cheb_k)
    assert float(jnp.max(jnp.abs(outputs - ref_seq))) < 0.15
    for h, hr in zip(output_hidden, ref_hidden):
        assert float(jnp.max(jnp.abs(h - hr))) < 0.15

    print("KERNEL_OK")
</pallas_src>

<mosaic_0001>
module attributes {stable_mosaic.version = 11 : i64} {
  func.func @_encoder_kernel(%arg0: i32, %arg1: memref<1x128x4xbf16, #tpu.memory_space<vmem>>, %arg2: memref<2x1x16x32xf32, #tpu.memory_space<vmem>>, %arg3: memref<1x16x16xbf16, #tpu.memory_space<vmem>>, %arg4: memref<16x512xf32, #tpu.memory_space<vmem>>, %arg5: memref<16x256xf32, #tpu.memory_space<vmem>>, %arg6: memref<4x768xbf16, #tpu.memory_space<vmem>>, %arg7: memref<64x512xbf16, #tpu.memory_space<vmem>>, %arg8: memref<64x256xbf16, #tpu.memory_space<vmem>>, %arg9: memref<16x64xf32, #tpu.memory_space<vmem>>, %arg10: memref<16x32xf32, #tpu.memory_space<vmem>>, %arg11: memref<64x768xbf16, #tpu.memory_space<vmem>>, %arg12: memref<64x512xbf16, #tpu.memory_space<vmem>>, %arg13: memref<64x256xbf16, #tpu.memory_space<vmem>>, %arg14: memref<16x64xf32, #tpu.memory_space<vmem>>, %arg15: memref<16x32xf32, #tpu.memory_space<vmem>>, %arg16: memref<1x8x16x32xf32, #tpu.memory_space<vmem>>, %arg17: memref<2x1x16x32xf32, #tpu.memory_space<vmem>>, %arg18: memref<128x768xf32, #tpu.memory_space<vmem>>, %arg19: memref<128x64xbf16, #tpu.memory_space<vmem>>) attributes {dimension_semantics = [#tpu.dimension_semantics<parallel>], iteration_bounds = array<i64: 2>, scalar_prefetch = 0 : i64, scratch_operands = 2 : i64, tpu.core_type = #tpu.core_type<tc>, window_params = [{transform_indices = @transform_0, window_bounds = array<i64: 1, 128, 4>}, {transform_indices = @transform_1, window_bounds = array<i64: 2, 1, 16, 32>}, {pipeline_mode = #tpu.pipeline_mode<synchronous>, transform_indices = @transform_2, window_bounds = array<i64: 1, 16, 16>}, {pipeline_mode = #tpu.pipeline_mode<synchronous>, transform_indices = @transform_3, window_bounds = array<i64: 16, 512>}, {pipeline_mode = #tpu.pipeline_mode<synchronous>, transform_indices = @transform_4, window_bounds = array<i64: 16, 256>}, {pipeline_mode = #tpu.pipeline_mode<synchronous>, transform_indices = @transform_5, window_bounds = array<i64: 4, 768>}, {pipeline_mode = #tpu.pipeline_mode<synchronous>, transform_indices = @transform_6, window_bounds = array<i64: 64, 512>}, {pipeline_mode = #tpu.pipeline_mode<synchronous>, transform_indices = @transform_7, window_bounds = array<i64: 64, 256>}, {pipeline_mode = #tpu.pipeline_mode<synchronous>, transform_indices = @transform_8, window_bounds = array<i64: 16, 64>}, {pipeline_mode = #tpu.pipeline_mode<synchronous>, transform_indices = @transform_9, window_bounds = array<i64: 16, 32>}, {pipeline_mode = #tpu.pipeline_mode<synchronous>, transform_indices = @transform_10, window_bounds = array<i64: 64, 768>}, {pipeline_mode = #tpu.pipeline_mode<synchronous>, transform_indices = @transform_11, window_bounds = array<i64: 64, 512>}, {pipeline_mode = #tpu.pipeline_mode<synchronous>, transform_indices = @transform_12, window_bounds = array<i64: 64, 256>}, {pipeline_mode = #tpu.pipeline_mode<synchronous>, transform_indices = @transform_13, window_bounds = array<i64: 16, 64>}, {pipeline_mode = #tpu.pipeline_mode<synchronous>, transform_indices = @transform_14, window_bounds = array<i64: 16, 32>}, {transform_indices = @transform_15, window_bounds = array<i64: 1, 8, 16, 32>}, {transform_indices = @transform_16, window_bounds = array<i64: 2, 1, 16, 32>}]} {
    %c0 = arith.constant 0 : index
    %c0_0 = arith.constant 0 : index
    %c0_1 = arith.constant 0 : index
    %0 = vector.load %arg1[%c0, %c0_0, %c0_1] : memref<1x128x4xbf16, #tpu.memory_space<vmem>>, vector<1x128x4xbf16>
    %1 = vector.shape_cast %0 : vector<1x128x4xbf16> to vector<128x4xbf16>
    %c0_2 = arith.constant 0 : index
    %c0_3 = arith.constant 0 : index
    %2 = vector.load %arg6[%c0_2, %c0_3] : memref<4x768xbf16, #tpu.memory_space<vmem>>, vector<4x768xbf16>
    %cst = arith.constant dense<0.000000e+00> : vector<128x768xf32>
    %3 = tpu.matmul %1, %2, %cst {dimension_numbers = #tpu.dot_dimension_numbers<[1], [0], [0], [1], [0, 0, 1, 1], [], []>} : vector<128x4xbf16>, vector<4x768xbf16>, vector<128x768xf32> -> vector<128x768xf32>
    %c0_4 = arith.constant 0 : index
    %c0_5 = arith.constant 0 : index
    %4 = vector.load %arg18[%c0_4, %c0_5] : memref<128x768xf32, #tpu.memory_space<vmem>>, vector<128x768xf32>
    tpu.vector_store %arg18[%c0_4, %c0_5], %3 {strides = array<i32>} : memref<128x768xf32, #tpu.memory_space<vmem>>, vector<128x768xf32>,
    %c0_6 = arith.constant 0 : index
    %c0_7 = arith.constant 0 : index
    %c0_8 = arith.constant 0 : index
    %c0_9 = arith.constant 0 : index
    %5 = vector.load %arg2[%c0_6, %c0_7, %c0_8, %c0_9] : memref<2x1x16x32xf32, #tpu.memory_space<vmem>>, vector<1x1x16x32xf32>
    %6 = vector.shape_cast %5 : vector<1x1x16x32xf32> to vector<16x32xf32>
    %7 = arith.truncf %6 : vector<16x32xf32> to vector<16x32xbf16>
    %c0_10 = arith.constant 0 : index
    %c0_11 = arith.constant 0 : index
    %c0_12 = arith.constant 0 : index
    %8 = vector.load %arg3[%c0_10, %c0_11, %c0_12] : memref<1x16x16xbf16, #tpu.memory_space<vmem>>, vector<1x16x16xbf16>
    %9 = vector.shape_cast %8 : vector<1x16x16xbf16> to vector<16x16xbf16>
    %cst_13 = arith.constant dense<0.000000e+00> : vector<16x32xf32>
    %10 = tpu.matmul %9, %7, %cst_13 {dimension_numbers = #tpu.dot_dimension_numbers<[1], [0], [0], [1], [0, 0, 1, 1], [], []>} : vector<16x16xbf16>, vector<16x32xbf16>, vector<16x32xf32> -> vector<16x32xf32>
    %11 = arith.truncf %10 : vector<16x32xf32> to vector<16x32xbf16>
    %12 = tpu.concatenate %7, %11 in 1 : vector<16x32xbf16>, vector<16x32xbf16> -> vector<16x64xbf16>
    %c0_i32 = arith.constant 0 : i32
    %c8_i32 = arith.constant 8 : i32
    %13 = arith.addi %c0_i32, %c8_i32 : i32
    %c1_i32 = arith.constant 1 : i32
    %14:2 = scf.for %arg20 = %c0_i32 to %13 step %c1_i32 iter_args(%arg21 = %6, %arg22 = %12) -> (vector<16x32xf32>, vector<16x64xbf16>)  : i32 {
      %c16_i32 = arith.constant 16 : i32
      %35 = arith.muli %arg20, %c16_i32 : i32
      %36 = tpu.assume_multiple %35, 16 : i32
      %37 = arith.index_cast %36 : i32 to index
      %c0_41 = arith.constant 0 : index
      %38 = vector.load %arg18[%37, %c0_41] : memref<128x768xf32, #tpu.memory_space<vmem>>, vector<16x768xf32>
      %39 = vector.extract_strided_slice %38 {offsets = [0, 0], sizes = [16, 512], strides = [1, 1]} : vector<16x768xf32> to vector<16x512xf32>
      %c0_42 = arith.constant 0 : index
      %c0_43 = arith.constant 0 : index
      %40 = vector.load %arg7[%c0_42, %c0_43] : memref<64x512xbf16, #tpu.memory_space<vmem>>, vector<64x512xbf16>
      %cst_44 = arith.constant dense<0.000000e+00> : vector<16x512xf32>
      %41 = tpu.matmul %arg22, %40, %cst_44 {dimension_numbers = #tpu.dot_dimension_numbers<[1], [0], [0], [1], [0, 0, 1, 1], [], []>} : vector<16x64xbf16>, vector<64x512xbf16>, vector<16x512xf32> -> vector<16x512xf32>
      %42 = arith.addf %39, %41 : vector<16x512xf32>
      %c0_45 = arith.constant 0 : index
      %c0_46 = arith.constant 0 : index
      %43 = vector.load %arg9[%c0_45, %c0_46] : memref<16x64xf32, #tpu.memory_space<vmem>>, vector<16x64xf32>
      %c0_47 = arith.constant 0 : index
      %c0_48 = arith.constant 0 : index
      %44 = vector.load %arg4[%c0_47, %c0_48] : memref<16x512xf32, #tpu.memory_space<vmem>>, vector<16x512xf32>
      %45 = arith.mulf %42, %44 : vector<16x512xf32>
      %c64_i32 = arith.constant 64 : i32
      %46 = tpu.dynamic_rotate %45 by %c64_i32 dim 1 : vector<16x512xf32>, i32 -> vector<16x512xf32>
      %47 = arith.addf %45, %46 : vector<16x512xf32>
      %c128_i32 = arith.constant 128 : i32
      %48 = tpu.dynamic_rotate %47 by %c128_i32 dim 1 : vector<16x512xf32>, i32 -> vector<16x512xf32>
      %49 = arith.addf %47, %48 : vector<16x512xf32>
      %c256_i32 = arith.constant 256 : i32
      %50 = tpu.dynamic_rotate %49 by %c256_i32 dim 1 : vector<16x512xf32>, i32 -> vector<16x512xf32>
      %51 = arith.addf %49, %50 : vector<16x512xf32>
      %52 = vector.extract_strided_slice %51 {offsets = [0, 0], sizes = [16, 64], strides = [1, 1]} : vector<16x512xf32> to vector<16x64xf32>
      %53 = arith.addf %43, %52 : vector<16x64xf32>
      %54 = arith.negf %53 : vector<16x64xf32>
      %55 = math.exp %54 : vector<16x64xf32>
      %cst_49 = arith.constant 1.000000e+00 : f32
      %56 = vector.broadcast %cst_49 : f32 to vector<16x64xf32>
      %57 = arith.addf %56, %55 : vector<16x64xf32>
      %58 = arith.divf %56, %57 : vector<16x64xf32>
      %59 = vector.extract_strided_slice %58 {offsets = [0, 0], sizes = [16, 32], strides = [1, 1]} : vector<16x64xf32> to vector<16x32xf32>
      %60 = vector.extract_strided_slice %58 {offsets = [0, 32], sizes = [16, 32], strides = [1, 1]} : vector<16x64xf32> to vector<16x32xf32>
      %61 = arith.mulf %59, %arg21 : vector<16x32xf32>
      %62 = arith.truncf %61 : vector<16x32xf32> to vector<16x32xbf16>
      %c0_50 = arith.constant 0 : index
      %c0_51 = arith.constant 0 : index
      %c0_52 = arith.constant 0 : index
      %63 = vector.load %arg3[%c0_50, %c0_51, %c0_52] : memref<1x16x16xbf16, #tpu.memory_space<vmem>>, vector<1x16x16xbf16>
      %64 = vector.shape_cast %63 : vector<1x16x16xbf16> to vector<16x16xbf16>
      %cst_53 = arith.constant dense<0.000000e+00> : vector<16x32xf32>
      %65 = tpu.matmul %64, %62, %cst_53 {dimension_numbers = #tpu.dot_dimension_numbers<[1], [0], [0], [1], [0, 0, 1, 1], [], []>} : vector<16x16xbf16>, vector<16x32xbf16>, vector<16x32xf32> -> vector<16x32xf32>
      %66 = arith.truncf %65 : vector<16x32xf32> to vector<16x32xbf16>
      %67 = tpu.concatenate %62, %66 in 1 : vector<16x32xbf16>, vector<16x32xbf16> -> vector<16x64xbf16>
      %68 = vector.extract_strided_slice %38 {offsets = [0, 512], sizes = [16, 256], strides = [1, 1]} : vector<16x768xf32> to vector<16x256xf32>
      %c0_54 = arith.constant 0 : index
      %c0_55 = arith.constant 0 : index
      %69 = vector.load %arg8[%c0_54, %c0_55] : memref<64x256xbf16, #tpu.memory_space<vmem>>, vector<64x256xbf16>
      %cst_56 = arith.constant dense<0.000000e+00> : vector<16x256xf32>
      %70 = tpu.matmul %67, %69, %cst_56 {dimension_numbers = #tpu.dot_dimension_numbers<[1], [0], [0], [1], [0, 0, 1, 1], [], []>} : vector<16x64xbf16>, vector<64x256xbf16>, vector<16x256xf32> -> vector<16x256xf32>
      %71 = arith.addf %68, %70 : vector<16x256xf32>
      %c0_57 = arith.constant 0 : index
      %c0_58 = arith.constant 0 : index
      %72 = vector.load %arg10[%c0_57, %c0_58] : memref<16x32xf32, #tpu.memory_space<vmem>>, vector<16x32xf32>
      %c0_59 = arith.constant 0 : index
      %c0_60 = arith.constant 0 : index
      %73 = vector.load %arg5[%c0_59, %c0_60] : memref<16x256xf32, #tpu.memory_space<vmem>>, vector<16x256xf32>
      %74 = arith.mulf %71, %73 : vector<16x256xf32>
      %c32_i32 = arith.constant 32 : i32
      %75 = tpu.dynamic_rotate %74 by %c32_i32 dim 1 : vector<16x256xf32>, i32 -> vector<16x256xf32>
      %76 = arith.addf %74, %75 : vector<16x256xf32>
      %c64_i32_61 = arith.constant 64 : i32
      %77 = tpu.dynamic_rotate %76 by %c64_i32_61 dim 1 : vector<16x256xf32>, i32 -> vector<16x256xf32>
      %78 = arith.addf %76, %77 : vector<16x256xf32>
      %c128_i32_62 = arith.constant 128 : i32
      %79 = tpu.dynamic_rotate %78 by %c128_i32_62 dim 1 : vector<16x256xf32>, i32 -> vector<16x256xf32>
      %80 = arith.addf %78, %79 : vector<16x256xf32>
      %81 = vector.extract_strided_slice %80 {offsets = [0, 0], sizes = [16, 32], strides = [1, 1]} : vector<16x256xf32> to vector<16x32xf32>
      %82 = arith.addf %72, %81 : vector<16x32xf32>
      %83 = math.tanh %82 : vector<16x32xf32>
      %84 = arith.mulf %60, %arg21 : vector<16x32xf32>
      %cst_63 = arith.constant 1.000000e+00 : f32
      %85 = vector.broadcast %cst_63 : f32 to vector<16x32xf32>
      %86 = arith.subf %85, %60 : vector<16x32xf32>
      %87 = arith.mulf %86, %83 : vector<16x32xf32>
      %88 = arith.addf %84, %87 : vector<16x32xf32>
      %89 = arith.truncf %88 : vector<16x32xf32> to vector<16x32xbf16>
      %c0_64 = arith.constant 0 : index
      %c0_65 = arith.constant 0 : index
      %c0_66 = arith.constant 0 : index
      %90 = vector.load %arg3[%c0_64, %c0_65, %c0_66] : memref<1x16x16xbf16, #tpu.memory_space<vmem>>, vector<1x16x16xbf16>
      %91 = vector.shape_cast %90 : vector<1x16x16xbf16> to vector<16x16xbf16>
      %cst_67 = arith.constant dense<0.000000e+00> : vector<16x32xf32>
      %92 = tpu.matmul %91, %89, %cst_67 {dimension_numbers = #tpu.dot_dimension_numbers<[1], [0], [0], [1], [0, 0, 1, 1], [], []>} : vector<16x16xbf16>, vector<16x32xbf16>, vector<16x32xf32> -> vector<16x32xf32>
      %93 = arith.truncf %92 : vector<16x32xf32> to vector<16x32xbf16>
      %94 = tpu.concatenate %89, %93 in 1 : vector<16x32xbf16>, vector<16x32xbf16> -> vector<16x64xbf16>
      %95 = arith.index_cast %36 : i32 to index
      %c0_68 = arith.constant 0 : index
      %96 = vector.load %arg19[%95, %c0_68] : memref<128x64xbf16, #tpu.memory_space<vmem>>, vector<16x64xbf16>
      tpu.vector_store %arg19[%95, %c0_68], %94 {strides = array<i32>} : memref<128x64xbf16, #tpu.memory_space<vmem>>, vector<16x64xbf16>,
      scf.yield %88, %94 : vector<16x32xf32>, vector<16x64xbf16>
    }
    %c8_i32_14 = arith.constant 8 : i32
    %c0_15 = arith.constant 0 : index
    %c0_16 = arith.constant 0 : index
    %c0_17 = arith.constant 0 : index
    %c0_18 = arith.constant 0 : index
    %15 = vector.load %arg17[%c0_15, %c0_16, %c0_17, %c0_18] : memref<2x1x16x32xf32, #tpu.memory_space<vmem>>, vector<1x1x16x32xf32>
    %16 = vector.shape_cast %15 : vector<1x1x16x32xf32> to vector<16x32xf32>
    %17 = vector.shape_cast %14#0 : vector<16x32xf32> to vector<1x1x16x32xf32>
    tpu.vector_store %arg17[%c0_15, %c0_16, %c0_17, %c0_18], %17 {strides = array<i32>} : memref<2x1x16x32xf32, #tpu.memory_space<vmem>>, vector<1x1x16x32xf32>,
    %c0_19 = arith.constant 0 : index
    %c0_20 = arith.constant 0 : index
    %18 = vector.load %arg19[%c0_19, %c0_20] : memref<128x64xbf16, #tpu.memory_space<vmem>>, vector<128x64xbf16>
    %c0_21 = arith.constant 0 : index
    %c0_22 = arith.constant 0 : index
    %19 = vector.load %arg11[%c0_21, %c0_22] : memref<64x768xbf16, #tpu.memory_space<vmem>>, vector<64x768xbf16>
    %cst_23 = arith.constant dense<0.000000e+00> : vector<128x768xf32>
    %20 = tpu.matmul %18, %19, %cst_23 {dimension_numbers = #tpu.dot_dimension_numbers<[1], [0], [0], [1], [0, 0, 1, 1], [], []>} : vector<128x64xbf16>, vector<64x768xbf16>, vector<128x768xf32> -> vector<128x768xf32>
    %c0_24 = arith.constant 0 : index
    %c0_25 = arith.constant 0 : index
    %21 = vector.load %arg18[%c0_24, %c0_25] : memref<128x768xf32, #tpu.memory_space<vmem>>, vector<128x768xf32>
    tpu.vector_store %arg18[%c0_24, %c0_25], %20 {strides = array<i32>} : memref<128x768xf32, #tpu.memory_space<vmem>>, vector<128x768xf32>,
    %c1 = arith.constant 1 : index
    %c0_26 = arith.constant 0 : index
    %c0_27 = arith.constant 0 : index
    %c0_28 = arith.constant 0 : index
    %22 = vector.load %arg2[%c1, %c0_26, %c0_27, %c0_28] : memref<2x1x16x32xf32, #tpu.memory_space<vmem>>, vector<1x1x16x32xf32>
    %23 = vector.shape_cast %22 : vector<1x1x16x32xf32> to vector<16x32xf32>
    %24 = arith.truncf %23 : vector<16x32xf32> to vector<16x32xbf16>
    %c0_29 = arith.constant 0 : index
    %c0_30 = arith.constant 0 : index
    %c0_31 = arith.constant 0 : index
    %25 = vector.load %arg3[%c0_29, %c0_30, %c0_31] : memref<1x16x16xbf16, #tpu.memory_space<vmem>>, vector<1x16x16xbf16>
    %26 = vector.shape_cast %25 : vector<1x16x16xbf16> to vector<16x16xbf16>
    %cst_32 = arith.constant dense<0.000000e+00> : vector<16x32xf32>
    %27 = tpu.matmul %26, %24, %cst_32 {dimension_numbers = #tpu.dot_dimension_numbers<[1], [0], [0], [1], [0, 0, 1, 1], [], []>} : vector<16x16xbf16>, vector<16x32xbf16>, vector<16x32xf32> -> vector<16x32xf32>
    %28 = arith.truncf %27 : vector<16x32xf32> to vector<16x32xbf16>
    %29 = tpu.concatenate %24, %28 in 1 : vector<16x32xbf16>, vector<16x32xbf16> -> vector<16x64xbf16>
    %c0_i32_33 = arith.constant 0 : i32
    %c8_i32_34 = arith.constant 8 : i32
    %30 = arith.addi %c0_i32_33, %c8_i32_34 : i32
    %c1_i32_35 = arith.constant 1 : i32
    %31:2 = scf.for %arg20 = %c0_i32_33 to %30 step %c1_i32_35 iter_args(%arg21 = %23, %arg22 = %29) -> (vector<16x32xf32>, vector<16x64xbf16>)  : i32 {
      %c16_i32 = arith.constant 16 : i32
      %35 = arith.muli %arg20, %c16_i32 : i32
      %36 = tpu.assume_multiple %35, 16 : i32
      %37 = arith.index_cast %36 : i32 to index
      %c0_41 = arith.constant 0 : index
      %38 = vector.load %arg18[%37, %c0_41] : memref<128x768xf32, #tpu.memory_space<vmem>>, vector<16x768xf32>
      %39 = vector.extract_strided_slice %38 {offsets = [0, 0], sizes = [16, 512], strides = [1, 1]} : vector<16x768xf32> to vector<16x512xf32>
      %c0_42 = arith.constant 0 : index
      %c0_43 = arith.constant 0 : index
      %40 = vector.load %arg12[%c0_42, %c0_43] : memref<64x512xbf16, #tpu.memory_space<vmem>>, vector<64x512xbf16>
      %cst_44 = arith.constant dense<0.000000e+00> : vector<16x512xf32>
      %41 = tpu.matmul %arg22, %40, %cst_44 {dimension_numbers = #tpu.dot_dimension_numbers<[1], [0], [0], [1], [0, 0, 1, 1], [], []>} : vector<16x64xbf16>, vector<64x512xbf16>, vector<16x512xf32> -> vector<16x512xf32>
      %42 = arith.addf %39, %41 : vector<16x512xf32>
      %c0_45 = arith.constant 0 : index
      %c0_46 = arith.constant 0 : index
      %43 = vector.load %arg14[%c0_45, %c0_46] : memref<16x64xf32, #tpu.memory_space<vmem>>, vector<16x64xf32>
      %c0_47 = arith.constant 0 : index
      %c0_48 = arith.constant 0 : index
      %44 = vector.load %arg4[%c0_47, %c0_48] : memref<16x512xf32, #tpu.memory_space<vmem>>, vector<16x512xf32>
      %45 = arith.mulf %42, %44 : vector<16x512xf32>
      %c64_i32 = arith.constant 64 : i32
      %46 = tpu.dynamic_rotate %45 by %c64_i32 dim 1 : vector<16x512xf32>, i32 -> vector<16x512xf32>
      %47 = arith.addf %45, %46 : vector<16x512xf32>
      %c128_i32 = arith.constant 128 : i32
      %48 = tpu.dynamic_rotate %47 by %c128_i32 dim 1 : vector<16x512xf32>, i32 -> vector<16x512xf32>
      %49 = arith.addf %47, %48 : vector<16x512xf32>
      %c256_i32 = arith.constant 256 : i32
      %50 = tpu.dynamic_rotate %49 by %c256_i32 dim 1 : vector<16x512xf32>, i32 -> vector<16x512xf32>
      %51 = arith.addf %49, %50 : vector<16x512xf32>
      %52 = vector.extract_strided_slice %51 {offsets = [0, 0], sizes = [16, 64], strides = [1, 1]} : vector<16x512xf32> to vector<16x64xf32>
      %53 = arith.addf %43, %52 : vector<16x64xf32>
      %54 = arith.negf %53 : vector<16x64xf32>
      %55 = math.exp %54 : vector<16x64xf32>
      %cst_49 = arith.constant 1.000000e+00 : f32
      %56 = vector.broadcast %cst_49 : f32 to vector<16x64xf32>
      %57 = arith.addf %56, %55 : vector<16x64xf32>
      %58 = arith.divf %56, %57 : vector<16x64xf32>
      %59 = vector.extract_strided_slice %58 {offsets = [0, 0], sizes = [16, 32], strides = [1, 1]} : vector<16x64xf32> to vector<16x32xf32>
      %60 = vector.extract_strided_slice %58 {offsets = [0, 32], sizes = [16, 32], strides = [1, 1]} : vector<16x64xf32> to vector<16x32xf32>
      %61 = arith.mulf %59, %arg21 : vector<16x32xf32>
      %62 = arith.truncf %61 : vector<16x32xf32> to vector<16x32xbf16>
      %c0_50 = arith.constant 0 : index
      %c0_51 = arith.constant 0 : index
      %c0_52 = arith.constant 0 : index
      %63 = vector.load %arg3[%c0_50, %c0_51, %c0_52] : memref<1x16x16xbf16, #tpu.memory_space<vmem>>, vector<1x16x16xbf16>
      %64 = vector.shape_cast %63 : vector<1x16x16xbf16> to vector<16x16xbf16>
      %cst_53 = arith.constant dense<0.000000e+00> : vector<16x32xf32>
      %65 = tpu.matmul %64, %62, %cst_53 {dimension_numbers = #tpu.dot_dimension_numbers<[1], [0], [0], [1], [0, 0, 1, 1], [], []>} : vector<16x16xbf16>, vector<16x32xbf16>, vector<16x32xf32> -> vector<16x32xf32>
      %66 = arith.truncf %65 : vector<16x32xf32> to vector<16x32xbf16>
      %67 = tpu.concatenate %62, %66 in 1 : vector<16x32xbf16>, vector<16x32xbf16> -> vector<16x64xbf16>
      %68 = vector.extract_strided_slice %38 {offsets = [0, 512], sizes = [16, 256], strides = [1, 1]} : vector<16x768xf32> to vector<16x256xf32>
      %c0_54 = arith.constant 0 : index
      %c0_55 = arith.constant 0 : index
      %69 = vector.load %arg13[%c0_54, %c0_55] : memref<64x256xbf16, #tpu.memory_space<vmem>>, vector<64x256xbf16>
      %cst_56 = arith.constant dense<0.000000e+00> : vector<16x256xf32>
      %70 = tpu.matmul %67, %69, %cst_56 {dimension_numbers = #tpu.dot_dimension_numbers<[1], [0], [0], [1], [0, 0, 1, 1], [], []>} : vector<16x64xbf16>, vector<64x256xbf16>, vector<16x256xf32> -> vector<16x256xf32>
      %71 = arith.addf %68, %70 : vector<16x256xf32>
      %c0_57 = arith.constant 0 : index
      %c0_58 = arith.constant 0 : index
      %72 = vector.load %arg15[%c0_57, %c0_58] : memref<16x32xf32, #tpu.memory_space<vmem>>, vector<16x32xf32>
      %c0_59 = arith.constant 0 : index
      %c0_60 = arith.constant 0 : index
      %73 = vector.load %arg5[%c0_59, %c0_60] : memref<16x256xf32, #tpu.memory_space<vmem>>, vector<16x256xf32>
      %74 = arith.mulf %71, %73 : vector<16x256xf32>
      %c32_i32 = arith.constant 32 : i32
      %75 = tpu.dynamic_rotate %74 by %c32_i32 dim 1 : vector<16x256xf32>, i32 -> vector<16x256xf32>
      %76 = arith.addf %74, %75 : vector<16x256xf32>
      %c64_i32_61 = arith.constant 64 : i32
      %77 = tpu.dynamic_rotate %76 by %c64_i32_61 dim 1 : vector<16x256xf32>, i32 -> vector<16x256xf32>
      %78 = arith.addf %76, %77 : vector<16x256xf32>
      %c128_i32_62 = arith.constant 128 : i32
      %79 = tpu.dynamic_rotate %78 by %c128_i32_62 dim 1 : vector<16x256xf32>, i32 -> vector<16x256xf32>
      %80 = arith.addf %78, %79 : vector<16x256xf32>
      %81 = vector.extract_strided_slice %80 {offsets = [0, 0], sizes = [16, 32], strides = [1, 1]} : vector<16x256xf32> to vector<16x32xf32>
      %82 = arith.addf %72, %81 : vector<16x32xf32>
      %83 = math.tanh %82 : vector<16x32xf32>
      %84 = arith.mulf %60, %arg21 : vector<16x32xf32>
      %cst_63 = arith.constant 1.000000e+00 : f32
      %85 = vector.broadcast %cst_63 : f32 to vector<16x32xf32>
      %86 = arith.subf %85, %60 : vector<16x32xf32>
      %87 = arith.mulf %86, %83 : vector<16x32xf32>
      %88 = arith.addf %84, %87 : vector<16x32xf32>
      %89 = arith.truncf %88 : vector<16x32xf32> to vector<16x32xbf16>
      %c0_64 = arith.constant 0 : index
      %c0_65 = arith.constant 0 : index
      %c0_66 = arith.constant 0 : index
      %90 = vector.load %arg3[%c0_64, %c0_65, %c0_66] : memref<1x16x16xbf16, #tpu.memory_space<vmem>>, vector<1x16x16xbf16>
      %91 = vector.shape_cast %90 : vector<1x16x16xbf16> to vector<16x16xbf16>
      %cst_67 = arith.constant dense<0.000000e+00> : vector<16x32xf32>
      %92 = tpu.matmul %91, %89, %cst_67 {dimension_numbers = #tpu.dot_dimension_numbers<[1], [0], [0], [1], [0, 0, 1, 1], [], []>} : vector<16x16xbf16>, vector<16x32xbf16>, vector<16x32xf32> -> vector<16x32xf32>
      %93 = arith.truncf %92 : vector<16x32xf32> to vector<16x32xbf16>
      %94 = tpu.concatenate %89, %93 in 1 : vector<16x32xbf16>, vector<16x32xbf16> -> vector<16x64xbf16>
      %c0_68 = arith.constant 0 : index
      %95 = arith.index_cast %arg20 : i32 to index
      %c0_69 = arith.constant 0 : index
      %c0_70 = arith.constant 0 : index
      %96 = vector.load %arg16[%c0_68, %95, %c0_69, %c0_70] : memref<1x8x16x32xf32, #tpu.memory_space<vmem>>, vector<1x1x16x32xf32>
      %97 = vector.shape_cast %96 : vector<1x1x16x32xf32> to vector<16x32xf32>
      %98 = vector.shape_cast %88 : vector<16x32xf32> to vector<1x1x16x32xf32>
      tpu.vector_store %arg16[%c0_68, %95, %c0_69, %c0_70], %98 {strides = array<i32>} : memref<1x8x16x32xf32, #tpu.memory_space<vmem>>, vector<1x1x16x32xf32>,
      scf.yield %88, %94 : vector<16x32xf32>, vector<16x64xbf16>
    }
    %c8_i32_36 = arith.constant 8 : i32
    %c1_37 = arith.constant 1 : index
    %c0_38 = arith.constant 0 : index
    %c0_39 = arith.constant 0 : index
    %c0_40 = arith.constant 0 : index
    %32 = vector.load %arg17[%c1_37, %c0_38, %c0_39, %c0_40] : memref<2x1x16x32xf32, #tpu.memory_space<vmem>>, vector<1x1x16x32xf32>
    %33 = vector.shape_cast %32 : vector<1x1x16x32xf32> to vector<16x32xf32>
    %34 = vector.shape_cast %31#0 : vector<16x32xf32> to vector<1x1x16x32xf32>
    tpu.vector_store %arg17[%c1_37, %c0_38, %c0_39, %c0_40], %34 {strides = array<i32>} : memref<2x1x16x32xf32, #tpu.memory_space<vmem>>, vector<1x1x16x32xf32>,
    return
  }
  func.func @transform_0(%arg0: i32) -> (i32, i32, i32) {
    %c0_i32 = arith.constant 0 : i32
    %c0_i32_0 = arith.constant 0 : i32
    %c0_i32_1 = arith.constant 0 : i32
    return %arg0, %c0_i32, %c0_i32_0 : i32, i32, i32
  }
  func.func @transform_1(%arg0: i32) -> (i32, i32, i32, i32) {
    %c0_i32 = arith.constant 0 : i32
    %c0_i32_0 = arith.constant 0 : i32
    %c0_i32_1 = arith.constant 0 : i32
    %c0_i32_2 = arith.constant 0 : i32
    return %c0_i32, %arg0, %c0_i32_0, %c0_i32_1 : i32, i32, i32, i32
  }
  func.func @transform_2(%arg0: i32) -> (i32, i32, i32) {
    %c0_i32 = arith.constant 0 : i32
    %c0_i32_0 = arith.constant 0 : i32
    %c0_i32_1 = arith.constant 0 : i32
    %c0_i32_2 = arith.constant 0 : i32
    return %c0_i32, %c0_i32_0, %c0_i32_1 : i32, i32, i32
  }
  func.func @transform_3(%arg0: i32) -> (i32, i32) {
    %c0_i32 = arith.constant 0 : i32
    %c0_i32_0 = arith.constant 0 : i32
    %c0_i32_1 = arith.constant 0 : i32
    return %c0_i32, %c0_i32_0 : i32, i32
  }
  func.func @transform_4(%arg0: i32) -> (i32, i32) {
    %c0_i32 = arith.constant 0 : i32
    %c0_i32_0 = arith.constant 0 : i32
    %c0_i32_1 = arith.constant 0 : i32
    return %c0_i32, %c0_i32_0 : i32, i32
  }
  func.func @transform_5(%arg0: i32) -> (i32, i32) {
    %c0_i32 = arith.constant 0 : i32
    %c0_i32_0 = arith.constant 0 : i32
    %c0_i32_1 = arith.constant 0 : i32
    return %c0_i32, %c0_i32_0 : i32, i32
  }
  func.func @transform_6(%arg0: i32) -> (i32, i32) {
    %c0_i32 = arith.constant 0 : i32
    %c0_i32_0 = arith.constant 0 : i32
    %c0_i32_1 = arith.constant 0 : i32
    return %c0_i32, %c0_i32_0 : i32, i32
  }
  func.func @transform_7(%arg0: i32) -> (i32, i32) {
    %c0_i32 = arith.constant 0 : i32
    %c0_i32_0 = arith.constant 0 : i32
    %c0_i32_1 = arith.constant 0 : i32
    return %c0_i32, %c0_i32_0 : i32, i32
  }
  func.func @transform_8(%arg0: i32) -> (i32, i32) {
    %c0_i32 = arith.constant 0 : i32
    %c0_i32_0 = arith.constant 0 : i32
    %c0_i32_1 = arith.constant 0 : i32
    return %c0_i32, %c0_i32_0 : i32, i32
  }
  func.func @transform_9(%arg0: i32) -> (i32, i32) {
    %c0_i32 = arith.constant 0 : i32
    %c0_i32_0 = arith.constant 0 : i32
    %c0_i32_1 = arith.constant 0 : i32
    return %c0_i32, %c0_i32_0 : i32, i32
  }
  func.func @transform_10(%arg0: i32) -> (i32, i32) {
    %c0_i32 = arith.constant 0 : i32
    %c0_i32_0 = arith.constant 0 : i32
    %c0_i32_1 = arith.constant 0 : i32
    return %c0_i32, %c0_i32_0 : i32, i32
  }
  func.func @transform_11(%arg0: i32) -> (i32, i32) {
    %c0_i32 = arith.constant 0 : i32
    %c0_i32_0 = arith.constant 0 : i32
    %c0_i32_1 = arith.constant 0 : i32
    return %c0_i32, %c0_i32_0 : i32, i32
  }
  func.func @transform_12(%arg0: i32) -> (i32, i32) {
    %c0_i32 = arith.constant 0 : i32
    %c0_i32_0 = arith.constant 0 : i32
    %c0_i32_1 = arith.constant 0 : i32
    return %c0_i32, %c0_i32_0 : i32, i32
  }
  func.func @transform_13(%arg0: i32) -> (i32, i32) {
    %c0_i32 = arith.constant 0 : i32
    %c0_i32_0 = arith.constant 0 : i32
    %c0_i32_1 = arith.constant 0 : i32
    return %c0_i32, %c0_i32_0 : i32, i32
  }
  func.func @transform_14(%arg0: i32) -> (i32, i32) {
    %c0_i32 = arith.constant 0 : i32
    %c0_i32_0 = arith.constant 0 : i32
    %c0_i32_1 = arith.constant 0 : i32
    return %c0_i32, %c0_i32_0 : i32, i32
  }
  func.func @transform_15(%arg0: i32) -> (i32, i32, i32, i32) {
    %c0_i32 = arith.constant 0 : i32
    %c0_i32_0 = arith.constant 0 : i32
    %c0_i32_1 = arith.constant 0 : i32
    %c0_i32_2 = arith.constant 0 : i32
    return %arg0, %c0_i32, %c0_i32_0, %c0_i32_1 : i32, i32, i32, i32
  }
  func.func @transform_16(%arg0: i32) -> (i32, i32, i32, i32) {
    %c0_i32 = arith.constant 0 : i32
    %c0_i32_0 = arith.constant 0 : i32
    %c0_i32_1 = arith.constant 0 : i32
    %c0_i32_2 = arith.constant 0 : i32
    return %c0_i32, %arg0, %c0_i32_0, %c0_i32_1 : i32, i32, i32, i32
  }
}

</mosaic_0001>

<llo_original>
// kernel: encoder_forward.1
$region0: #{encoder_forward.1}
  #allocation0 [shape = 'u32[]', space=smem, size = 0x4, offset = 0x4, fixed_abs, tag = 'smem constant byte address 0x4 - core index']
  #allocation1 [shape = 'u32[144,128]{1,0:T(1,128)}', space=vmem, size = 0x12000, scoped, tag = 'internal scratch']
  #allocation2 [shape = 'f32[128,768]{1,0:T(8,128)}', space=vmem, size = 0x60000, scoped, tag = 'scratch operand']
  #allocation3 [shape = 'bf16[128,64]{1,0:T(16,128)(2,1)}', space=vmem, size = 0x8000, scoped, tag = 'scratch operand']
  %s0 = inlined_call_operand.vmem [shape: bf16[2,128,4], index: 0, kind: input, shape index: {}]
  %s1 = inlined_call_operand.vmem [shape: f32[2,2,16,32], index: 1, kind: input, shape index: {}]
  %s2 = inlined_call_operand.vmem [shape: bf16[1,16,16], index: 2, kind: input, shape index: {}]
  %s3 = inlined_call_operand.vmem [shape: f32[16,512], index: 3, kind: input, shape index: {}]
  %s4 = inlined_call_operand.vmem [shape: f32[16,256], index: 4, kind: input, shape index: {}]
  %s5 = inlined_call_operand.vmem [shape: bf16[4,768], index: 5, kind: input, shape index: {}]
  %s6 = inlined_call_operand.vmem [shape: bf16[64,512], index: 6, kind: input, shape index: {}]
  %s7 = inlined_call_operand.vmem [shape: bf16[64,256], index: 7, kind: input, shape index: {}]
  %s8 = inlined_call_operand.vmem [shape: f32[16,64], index: 8, kind: input, shape index: {}]
  %s9 = inlined_call_operand.vmem [shape: f32[16,32], index: 9, kind: input, shape index: {}]
  %s10 = inlined_call_operand.vmem [shape: bf16[64,768], index: 10, kind: input, shape index: {}]
  %s11 = inlined_call_operand.vmem [shape: bf16[64,512], index: 11, kind: input, shape index: {}]
  %s12 = inlined_call_operand.vmem [shape: bf16[64,256], index: 12, kind: input, shape index: {}]
  %s13 = inlined_call_operand.vmem [shape: f32[16,64], index: 13, kind: input, shape index: {}]
  %s14 = inlined_call_operand.vmem [shape: f32[16,32], index: 14, kind: input, shape index: {}]
  %s15 = inlined_call_operand.hbm [shape: f32[2,8,16,32], index: 15, kind: output, shape index: {0}]
  %s16 = inlined_call_operand.vmem [shape: f32[2,2,16,32], index: 16, kind: output, shape index: {1}]
  %17 = xla_tuple %s15, %s16
  %s18 = sld [smem:[#allocation0]]
  $region187: #{encoder_forward.1} parent=0
    _
  %s20 = ssub.s32 1, %s18
  %s21 = scalar_select 0, %s20, %s18
  $region1: #{encoder_forward.1} parent=0
    #allocation4 [shape = 'u8[32768]{0}', space=vmem, size = 0x8000, scoped, tag = 'input window, operand 1']
    #allocation5 [shape = 'u8[131072]{0}', space=vmem, size = 0x20000, scoped, tag = 'output window, operand 0']
    #allocation6 [shape = 's32[2]{0}', space=sflag, size = 0x8, scoped, tag = 'scoped memory for encoder_forward.1']
    #allocation7 [shape = 'u8[32768]{0}', space=vmem, size = 0x8000, scoped, tag = 'output window, operand 1']
    %22 = vsyncpa [#allocation6], 0
    %s23 = scalar_lea.sflag [#allocation6], 1
    %24 = vsyncpa %s23, 0
    loop: start=0, step=1, limit=4
    $region2: #{encoder_forward.1} parent=1 // loop_pre_header
      _
    $region3: #{encoder_forward.1} parent=1 // loop_header
      %s26 = sphi 0, %s30
      %p27 = scmp.ge.s32.totalorder %s26, 4
      %s36 = sphi 0, %s38
      %s39 = sphi 0, %s36
      %s40 = sphi 0, %s39
      %s56 = sphi 0, %s40
      %s62 = sphi 0, %s64
      %s65 = sphi 0, %s62
      %s66 = sphi 0, %s65
      %s82 = sphi 0, %s66
      %s86 = sphi 0, %s86
      %s88 = sphi 0, %s86
      %s89 = sphi 0, %s88
      %s103 = sphi 0, %s89
      %s107 = sphi 0, %s107
      %s109 = sphi 0, %s107
      %s110 = sphi 0, %s109
      %s124 = sphi 0, %s110
      %s128 = sphi 0, %s128
      %s130 = sphi 0, %s128
      %s131 = sphi 0, %s130
      %s145 = sphi 0, %s131
      %s149 = sphi 0, %s149
      %s151 = sphi 0, %s149
      %s152 = sphi 0, %s151
      %s166 = sphi 0, %s152
      %s170 = sphi 0, %s170
      %s172 = sphi 0, %s170
      %s173 = sphi 0, %s172
      %s187 = sphi 0, %s173
      %s191 = sphi 0, %s191
      %s193 = sphi 0, %s191
      %s194 = sphi 0, %s193
      %s208 = sphi 0, %s194
      %s212 = sphi 0, %s212
      %s214 = sphi 0, %s212
      %s215 = sphi 0, %s214
      %s229 = sphi 0, %s215
      %s233 = sphi 0, %s233
      %s235 = sphi 0, %s233
      %s236 = sphi 0, %s235
      %s250 = sphi 0, %s236
      %s254 = sphi 0, %s254
      %s256 = sphi 0, %s254
      %s257 = sphi 0, %s256
      %s271 = sphi 0, %s257
      %s275 = sphi 0, %s275
      %s277 = sphi 0, %s275
      %s278 = sphi 0, %s277
      %s292 = sphi 0, %s278
      %s296 = sphi 0, %s296
      %s298 = sphi 0, %s296
      %s299 = sphi 0, %s298
      %s313 = sphi 0, %s299
      %s317 = sphi 0, %s317
      %s319 = sphi 0, %s317
      %s320 = sphi 0, %s319
      %s334 = sphi 0, %s320
      %s338 = sphi 0, %s338
      %s340 = sphi 0, %s338
      %s341 = sphi 0, %s340
      %s355 = sphi 0, %s341
      %s361 = sphi 0, %s363
      %s364 = sphi 0, %s361
      %s365 = sphi 0, %s364
      %s381 = sphi 0, %s365
      %s387 = sphi 0, %s389
      %s390 = sphi 0, %s387
      %s391 = sphi 0, %s390
      %s407 = sphi 0, %s391
    $region4: #{encoder_forward.1} parent=1 // loop_header_branch
      %29 = sbr.rel (%p27) target = $region8
    $region5: #{encoder_forward.1} parent=1 // loop_body
      %s31 = ssub.s32 %s26, 1
      %s32 = ssub.s32 %s26, 2
      %s33 = sadd.s32 %s26, 1
      %s34 = ssub.s32 %s26, %s33
      %p35 = scmp.eq.s32.totalorder %s34, 0
      %s37 = sadd.s32 %s36, 1
      %s38 = scalar_select %p35, %s36, %s37
      %p41 = pneg %p35
      %p42 = scmp.eq.s32.totalorder %s26, 1
      %p43 = por %p41, %p42
      %p44 = scmp.ne.s32.totalorder %s36, %s39
      %p45 = scmp.eq.s32.totalorder %s26, 0
      %p46 = por %p44, %p45
      %p47 = scmp.ne.s32.totalorder %s36, %s39
      %p48 = scmp.eq.s32.totalorder %s31, 1
      %p49 = por %p47, %p48
      %p50 = scmp.ne.s32.totalorder %s39, %s40
      %p51 = scmp.eq.s32.totalorder %s31, 0
      %p52 = por %p50, %p51
      %p53 = scmp.ne.s32.totalorder %s39, %s40
      %p54 = scmp.eq.s32.totalorder %s32, 1
      %p55 = por %p53, %p54
      %p57 = scmp.ne.s32.totalorder %s40, %s56
      %p58 = scmp.eq.s32.totalorder %s32, 0
      %p59 = por %p57, %p58
      %s60 = ssub.s32 %s26, %s33
      %p61 = scmp.eq.s32.totalorder %s60, 0
      %s63 = sadd.s32 %s62, 1
      %s64 = scalar_select %p61, %s62, %s63
      %p67 = pneg %p61
      %p68 = scmp.eq.s32.totalorder %s26, 1
      %p69 = por %p67, %p68
      %p70 = scmp.ne.s32.totalorder %s62, %s65
      %p71 = scmp.eq.s32.totalorder %s26, 0
      %p72 = por %p70, %p71
      %p73 = scmp.ne.s32.totalorder %s62, %s65
      %p74 = scmp.eq.s32.totalorder %s31, 1
      %p75 = por %p73, %p74
      %p76 = scmp.ne.s32.totalorder %s65, %s66
      %p77 = scmp.eq.s32.totalorder %s31, 0
      %p78 = por %p76, %p77
      %p79 = scmp.ne.s32.totalorder %s65, %s66
      %p80 = scmp.eq.s32.totalorder %s32, 1
      %p81 = por %p79, %p80
      %p83 = scmp.ne.s32.totalorder %s66, %s82
      %p84 = scmp.eq.s32.totalorder %s32, 0
      %p85 = por %p83, %p84
      %s87 = sadd.s32 %s86, 1
      %p90 = scmp.eq.s32.totalorder %s26, 1
      %p91 = scmp.ne.s32.totalorder %s86, %s88
      %p92 = scmp.eq.s32.totalorder %s26, 0
      %p93 = por %p91, %p92
      %p94 = scmp.ne.s32.totalorder %s86, %s88
      %p95 = scmp.eq.s32.totalorder %s31, 1
      %p96 = por %p94, %p95
      %p97 = scmp.ne.s32.totalorder %s88, %s89
      %p98 = scmp.eq.s32.totalorder %s31, 0
      %p99 = por %p97, %p98
      %p100 = scmp.ne.s32.totalorder %s88, %s89
      %p101 = scmp.eq.s32.totalorder %s32, 1
      %p102 = por %p100, %p101
      %p104 = scmp.ne.s32.totalorder %s89, %s103
      %p105 = scmp.eq.s32.totalorder %s32, 0
      %p106 = por %p104, %p105
      %s108 = sadd.s32 %s107, 1
      %p111 = scmp.eq.s32.totalorder %s26, 1
      %p112 = scmp.ne.s32.totalorder %s107, %s109
      %p113 = scmp.eq.s32.totalorder %s26, 0
      %p114 = por %p112, %p113
      %p115 = scmp.ne.s32.totalorder %s107, %s109
      %p116 = scmp.eq.s32.totalorder %s31, 1
      %p117 = por %p115, %p116
      %p118 = scmp.ne.s32.totalorder %s109, %s110
      %p119 = scmp.eq.s32.totalorder %s31, 0
      %p120 = por %p118, %p119
      %p121 = scmp.ne.s32.totalorder %s109, %s110
      %p122 = scmp.eq.s32.totalorder %s32, 1
      %p123 = por %p121, %p122
      %p125 = scmp.ne.s32.totalorder %s110, %s124
      %p126 = scmp.eq.s32.totalorder %s32, 0
      %p127 = por %p125, %p126
      %s129 = sadd.s32 %s128, 1
      %p132 = scmp.eq.s32.totalorder %s26, 1
      %p133 = scmp.ne.s32.totalorder %s128, %s130
      %p134 = scmp.eq.s32.totalorder %s26, 0
      %p135 = por %p133, %p134
      %p136 = scmp.ne.s32.totalorder %s128, %s130
      %p137 = scmp.eq.s32.totalorder %s31, 1
      %p138 = por %p136, %p137
      %p139 = scmp.ne.s32.totalorder %s130, %s131
      %p140 = scmp.eq.s32.totalorder %s31, 0
      %p141 = por %p139, %p140
      %p142 = scmp.ne.s32.totalorder %s130, %s131
      %p143 = scmp.eq.s32.totalorder %s32, 1
      %p144 = por %p142, %p143
      %p146 = scmp.ne.s32.totalorder %s131, %s145
      %p147 = scmp.eq.s32.totalorder %s32, 0
      %p148 = por %p146, %p147
      %s150 = sadd.s32 %s149, 1
      %p153 = scmp.eq.s32.totalorder %s26, 1
      %p154 = scmp.ne.s32.totalorder %s149, %s151
      %p155 = scmp.eq.s32.totalorder %s26, 0
      %p156 = por %p154, %p155
      %p157 = scmp.ne.s32.totalorder %s149, %s151
      %p158 = scmp.eq.s32.totalorder %s31, 1
      %p159 = por %p157, %p158
      %p160 = scmp.ne.s32.totalorder %s151, %s152
      %p161 = scmp.eq.s32.totalorder %s31, 0
      %p162 = por %p160, %p161
      %p163 = scmp.ne.s32.totalorder %s151, %s152
      %p164 = scmp.eq.s32.totalorder %s32, 1
      %p165 = por %p163, %p164
      %p167 = scmp.ne.s32.totalorder %s152, %s166
      %p168 = scmp.eq.s32.totalorder %s32, 0
      %p169 = por %p167, %p168
      %s171 = sadd.s32 %s170, 1
      %p174 = scmp.eq.s32.totalorder %s26, 1
      %p175 = scmp.ne.s32.totalorder %s170, %s172
      %p176 = scmp.eq.s32.totalorder %s26, 0
      %p177 = por %p175, %p176
      %p178 = scmp.ne.s32.totalorder %s170, %s172
      %p179 = scmp.eq.s32.totalorder %s31, 1
      %p180 = por %p178, %p179
      %p181 = scmp.ne.s32.totalorder %s172, %s173
      %p182 = scmp.eq.s32.totalorder %s31, 0
      %p183 = por %p181, %p182
      %p184 = scmp.ne.s32.totalorder %s172, %s173
      %p185 = scmp.eq.s32.totalorder %s32, 1
      %p186 = por %p184, %p185
      %p188 = scmp.ne.s32.totalorder %s173, %s187
      %p189 = scmp.eq.s32.totalorder %s32, 0
      %p190 = por %p188, %p189
      %s192 = sadd.s32 %s191, 1
      %p195 = scmp.eq.s32.totalorder %s26, 1
      %p196 = scmp.ne.s32.totalorder %s191, %s193
      %p197 = scmp.eq.s32.totalorder %s26, 0
      %p198 = por %p196, %p197
      %p199 = scmp.ne.s32.totalorder %s191, %s193
      %p200 = scmp.eq.s32.totalorder %s31, 1
      %p201 = por %p199, %p200
      %p202 = scmp.ne.s32.totalorder %s193, %s194
      %p203 = scmp.eq.s32.totalorder %s31, 0
      %p204 = por %p202, %p203
      %p205 = scmp.ne.s32.totalorder %s193, %s194
      %p206 = scmp.eq.s32.totalorder %s32, 1
      %p207 = por %p205, %p206
      %p209 = scmp.ne.s32.totalorder %s194, %s208
      %p210 = scmp.eq.s32.totalorder %s32, 0
      %p211 = por %p209, %p210
      %s213 = sadd.s32 %s212, 1
      %p216 = scmp.eq.s32.totalorder %s26, 1
      %p217 = scmp.ne.s32.totalorder %s212, %s214
      %p218 = scmp.eq.s32.totalorder %s26, 0
      %p219 = por %p217, %p218
      %p220 = scmp.ne.s32.totalorder %s212, %s214
      %p221 = scmp.eq.s32.totalorder %s31, 1
      %p222 = por %p220, %p221
      %p223 = scmp.ne.s32.totalorder %s214, %s215
      %p224 = scmp.eq.s32.totalorder %s31, 0
      %p225 = por %p223, %p224
      %p226 = scmp.ne.s32.totalorder %s214, %s215
      %p227 = scmp.eq.s32.totalorder %s32, 1
      %p228 = por %p226, %p227
      %p230 = scmp.ne.s32.totalorder %s215, %s229
      %p231 = scmp.eq.s32.totalorder %s32, 0
      %p232 = por %p230, %p231
      %s234 = sadd.s32 %s233, 1
      %p237 = scmp.eq.s32.totalorder %s26, 1
      %p238 = scmp.ne.s32.totalorder %s233, %s235
      %p239 = scmp.eq.s32.totalorder %s26, 0
      %p240 = por %p238, %p239
      %p241 = scmp.ne.s32.totalorder %s233, %s235
      %p242 = scmp.eq.s32.totalorder %s31, 1
      %p243 = por %p241, %p242
      %p244 = scmp.ne.s32.totalorder %s235, %s236
      %p245 = scmp.eq.s32.totalorder %s31, 0
      %p246 = por %p244, %p245
      %p247 = scmp.ne.s32.totalorder %s235, %s236
      %p248 = scmp.eq.s32.totalorder %s32, 1
      %p249 = por %p247, %p248
      %p251 = scmp.ne.s32.totalorder %s236, %s250
      %p252 = scmp.eq.s32.totalorder %s32, 0
      %p253 = por %p251, %p252
      %s255 = sadd.s32 %s254, 1
      %p258 = scmp.eq.s32.totalorder %s26, 1
      %p259 = scmp.ne.s32.totalorder %s254, %s256
      %p260 = scmp.eq.s32.totalorder %s26, 0
      %p261 = por %p259, %p260
      %p262 = scmp.ne.s32.totalorder %s254, %s256
      %p263 = scmp.eq.s32.totalorder %s31, 1
      %p264 = por %p262, %p263
      %p265 = scmp.ne.s32.totalorder %s256, %s257
      %p266 = scmp.eq.s32.totalorder %s31, 0
      %p267 = por %p265, %p266
      %p268 = scmp.ne.s32.totalorder %s256, %s257
      %p269 = scmp.eq.s32.totalorder %s32, 1
      %p270 = por %p268, %p269
      %p272 = scmp.ne.s32.totalorder %s257, %s271
      %p273 = scmp.eq.s32.totalorder %s32, 0
      %p274 = por %p272, %p273
      %s276 = sadd.s32 %s275, 1
      %p279 = scmp.eq.s32.totalorder %s26, 1
      %p280 = scmp.ne.s32.totalorder %s275, %s277
      %p281 = scmp.eq.s32.totalorder %s26, 0
      %p282 = por %p280, %p281
      %p283 = scmp.ne.s32.totalorder %s275, %s277
      %p284 = scmp.eq.s32.totalorder %s31, 1
      %p285 = por %p283, %p284
      %p286 = scmp.ne.s32.totalorder %s277, %s278
      %p287 = scmp.eq.s32.totalorder %s31, 0
      %p288 = por %p286, %p287
      %p289 = scmp.ne.s32.totalorder %s277, %s278
      %p290 = scmp.eq.s32.totalorder %s32, 1
      %p291 = por %p289, %p290
      %p293 = scmp.ne.s32.totalorder %s278, %s292
      %p294 = scmp.eq.s32.totalorder %s32, 0
      %p295 = por %p293, %p294
      %s297 = sadd.s32 %s296, 1
      %p300 = scmp.eq.s32.totalorder %s26, 1
      %p301 = scmp.ne.s32.totalorder %s296, %s298
      %p302 = scmp.eq.s32.totalorder %s26, 0
      %p303 = por %p301, %p302
      %p304 = scmp.ne.s32.totalorder %s296, %s298
      %p305 = scmp.eq.s32.totalorder %s31, 1
      %p306 = por %p304, %p305
      %p307 = scmp.ne.s32.totalorder %s298, %s299
      %p308 = scmp.eq.s32.totalorder %s31, 0
      %p309 = por %p307, %p308
      %p310 = scmp.ne.s32.totalorder %s298, %s299
      %p311 = scmp.eq.s32.totalorder %s32, 1
      %p312 = por %p310, %p311
      %p314 = scmp.ne.s32.totalorder %s299, %s313
      %p315 = scmp.eq.s32.totalorder %s32, 0
      %p316 = por %p314, %p315
      %s318 = sadd.s32 %s317, 1
      %p321 = scmp.eq.s32.totalorder %s26, 1
      %p322 = scmp.ne.s32.totalorder %s317, %s319
      %p323 = scmp.eq.s32.totalorder %s26, 0
      %p324 = por %p322, %p323
      %p325 = scmp.ne.s32.totalorder %s317, %s319
      %p326 = scmp.eq.s32.totalorder %s31, 1
      %p327 = por %p325, %p326
      %p328 = scmp.ne.s32.totalorder %s319, %s320
      %p329 = scmp.eq.s32.totalorder %s31, 0
      %p330 = por %p328, %p329
      %p331 = scmp.ne.s32.totalorder %s319, %s320
      %p332 = scmp.eq.s32.totalorder %s32, 1
      %p333 = por %p331, %p332
      %p335 = scmp.ne.s32.totalorder %s320, %s334
      %p336 = scmp.eq.s32.totalorder %s32, 0
      %p337 = por %p335, %p336
      %s339 = sadd.s32 %s338, 1
      %p342 = scmp.eq.s32.totalorder %s26, 1
      %p343 = scmp.ne.s32.totalorder %s338, %s340
      %p344 = scmp.eq.s32.totalorder %s26, 0
      %p345 = por %p343, %p344
      %p346 = scmp.ne.s32.totalorder %s338, %s340
      %p347 = scmp.eq.s32.totalorder %s31, 1
      %p348 = por %p346, %p347
      %p349 = scmp.ne.s32.totalorder %s340, %s341
      %p350 = scmp.eq.s32.totalorder %s31, 0
      %p351 = por %p349, %p350
      %p352 = scmp.ne.s32.totalorder %s340, %s341
      %p353 = scmp.eq.s32.totalorder %s32, 1
      %p354 = por %p352, %p353
      %p356 = scmp.ne.s32.totalorder %s341, %s355
      %p357 = scmp.eq.s32.totalorder %s32, 0
      %p358 = por %p356, %p357
      %s359 = ssub.s32 %s26, %s33
      %p360 = scmp.eq.s32.totalorder %s359, 0
      %s362 = sadd.s32 %s361, 1
      %s363 = scalar_select %p360, %s361, %s362
      %p366 = pneg %p360
      %p367 = scmp.eq.s32.totalorder %s26, 1
      %p368 = por %p366, %p367
      %p369 = scmp.ne.s32.totalorder %s361, %s364
      %p370 = scmp.eq.s32.totalorder %s26, 0
      %p371 = por %p369, %p370
      %p372 = scmp.ne.s32.totalorder %s361, %s364
      %p373 = scmp.eq.s32.totalorder %s31, 1
      %p374 = por %p372, %p373
      %p375 = scmp.ne.s32.totalorder %s364, %s365
      %p376 = scmp.eq.s32.totalorder %s31, 0
      %p377 = por %p375, %p376
      %p378 = scmp.ne.s32.totalorder %s364, %s365
      %p379 = scmp.eq.s32.totalorder %s32, 1
      %p380 = por %p378, %p379
      %p382 = scmp.ne.s32.totalorder %s365, %s381
      %p383 = scmp.eq.s32.totalorder %s32, 0
      %p384 = por %p382, %p383
      %s385 = ssub.s32 %s26, %s33
      %p386 = scmp.eq.s32.totalorder %s385, 0
      %s388 = sadd.s32 %s387, 1
      %s389 = scalar_select %p386, %s387, %s388
      %p392 = pneg %p386
      %p393 = scmp.eq.s32.totalorder %s26, 1
      %p394 = por %p392, %p393
      %p395 = scmp.ne.s32.totalorder %s387, %s390
      %p396 = scmp.eq.s32.totalorder %s26, 0
      %p397 = por %p395, %p396
      %p398 = scmp.ne.s32.totalorder %s387, %s390
      %p399 = scmp.eq.s32.totalorder %s31, 1
      %p400 = por %p398, %p399
      %p401 = scmp.ne.s32.totalorder %s390, %s391
      %p402 = scmp.eq.s32.totalorder %s31, 0
      %p403 = por %p401, %p402
      %p404 = scmp.ne.s32.totalorder %s390, %s391
      %p405 = scmp.eq.s32.totalorder %s32, 1
      %p406 = por %p404, %p405
      %p408 = scmp.ne.s32.totalorder %s391, %s407
      %p409 = scmp.eq.s32.totalorder %s32, 0
      %p410 = por %p408, %p409
      %p411 = scmp.le.s32.totalorder 1, %s26
      %p412 = scmp.lt.s32.totalorder %s26, 3
      %p413 = pnand %p411, %p412
      %p414 = pneg %p413
      // Predicated region
      $region9: #{encoder_forward.1} parent=5 // pred_check
        _
      $region10: #{encoder_forward.1} parent=5 // pred_check_branch
        %416 = sbr.rel (%p413) target = $region12
      $region11: #{encoder_forward.1} parent=5 // pred_region
        %s417 = ssub.s32 %s26, 1
        // Predicated region
        $region13: #{encoder_forward.1} parent=11 // pred_check
          %p418 = pneg %p99
        $region14: #{encoder_forward.1} parent=11 // pred_check_branch
          %420 = sbr.rel (%p418) target = $region16
        $region15: #{encoder_forward.1} parent=11 // pred_region
          _
        $region16: #{encoder_forward.1} parent=11 // pred_fallthru
          _
        // Predicated region
        $region17: #{encoder_forward.1} parent=11 // pred_check
          %p421 = pneg %p120
        $region18: #{encoder_forward.1} parent=11 // pred_check_branch
          %423 = sbr.rel (%p421) target = $region20
        $region19: #{encoder_forward.1} parent=11 // pred_region
          _
        $region20: #{encoder_forward.1} parent=11 // pred_fallthru
          _
        // Predicated region
        $region21: #{encoder_forward.1} parent=11 // pred_check
          %p424 = pneg %p141
        $region22: #{encoder_forward.1} parent=11 // pred_check_branch
          %426 = sbr.rel (%p424) target = $region24
        $region23: #{encoder_forward.1} parent=11 // pred_region
          _
        $region24: #{encoder_forward.1} parent=11 // pred_fallthru
          _
        // Predicated region
        $region25: #{encoder_forward.1} parent=11 // pred_check
          %p427 = pneg %p162
        $region26: #{encoder_forward.1} parent=11 // pred_check_branch
          %429 = sbr.rel (%p427) target = $region28
        $region27: #{encoder_forward.1} parent=11 // pred_region
          _
        $region28: #{encoder_forward.1} parent=11 // pred_fallthru
          _
        // Predicated region
        $region29: #{encoder_forward.1} parent=11 // pred_check
          %p430 = pneg %p183
        $region30: #{encoder_forward.1} parent=11 // pred_check_branch
          %432 = sbr.rel (%p430) target = $region32
        $region31: #{encoder_forward.1} parent=11 // pred_region
          _
        $region32: #{encoder_forward.1} parent=11 // pred_fallthru
          _
        // Predicated region
        $region33: #{encoder_forward.1} parent=11 // pred_check
          %p433 = pneg %p204
        $region34: #{encoder_forward.1} parent=11 // pred_check_branch
          %435 = sbr.rel (%p433) target = $region36
        $region35: #{encoder_forward.1} parent=11 // pred_region
          _
        $region36: #{encoder_forward.1} parent=11 // pred_fallthru
          _
        // Predicated region
        $region37: #{encoder_forward.1} parent=11 // pred_check
          %p436 = pneg %p225
        $region38: #{encoder_forward.1} parent=11 // pred_check_branch
          %438 = sbr.rel (%p436) target = $region40
        $region39: #{encoder_forward.1} parent=11 // pred_region
          _
        $region40: #{encoder_forward.1} parent=11 // pred_fallthru
          _
        // Predicated region
        $region41: #{encoder_forward.1} parent=11 // pred_check
          %p439 = pneg %p246
        $region42: #{encoder_forward.1} parent=11 // pred_check_branch
          %441 = sbr.rel (%p439) target = $region44
        $region43: #{encoder_forward.1} parent=11 // pred_region
          _
        $region44: #{encoder_forward.1} parent=11 // pred_fallthru
          _
        // Predicated region
        $region45: #{encoder_forward.1} parent=11 // pred_check
          %p442 = pneg %p267
        $region46: #{encoder_forward.1} parent=11 // pred_check_branch
          %444 = sbr.rel (%p442) target = $region48
        $region47: #{encoder_forward.1} parent=11 // pred_region
          _
        $region48: #{encoder_forward.1} parent=11 // pred_fallthru
          _
        // Predicated region
        $region49: #{encoder_forward.1} parent=11 // pred_check
          %p445 = pneg %p288
        $region50: #{encoder_forward.1} parent=11 // pred_check_branch
          %447 = sbr.rel (%p445) target = $region52
        $region51: #{encoder_forward.1} parent=11 // pred_region
          _
        $region52: #{encoder_forward.1} parent=11 // pred_fallthru
          _
        // Predicated region
        $region53: #{encoder_forward.1} parent=11 // pred_check
          %p448 = pneg %p309
        $region54: #{encoder_forward.1} parent=11 // pred_check_branch
          %450 = sbr.rel (%p448) target = $region56
        $region55: #{encoder_forward.1} parent=11 // pred_region
          _
        $region56: #{encoder_forward.1} parent=11 // pred_fallthru
          _
        // Predicated region
        $region57: #{encoder_forward.1} parent=11 // pred_check
          %p451 = pneg %p330
        $region58: #{encoder_forward.1} parent=11 // pred_check_branch
          %453 = sbr.rel (%p451) target = $region60
        $region59: #{encoder_forward.1} parent=11 // pred_region
          _
        $region60: #{encoder_forward.1} parent=11 // pred_fallthru
          _
        // Predicated region
        $region61: #{encoder_forward.1} parent=11 // pred_check
          %p454 = pneg %p351
        $region62: #{encoder_forward.1} parent=11 // pred_check_branch
          %456 = sbr.rel (%p454) target = $region64
        $region63: #{encoder_forward.1} parent=11 // pred_region
          _
        $region64: #{encoder_forward.1} parent=11 // pred_fallthru
          _
      $region12: #{encoder_forward.1} parent=5 // pred_fallthru
        _
      %p457 = scmp.lt.s32.totalorder %s26, 2
      // Predicated region
      $region65: #{encoder_forward.1} parent=5 // pred_check
        %p458 = pneg %p457
      $region66: #{encoder_forward.1} parent=5 // pred_check_branch
        %460 = sbr.rel (%p458) target = $region68
      $region67: #{encoder_forward.1} parent=5 // pred_region
        // Predicated region
        $region69: #{encoder_forward.1} parent=67 // pred_check
          %p461 = pneg %p46
        $region70: #{encoder_forward.1} parent=67 // pred_check_branch
          %463 = sbr.rel (%p461) target = $region72
        $region71: #{encoder_forward.1} parent=67 // pred_region
          %p464 = scmp.lt.s32.totalorder %s26, 1
          %s465 = scalar_select %p464, %s26, 1
          %s466 = smul.addr %s465, 16
          %s467 = smul.addr %s466, 4
          %s468 = scalar_lea.vmem %s0, %s467
        $region72: #{encoder_forward.1} parent=67 // pred_fallthru
          _
        // Predicated region
        $region73: #{encoder_forward.1} parent=67 // pred_check
          %p469 = pneg %p72
        $region74: #{encoder_forward.1} parent=67 // pred_check_branch
          %471 = sbr.rel (%p469) target = $region76
        $region75: #{encoder_forward.1} parent=67 // pred_region
          %s472 = sand.u32 %s62, 1
          %s473 = sand.u32 %s62, 1
          %s474 = smul.addr %s473, 32
          %s475 = scalar_lea.vmem [#allocation4], %s474
          %s476 = smul.addr %s26, 2
          %s477 = smul.addr %s476, 8
          %s478 = scalar_lea.vmem %s1, %s477
          // Predicated region
          $region77: #{encoder_forward.1} parent=75 // pred_check
            _
          $region78: #{encoder_forward.1} parent=75 // pred_check_branch
            %480 = sbr.rel (0) target = $region80
          $region79: #{encoder_forward.1} parent=75 // pred_region
            // Predicated region
            $region81: #{encoder_forward.1} parent=79 // pred_check
              _
            $region82: #{encoder_forward.1} parent=79 // pred_check_branch
              %482 = sbr.rel (0) target = $region84
            $region83: #{encoder_forward.1} parent=79 // pred_region
              // Predicated region
              $region96: #{encoder_forward.1} parent=83 // pred_check
                _
              $region97: #{encoder_forward.1} parent=83 // pred_check_branch
                %503 = sbr.rel (0) target = $region99
              $region98: #{encoder_forward.1} parent=83 // pred_region
                loop: start=0, step=1, limit=1
                $region100: #{encoder_forward.1} parent=98 // loop_pre_header
                  _
                $region101: #{encoder_forward.1} parent=98 // loop_header
                  %s505 = sphi 0, %s509
                  %p506 = scmp.ge.s32.totalorder %s505, 1
                  %s510 = sphi %s478, %s478
                  %s511 = sphi %s475, %s475
                $region102: #{encoder_forward.1} parent=98 // loop_header_branch
                  %508 = sbr.rel (%p506) target = $region106
                $region103: #{encoder_forward.1} parent=98 // loop_body
                  %v512 = vld [vmem:[%s510] sm:$0xff]
                  %513 = vst [vmem:[%s511] sm:$0xff] %v512
                  %v514 = vld [vmem:[%s510 + $0x8] sm:$0xff]
                  %515 = vst [vmem:[%s511 + $0x8] sm:$0xff] %v514
                  %v516 = vld [vmem:[%s510 + $0x20] sm:$0xff]
                  %517 = vst [vmem:[%s511 + $0x10] sm:$0xff] %v516
                  %v518 = vld [vmem:[%s510 + $0x28] sm:$0xff]
                  %519 = vst [vmem:[%s511 + $0x18] sm:$0xff] %v518
                $region104: #{encoder_forward.1} parent=98 // loop_footer
                  %s509 = sadd.s32 1, %s505
                $region105: #{encoder_forward.1} parent=98 // loop_footer_branch
                  %504 = sbr.rel target = $region101
                $region106: #{encoder_forward.1} parent=98 // loop_exit
                  _
              $region99: #{encoder_forward.1} parent=83 // pred_fallthru
                _
              // Predicated region
              $region107: #{encoder_forward.1} parent=83 // pred_check
                _
              $region108: #{encoder_forward.1} parent=83 // pred_check_branch
                %521 = sbr.rel target = $region110
              $region109: #{encoder_forward.1} parent=83 // pred_region
                _
              $region110: #{encoder_forward.1} parent=83 // pred_fallthru
                _
            $region84: #{encoder_forward.1} parent=79 // pred_fallthru
              _
            // Predicated region
            $region85: #{encoder_forward.1} parent=79 // pred_check
              _
            $region86: #{encoder_forward.1} parent=79 // pred_check_branch
              %484 = sbr.rel target = $region88
            $region87: #{encoder_forward.1} parent=79 // pred_region
              loop: start=0, step=1, limit=1
              $region89: #{encoder_forward.1} parent=87 // loop_pre_header
                _
              $region90: #{encoder_forward.1} parent=87 // loop_header
                %s487 = sphi 0, %s491
                %p488 = scmp.ge.s32.totalorder %s487, 1
                %s492 = sphi %s478, %s478
                %s493 = sphi %s475, %s475
              $region91: #{encoder_forward.1} parent=87 // loop_header_branch
                %490 = sbr.rel (%p488) target = $region95
              $region92: #{encoder_forward.1} parent=87 // loop_body
                %v494 = vld [vmem:[%s492] sm:$0xff]
                %495 = vst [vmem:[%s493] sm:$0xff] %v494
                %v496 = vld [vmem:[%s492 + $0x8] sm:$0xff]
                %497 = vst [vmem:[%s493 + $0x8] sm:$0xff] %v496
                %v498 = vld [vmem:[%s492 + $0x20] sm:$0xff]
                %499 = vst [vmem:[%s493 + $0x10] sm:$0xff] %v498
                %v500 = vld [vmem:[%s492 + $0x28] sm:$0xff]
                %501 = vst [vmem:[%s493 + $0x18] sm:$0xff] %v500
              $region93: #{encoder_forward.1} parent=87 // loop_footer
                %s491 = sadd.s32 1, %s487
              $region94: #{encoder_forward.1} parent=87 // loop_footer_branch
                %486 = sbr.rel target = $region90
              $region95: #{encoder_forward.1} parent=87 // loop_exit
                _
            $region88: #{encoder_forward.1} parent=79 // pred_fallthru
              _
          $region80: #{encoder_forward.1} parent=75 // pred_fallthru
            _
          %522 = vnop
        $region76: #{encoder_forward.1} parent=67 // pred_fallthru
          _
      $region68: #{encoder_forward.1} parent=5 // pred_fallthru
        _
      %p523 = scmp.le.s32.totalorder 1, %s26
      %p524 = scmp.lt.s32.totalorder %s26, 3
      %p525 = pnand %p523, %p524
      %p526 = pneg %p525
      // Predicated region
      $region111: #{encoder_forward.1} parent=5 // pred_check
        _
      $region112: #{encoder_forward.1} parent=5 // pred_check_branch
        %528 = sbr.rel (%p525) target = $region114
      $region113: #{encoder_forward.1} parent=5 // pred_region
        %s529 = ssub.s32 %s26, 1
        %s530 = sand.u32 %s65, 1
        %s531 = sand.u32 %s65, 1
        %s532 = smul.addr %s531, 32
        %s533 = scalar_lea.vmem [#allocation4], %s532
        // Predicated region
        $region115: #{encoder_forward.1} parent=113 // pred_check
          %p534 = pneg %p78
        $region116: #{encoder_forward.1} parent=113 // pred_check_branch
          %536 = sbr.rel (%p534) target = $region118
        $region117: #{encoder_forward.1} parent=113 // pred_region
          _
        $region118: #{encoder_forward.1} parent=113 // pred_fallthru
          _
        %p537 = scmp.lt.s32.totalorder %s31, 1
        %s538 = scalar_select %p537, %s31, 1
        %s539 = smul.addr %s538, 16
        %s540 = smul.addr %s539, 4
        %s541 = scalar_lea.vmem %s0, %s540
        %p542 = pneg %p52
        %p543 = pneg %p49
        %s544 = sand.u32 %s65, 1
        %s545 = sand.u32 %s65, 1
        %s546 = smul.addr %s545, 32
        %s547 = scalar_lea.vmem [#allocation4], %s546
        %p548 = pneg %p78
        %p549 = pneg %p75
        %p550 = pneg %p99
        %p551 = pneg %p96
        %p552 = pneg %p120
        %p553 = pneg %p117
        %p554 = pneg %p141
        %p555 = pneg %p138
        %p556 = pneg %p162
        %p557 = pneg %p159
        %p558 = pneg %p183
        %p559 = pneg %p180
        %p560 = pneg %p204
        %p561 = pneg %p201
        %p562 = pneg %p225
        %p563 = pneg %p222
        %p564 = pneg %p246
        %p565 = pneg %p243
        %p566 = pneg %p267
        %p567 = pneg %p264
        %p568 = pneg %p288
        %p569 = pneg %p285
        %p570 = pneg %p309
        %p571 = pneg %p306
        %p572 = pneg %p330
        %p573 = pneg %p327
        %p574 = pneg %p351
        %p575 = pneg %p348
        %p576 = pneg %p377
        %p577 = pneg %p374
        %s578 = sand.u32 %s364, 1
        %s579 = scalar_lea.sflag [#allocation6], %s578
        %s580 = sand.u32 %s364, 1
        %s581 = smul.addr %s580, 128
        %s582 = scalar_lea.vmem [#allocation5], %s581
        %p583 = pneg %p403
        %p584 = pneg %p400
        %s585 = sand.u32 %s390, 1
        %s586 = sand.u32 %s390, 1
        %s587 = smul.addr %s586, 32
        %s588 = scalar_lea.vmem [#allocation7], %s587
        %p589 = scmp.lt.s32.totalorder %s31, 1
        %s590 = scalar_select %p589, %s31, 1
        %s591 = smul.addr %s590, 16
        %s592 = smul.addr %s591, 4
        %s593 = scalar_lea.vmem %s0, %s592
        %v595 = vld [vmem:[%s593] sm:$0xf]
        %v596 = vld [vmem:[%s593 + $0x4] sm:$0xf]
        %v597 = vld [vmem:[%s593 + $0x8] sm:$0xf]
        %v598 = vld [vmem:[%s593 + $0xc] sm:$0xf]
        %v599 = vld [vmem:[%s593 + $0x10] sm:$0xf]
        %v600 = vld [vmem:[%s593 + $0x14] sm:$0xf]
        %v601 = vld [vmem:[%s593 + $0x18] sm:$0xf]
        %v602 = vld [vmem:[%s593 + $0x1c] sm:$0xf]
        %v603 = vld [vmem:[%s593 + $0x20] sm:$0xf]
        %v604 = vld [vmem:[%s593 + $0x24] sm:$0xf]
        %v605 = vld [vmem:[%s593 + $0x28] sm:$0xf]
        %v606 = vld [vmem:[%s593 + $0x2c] sm:$0xf]
        %v607 = vld [vmem:[%s593 + $0x30] sm:$0xf]
        %v608 = vld [vmem:[%s593 + $0x34] sm:$0xf]
        %v609 = vld [vmem:[%s593 + $0x38] sm:$0xf]
        %v610 = vld [vmem:[%s593 + $0x3c] sm:$0xf]
        %v611 = vld [vmem:[%s5] sm:$0xff]
        %v612 = vld [vmem:[%s5 + $0x8] sm:$0xf]
        %v629 = vunpack.c.l.b16 %v595
        %v630 = vunpack.c.l.b16 %v596
        %v631 = vunpack.c.l.b16 %v597
        %v632 = vunpack.c.l.b16 %v598
        %v633 = vunpack.c.l.b16 %v599
        %v634 = vunpack.c.l.b16 %v600
        %v635 = vunpack.c.l.b16 %v601
        %v636 = vunpack.c.l.b16 %v602
        %v637 = vunpack.c.l.b16 %v603
        %v638 = vunpack.c.l.b16 %v604
        %v639 = vunpack.c.l.b16 %v605
        %v640 = vunpack.c.l.b16 %v606
        %v641 = vunpack.c.l.b16 %v607
        %v642 = vunpack.c.l.b16 %v608
        %v643 = vunpack.c.l.b16 %v609
        %v644 = vunpack.c.l.b16 %v610
        %v645 = vpack.c.b16 %v630, %v629
        %v646 = vpack.c.b16 %v632, %v631
        %v647 = vpack.c.b16 %v634, %v633
        %v648 = vpack.c.b16 %v636, %v635
        %v649 = vpack.c.b16 %v638, %v637
        %v650 = vpack.c.b16 %v640, %v639
        %v651 = vpack.c.b16 %v642, %v641
        %v652 = vpack.c.b16 %v644, %v643
        %v655 = vcombine.high %v611, %v611
        %v657 = vunpack.c.l.s4 1983009808
        %v658 = vunpack.c.0.s8 %v657
        %v659 = vlaneseq
        %v660 = vshrl.u32 %v659, 7
        %v661 = vsub.s32 %v658, %v660
        %v662 = vrot.slane %v611, %v661
        %v664 = vunpack.c.l.s4 1983009808
        %v665 = vunpack.c.0.s8 %v664
        %v666 = vlaneseq
        %v667 = vshrl.u32 %v666, 7
        %v668 = vsub.s32 %v665, %v667
        %v669 = vrot.slane %v655, %v668
        %v670 = vcombine.high %v662, %v662
        %v671 = vcombine.high %v669, %v669
        %v673 = vunpack.c.l.s4 1983009808
        %v674 = vunpack.c.0.s8 %v673
        %v675 = vlaneseq
        %v676 = vshrl.u32 %v675, 7
        %v677 = vsub.s32 %v674, %v676
        %v678 = vrot.slane %v612, %v677
        %v679 = vcombine.high %v678, %v678
        %vm680 = vcmask 31744
        %v682 = vsel %vm680, %v645, 0
        %v685 = vsel %vm680, %v646, 0
        %v688 = vsel %vm680, %v647, 0
        %v691 = vsel %vm680, %v648, 0
        %v694 = vsel %vm680, %v649, 0
        %v697 = vsel %vm680, %v650, 0
        %v700 = vsel %vm680, %v651, 0
        %v703 = vsel %vm680, %v652, 0
        %vm705 = vcmask 1041408
        %v707 = vsel %vm705, %v662, 0
        %v710 = vsel %vm705, %v670, 0
        %v713 = vsel %vm705, %v669, 0
        %v716 = vsel %vm705, %v671, 0
        %v719 = vsel %vm705, %v678, 0
        %v722 = vsel %vm705, %v679, 0
        %724 = vmatprep.subr.bf16.mxu0 %v710
        %725 = vmatpush1.bf16.msra.mxu0 %v707
        %726 = vmatprep.subr.bf16.mxu0 0
        %727 = vmatpush1.bf16.msra.mxu0 0
        %728 = vmatprep.subr.bf16.mxu0 0
        %729 = vmatpush1.bf16.msra.mxu0 0
        %730 = vmatprep.subr.bf16.mxu0 0
        %731 = vmatpush1.bf16.msra.mxu0 0
        %732 = vmatprep.subr.bf16.mxu0 0
        %733 = vmatpush1.bf16.msra.mxu0 0
        %734 = vmatprep.subr.bf16.mxu0 0
        %735 = vmatpush1.bf16.msra.mxu0 0
        %736 = vmatprep.subr.bf16.mxu0 0
        %737 = vmatpush1.bf16.msra.mxu0 0
        %738 = vmatprep.subr.bf16.mxu0 0
        %739 = vmatpush1.bf16.msra.mxu0 0
        %740 = vmatprep.subr.bf16.mxu0 0
        %741 = vmatpush1.bf16.msra.mxu0 0
        %742 = vmatprep.subr.bf16.mxu0 0
        %743 = vmatpush1.bf16.msra.mxu0 0
        %744 = vmatprep.subr.bf16.mxu0 0
        %745 = vmatpush1.bf16.msra.mxu0 0
        %746 = vmatprep.subr.bf16.mxu0 0
        %747 = vmatpush1.bf16.msra.mxu0 0
        %748 = vmatprep.subr.bf16.mxu0 0
        %749 = vmatpush1.bf16.msra.mxu0 0
        %750 = vmatprep.subr.bf16.mxu0 0
        %751 = vmatpush1.bf16.msra.mxu0 0
        %752 = vmatprep.subr.bf16.mxu0 0
        %753 = vmatpush1.bf16.msra.mxu0 0
        %754 = vmatprep.subr.bf16.mxu0 0
        %755 = vmatpush1.bf16.msra.mxu0 0
        %756 = vmatprep.mubr.bf16.mxu0 0
        %757 = vmatmul.mubr.bf16.gmra.mrb[0].mxu0 %v682
        %v758 = vpop.f32.mrb[0].mxu0
        %v759 = vadd.f32 0.0, %v758
        %v760 = vpop.f32.mrb[0].mxu0
        %v761 = vadd.f32 0.0, %v760
        %v762 = vpop.f32.mrb[0].mxu0
        %v763 = vadd.f32 0.0, %v762
        %v764 = vpop.f32.mrb[0].mxu0
        %v765 = vadd.f32 0.0, %v764
        %766 = vmatprep.mubr.bf16.mxu0 0
        %767 = vmatmul.mubr.bf16.gmra.mrb[0].mxu0 %v685
        %v768 = vpop.f32.mrb[0].mxu0
        %v769 = vadd.f32 0.0, %v768
        %v770 = vpop.f32.mrb[0].mxu0
        %v771 = vadd.f32 0.0, %v770
        %v772 = vpop.f32.mrb[0].mxu0
        %v773 = vadd.f32 0.0, %v772
        %v774 = vpop.f32.mrb[0].mxu0
        %v775 = vadd.f32 0.0, %v774
        %776 = vmatprep.mubr.bf16.mxu0 0
        %777 = vmatmul.mubr.bf16.gmra.mrb[0].mxu0 %v688
        %v778 = vpop.f32.mrb[0].mxu0
        %v779 = vadd.f32 0.0, %v778
        %v780 = vpop.f32.mrb[0].mxu0
        %v781 = vadd.f32 0.0, %v780
        %v782 = vpop.f32.mrb[0].mxu0
        %v783 = vadd.f32 0.0, %v782
        %v784 = vpop.f32.mrb[0].mxu0
        %v785 = vadd.f32 0.0, %v784
        %786 = vmatprep.mubr.bf16.mxu0 0
        %787 = vmatmul.mubr.bf16.gmra.mrb[0].mxu0 %v691
        %v788 = vpop.f32.mrb[0].mxu0
        %v789 = vadd.f32 0.0, %v788
        %v790 = vpop.f32.mrb[0].mxu0
        %v791 = vadd.f32 0.0, %v790
        %v792 = vpop.f32.mrb[0].mxu0
        %v793 = vadd.f32 0.0, %v792
        %v794 = vpop.f32.mrb[0].mxu0
        %v795 = vadd.f32 0.0, %v794
        %796 = vmatprep.mubr.bf16.mxu0 0
        %797 = vmatmul.mubr.bf16.gmra.mrb[0].mxu0 %v694
        %v798 = vpop.f32.mrb[0].mxu0
        %v799 = vadd.f32 0.0, %v798
        %v800 = vpop.f32.mrb[0].mxu0
        %v801 = vadd.f32 0.0, %v800
        %v802 = vpop.f32.mrb[0].mxu0
        %v803 = vadd.f32 0.0, %v802
        %v804 = vpop.f32.mrb[0].mxu0
        %v805 = vadd.f32 0.0, %v804
        %806 = vmatprep.mubr.bf16.mxu0 0
        %807 = vmatmul.mubr.bf16.gmra.mrb[0].mxu0 %v697
        %v808 = vpop.f32.mrb[0].mxu0
        %v809 = vadd.f32 0.0, %v808
        %v810 = vpop.f32.mrb[0].mxu0
        %v811 = vadd.f32 0.0, %v810
        %v812 = vpop.f32.mrb[0].mxu0
        %v813 = vadd.f32 0.0, %v812
        %v814 = vpop.f32.mrb[0].mxu0
        %v815 = vadd.f32 0.0, %v814
        %816 = vmatprep.mubr.bf16.mxu0 0
        %817 = vmatmul.mubr.bf16.gmra.mrb[0].mxu0 %v700
        %v818 = vpop.f32.mrb[0].mxu0
        %v819 = vadd.f32 0.0, %v818
        %v820 = vpop.f32.mrb[0].mxu0
        %v821 = vadd.f32 0.0, %v820
        %v822 = vpop.f32.mrb[0].mxu0
        %v823 = vadd.f32 0.0, %v822
        %v824 = vpop.f32.mrb[0].mxu0
        %v825 = vadd.f32 0.0, %v824
        %826 = vmatprep.mubr.bf16.mxu0 0
        %827 = vmatmul.mubr.bf16.gmra.mrb[0].mxu0 %v703
        %v828 = vpop.f32.mrb[0].mxu0
        %v829 = vadd.f32 0.0, %v828
        %v830 = vpop.f32.mrb[0].mxu0
        %v831 = vadd.f32 0.0, %v830
        %v832 = vpop.f32.mrb[0].mxu0
        %v833 = vadd.f32 0.0, %v832
        %v834 = vpop.f32.mrb[0].mxu0
        %v835 = vadd.f32 0.0, %v834
        %836 = vdwg.mxu0
        %837 = vmatprep.subr.bf16.mxu0 %v716
        %838 = vmatpush1.bf16.msra.mxu0 %v713
        %839 = vmatprep.subr.bf16.mxu0 0
        %840 = vmatpush1.bf16.msra.mxu0 0
        %841 = vmatprep.subr.bf16.mxu0 0
        %842 = vmatpush1.bf16.msra.mxu0 0
        %843 = vmatprep.subr.bf16.mxu0 0
        %844 = vmatpush1.bf16.msra.mxu0 0
        %845 = vmatprep.subr.bf16.mxu0 0
        %846 = vmatpush1.bf16.msra.mxu0 0
        %847 = vmatprep.subr.bf16.mxu0 0
        %848 = vmatpush1.bf16.msra.mxu0 0
        %849 = vmatprep.subr.bf16.mxu0 0
        %850 = vmatpush1.bf16.msra.mxu0 0
        %851 = vmatprep.subr.bf16.mxu0 0
        %852 = vmatpush1.bf16.msra.mxu0 0
        %853 = vmatprep.subr.bf16.mxu0 0
        %854 = vmatpush1.bf16.msra.mxu0 0
        %855 = vmatprep.subr.bf16.mxu0 0
        %856 = vmatpush1.bf16.msra.mxu0 0
        %857 = vmatprep.subr.bf16.mxu0 0
        %858 = vmatpush1.bf16.msra.mxu0 0
        %859 = vmatprep.subr.bf16.mxu0 0
        %860 = vmatpush1.bf16.msra.mxu0 0
        %861 = vmatprep.subr.bf16.mxu0 0
        %862 = vmatpush1.bf16.msra.mxu0 0
        %863 = vmatprep.subr.bf16.mxu0 0
        %864 = vmatpush1.bf16.msra.mxu0 0
        %865 = vmatprep.subr.bf16.mxu0 0
        %866 = vmatpush1.bf16.msra.mxu0 0
        %867 = vmatprep.subr.bf16.mxu0 0
        %868 = vmatpush1.bf16.msra.mxu0 0
        %869 = vmatprep.mubr.bf16.mxu0 0
        %870 = vmatmul.mubr.bf16.gmra.mrb[0].mxu0 %v682
        %v871 = vpop.f32.mrb[0].mxu0
        %v872 = vadd.f32 0.0, %v871
        %v873 = vpop.f32.mrb[0].mxu0
        %v874 = vadd.f32 0.0, %v873
        %v875 = vpop.f32.mrb[0].mxu0
        %v876 = vadd.f32 0.0, %v875
        %v877 = vpop.f32.mrb[0].mxu0
        %v878 = vadd.f32 0.0, %v877
        %879 = vmatprep.mubr.bf16.mxu0 0
        %880 = vmatmul.mubr.bf16.gmra.mrb[0].mxu0 %v685
        %v881 = vpop.f32.mrb[0].mxu0
        %v882 = vadd.f32 0.0, %v881
        %v883 = vpop.f32.mrb[0].mxu0
        %v884 = vadd.f32 0.0, %v883
        %v885 = vpop.f32.mrb[0].mxu0
        %v886 = vadd.f32 0.0, %v885
        %v887 = vpop.f32.mrb[0].mxu0
        %v888 = vadd.f32 0.0, %v887
        %889 = vmatprep.mubr.bf16.mxu0 0
        %890 = vmatmul.mubr.bf16.gmra.mrb[0].mxu0 %v688
        %v891 = vpop.f32.mrb[0].mxu0
        %v892 = vadd.f32 0.0, %v891
        %v893 = vpop.f32.mrb[0].mxu0
        %v894 = vadd.f32 0.0, %v893
        %v895 = vpop.f32.mrb[0].mxu0
        %v896 = vadd.f32 0.0, %v895
        %v897 = vpop.f32.mrb[0].mxu0
        %v898 = vadd.f32 0.0, %v897
        %899 = vmatprep.mubr.bf16.mxu0 0
        %900 = vmatmul.mubr.bf16.gmra.mrb[0].mxu0 %v691
        %v901 = vpop.f32.mrb[0].mxu0
        %v902 = vadd.f32 0.0, %v901
        %v903 = vpop.f32.mrb[0].mxu0
        %v904 = vadd.f32 0.0, %v903
        %v905 = vpop.f32.mrb[0].mxu0
        %v906 = vadd.f32 0.0, %v905
        %v907 = vpop.f32.mrb[0].mxu0
        %v908 = vadd.f32 0.0, %v907
        %909 = vmatprep.mubr.bf16.mxu0 0
        %910 = vmatmul.mubr.bf16.gmra.mrb[0].mxu0 %v694
        %v911 = vpop.f32.mrb[0].mxu0
        %v912 = vadd.f32 0.0, %v911
        %v913 = vpop.f32.mrb[0].mxu0
        %v914 = vadd.f32 0.0, %v913
        %v915 = vpop.f32.mrb[0].mxu0
        %v916 = vadd.f32 0.0, %v915
        %v917 = vpop.f32.mrb[0].mxu0
        %v918 = vadd.f32 0.0, %v917
        %919 = vmatprep.mubr.bf16.mxu0 0
        %920 = vmatmul.mubr.bf16.gmra.mrb[0].mxu0 %v697
        %v921 = vpop.f32.mrb[0].mxu0
        %v922 = vadd.f32 0.0, %v921
        %v923 = vpop.f32.mrb[0].mxu0
        %v924 = vadd.f32 0.0, %v923
        %v925 = vpop.f32.mrb[0].mxu0
        %v926 = vadd.f32 0.0, %v925
        %v927 = vpop.f32.mrb[0].mxu0
        %v928 = vadd.f32 0.0, %v927
        %929 = vmatprep.mubr.bf16.mxu0 0
        %930 = vmatmul.mubr.bf16.gmra.mrb[0].mxu0 %v700
        %v931 = vpop.f32.mrb[0].mxu0
        %v932 = vadd.f32 0.0, %v931
        %v933 = vpop.f32.mrb[0].mxu0
        %v934 = vadd.f32 0.0, %v933
        %v935 = vpop.f32.mrb[0].mxu0
        %v936 = vadd.f32 0.0, %v935
        %v937 = vpop.f32.mrb[0].mxu0
        %v938 = vadd.f32 0.0, %v937
        %939 = vmatprep.mubr.bf16.mxu0 0
        %940 = vmatmul.mubr.bf16.gmra.mrb[0].mxu0 %v703
        %v941 = vpop.f32.mrb[0].mxu0
        %v942 = vadd.f32 0.0, %v941
        %v943 = vpop.f32.mrb[0].mxu0
        %v944 = vadd.f32 0.0, %v943
        %v945 = vpop.f32.mrb[0].mxu0
        %v946 = vadd.f32 0.0, %v945
        %v947 = vpop.f32.mrb[0].mxu0
        %v948 = vadd.f32 0.0, %v947
        %949 = vdwg.mxu0
        %950 = vmatprep.subr.bf16.mxu0 %v722
        %951 = vmatpush1.bf16.msra.mxu0 %v719
        %952 = vmatprep.subr.bf16.mxu0 0
        %953 = vmatpush1.bf16.msra.mxu0 0
        %954 = vmatprep.subr.bf16.mxu0 0
        %955 = vmatpush1.bf16.msra.mxu0 0
        %956 = vmatprep.subr.bf16.mxu0 0
        %957 = vmatpush1.bf16.msra.mxu0 0
        %958 = vmatprep.subr.bf16.mxu0 0
        %959 = vmatpush1.bf16.msra.mxu0 0
        %960 = vmatprep.subr.bf16.mxu0 0
        %961 = vmatpush1.bf16.msra.mxu0 0
        %962 = vmatprep.subr.bf16.mxu0 0
        %963 = vmatpush1.bf16.msra.mxu0 0
        %964 = vmatprep.subr.bf16.mxu0 0
        %965 = vmatpush1.bf16.msra.mxu0 0
        %966 = vmatprep.subr.bf16.mxu0 0
        %967 = vmatpush1.bf16.msra.mxu0 0
        %968 = vmatprep.subr.bf16.mxu0 0
        %969 = vmatpush1.bf16.msra.mxu0 0
        %970 = vmatprep.subr.bf16.mxu0 0
        %971 = vmatpush1.bf16.msra.mxu0 0
        %972 = vmatprep.subr.bf16.mxu0 0
        %973 = vmatpush1.bf16.msra.mxu0 0
        %974 = vmatprep.subr.bf16.mxu0 0
        %975 = vmatpush1.bf16.msra.mxu0 0
        %976 = vmatprep.subr.bf16.mxu0 0
        %977 = vmatpush1.bf16.msra.mxu0 0
        %978 = vmatprep.subr.bf16.mxu0 0
        %979 = vmatpush1.bf16.msra.mxu0 0
        %980 = vmatprep.subr.bf16.mxu0 0
        %981 = vmatpush1.bf16.msra.mxu0 0
        %982 = vmatprep.mubr.bf16.mxu0 0
        %983 = vmatmul.mubr.bf16.gmra.mrb[0].mxu0 %v682
        %v984 = vpop.f32.mrb[0].mxu0
        %v985 = vadd.f32 0.0, %v984
        %v986 = vpop.f32.mrb[0].mxu0
        %v987 = vadd.f32 0.0, %v986
        %v988 = vpop.f32.mrb[0].mxu0
        %v989 = vadd.f32 0.0, %v988
        %v990 = vpop.f32.mrb[0].mxu0
        %v991 = vadd.f32 0.0, %v990
        %992 = vmatprep.mubr.bf16.mxu0 0
        %993 = vmatmul.mubr.bf16.gmra.mrb[0].mxu0 %v685
        %v994 = vpop.f32.mrb[0].mxu0
        %v995 = vadd.f32 0.0, %v994
        %v996 = vpop.f32.mrb[0].mxu0
        %v997 = vadd.f32 0.0, %v996
        %v998 = vpop.f32.mrb[0].mxu0
        %v999 = vadd.f32 0.0, %v998
        %v1000 = vpop.f32.mrb[0].mxu0
        %v1001 = vadd.f32 0.0, %v1000
        %1002 = vmatprep.mubr.bf16.mxu0 0
        %1003 = vmatmul.mubr.bf16.gmra.mrb[0].mxu0 %v688
        %v1004 = vpop.f32.mrb[0].mxu0
        %v1005 = vadd.f32 0.0, %v1004
        %v1006 = vpop.f32.mrb[0].mxu0
        %v1007 = vadd.f32 0.0, %v1006
        %v1008 = vpop.f32.mrb[0].mxu0
        %v1009 = vadd.f32 0.0, %v1008
        %v1010 = vpop.f32.mrb[0].mxu0
        %v1011 = vadd.f32 0.0, %v1010
        %1012 = vmatprep.mubr.bf16.mxu0 0
        %1013 = vmatmul.mubr.bf16.gmra.mrb[0].mxu0 %v691
        %v1014 = vpop.f32.mrb[0].mxu0
        %v1015 = vadd.f32 0.0, %v1014
        %v1016 = vpop.f32.mrb[0].mxu0
        %v1017 = vadd.f32 0.0, %v1016
        %v1018 = vpop.f32.mrb[0].mxu0
        %v1019 = vadd.f32 0.0, %v1018
        %v1020 = vpop.f32.mrb[0].mxu0
        %v1021 = vadd.f32 0.0, %v1020
        %1022 = vmatprep.mubr.bf16.mxu0 0
        %1023 = vmatmul.mubr.bf16.gmra.mrb[0].mxu0 %v694
        %v1024 = vpop.f32.mrb[0].mxu0
        %v1025 = vadd.f32 0.0, %v1024
        %v1026 = vpop.f32.mrb[0].mxu0
        %v1027 = vadd.f32 0.0, %v1026
        %v1028 = vpop.f32.mrb[0].mxu0
        %v1029 = vadd.f32 0.0, %v1028
        %v1030 = vpop.f32.mrb[0].mxu0
        %v1031 = vadd.f32 0.0, %v1030
        %1032 = vmatprep.mubr.bf16.mxu0 0
        %1033 = vmatmul.mubr.bf16.gmra.mrb[0].mxu0 %v697
        %v1034 = vpop.f32.mrb[0].mxu0
        %v1035 = vadd.f32 0.0, %v1034
        %v1036 = vpop.f32.mrb[0].mxu0
        %v1037 = vadd.f32 0.0, %v1036
        %v1038 = vpop.f32.mrb[0].mxu0
        %v1039 = vadd.f32 0.0, %v1038
        %v1040 = vpop.f32.mrb[0].mxu0
        %v1041 = vadd.f32 0.0, %v1040
        %1042 = vmatprep.mubr.bf16.mxu0 0
        %1043 = vmatmul.mubr.bf16.gmra.mrb[0].mxu0 %v700
        %v1044 = vpop.f32.mrb[0].mxu0
        %v1045 = vadd.f32 0.0, %v1044
        %v1046 = vpop.f32.mrb[0].mxu0
        %v1047 = vadd.f32 0.0, %v1046
        %v1048 = vpop.f32.mrb[0].mxu0
        %v1049 = vadd.f32 0.0, %v1048
        %v1050 = vpop.f32.mrb[0].mxu0
        %v1051 = vadd.f32 0.0, %v1050
        %1052 = vmatprep.mubr.bf16.mxu0 0
        %1053 = vmatmul.mubr.bf16.gmra.mrb[0].mxu0 %v703
        %v1054 = vpop.f32.mrb[0].mxu0
        %v1055 = vadd.f32 0.0, %v1054
        %v1056 = vpop.f32.mrb[0].mxu0
        %v1057 = vadd.f32 0.0, %v1056
        %v1058 = vpop.f32.mrb[0].mxu0
        %v1059 = vadd.f32 0.0, %v1058
        %v1060 = vpop.f32.mrb[0].mxu0
        %v1061 = vadd.f32 0.0, %v1060
        %1062 = vdwg.mxu0
        %1063 = vst [vmem:[#allocation2] sm:$0xff] %v759
        %1064 = vst [vmem:[#allocation2 + $0x8] sm:$0xff] %v761
        %1065 = vst [vmem:[#allocation2 + $0x10] sm:$0xff] %v872
        %1066 = vst [vmem:[#allocation2 + $0x18] sm:$0xff] %v874
        %1067 = vst [vmem:[#allocation2 + $0x20] sm:$0xff] %v985
        %1068 = vst [vmem:[#allocation2 + $0x28] sm:$0xff] %v987
        %1069 = vst [vmem:[#allocation2 + $0x30] sm:$0xff] %v763
        %1070 = vst [vmem:[#allocation2 + $0x38] sm:$0xff] %v765
        %1071 = vst [vmem:[#allocation2 + $0x40] sm:$0xff] %v876
        %1072 = vst [vmem:[#allocation2 + $0x48] sm:$0xff] %v878
        %1073 = vst [vmem:[#allocation2 + $0x50] sm:$0xff] %v989
        %1074 = vst [vmem:[#allocation2 + $0x58] sm:$0xff] %v991
        %1075 = vst [vmem:[#allocation2 + $0x60] sm:$0xff] %v769
        %1076 = vst [vmem:[#allocation2 + $0x68] sm:$0xff] %v771
        %1077 = vst [vmem:[#allocation2 + $0x70] sm:$0xff] %v882
        %1078 = vst [vmem:[#allocation2 + $0x78] sm:$0xff] %v884
        %1079 = vst [vmem:[#allocation2 + $0x80] sm:$0xff] %v995
        %1080 = vst [vmem:[#allocation2 + $0x88] sm:$0xff] %v997
        %1081 = vst [vmem:[#allocation2 + $0x90] sm:$0xff] %v773
        %1082 = vst [vmem:[#allocation2 + $0x98] sm:$0xff] %v775
        %1083 = vst [vmem:[#allocation2 + $0xa0] sm:$0xff] %v886
        %1084 = vst [vmem:[#allocation2 + $0xa8] sm:$0xff] %v888
        %1085 = vst [vmem:[#allocation2 + $0xb0] sm:$0xff] %v999
        %1086 = vst [vmem:[#allocation2 + $0xb8] sm:$0xff] %v1001
        %1087 = vst [vmem:[#allocation2 + $0xc0] sm:$0xff] %v779
        %1088 = vst [vmem:[#allocation2 + $0xc8] sm:$0xff] %v781
        %1089 = vst [vmem:[#allocation2 + $0xd0] sm:$0xff] %v892
        %1090 = vst [vmem:[#allocation2 + $0xd8] sm:$0xff] %v894
        %1091 = vst [vmem:[#allocation2 + $0xe0] sm:$0xff] %v1005
        %1092 = vst [vmem:[#allocation2 + $0xe8] sm:$0xff] %v1007
        %1093 = vst [vmem:[#allocation2 + $0xf0] sm:$0xff] %v783
        %1094 = vst [vmem:[#allocation2 + $0xf8] sm:$0xff] %v785
        %1095 = vst [vmem:[#allocation2 + $0x100] sm:$0xff] %v896
        %1096 = vst [vmem:[#allocation2 + $0x108] sm:$0xff] %v898
        %1097 = vst [vmem:[#allocation2 + $0x110] sm:$0xff] %v1009
        %1098 = vst [vmem:[#allocation2 + $0x118] sm:$0xff] %v1011
        %1099 = vst [vmem:[#allocation2 + $0x120] sm:$0xff] %v789
        %1100 = vst [vmem:[#allocation2 + $0x128] sm:$0xff] %v791
        %1101 = vst [vmem:[#allocation2 + $0x130] sm:$0xff] %v902
        %1102 = vst [vmem:[#allocation2 + $0x138] sm:$0xff] %v904
        %1103 = vst [vmem:[#allocation2 + $0x140] sm:$0xff] %v1015
        %1104 = vst [vmem:[#allocation2 + $0x148] sm:$0xff] %v1017
        %1105 = vst [vmem:[#allocation2 + $0x150] sm:$0xff] %v793
        %1106 = vst [vmem:[#allocation2 + $0x158] sm:$0xff] %v795
        %1107 = vst [vmem:[#allocation2 + $0x160] sm:$0xff] %v906
        %1108 = vst [vmem:[#allocation2 + $0x168] sm:$0xff] %v908
        %1109 = vst [vmem:[#allocation2 + $0x170] sm:$0xff] %v1019
        %1110 = vst [vmem:[#allocation2 + $0x178] sm:$0xff] %v1021
        %1111 = vst [vmem:[#allocation2 + $0x180] sm:$0xff] %v799
        %1112 = vst [vmem:[#allocation2 + $0x188] sm:$0xff] %v801
        %1113 = vst [vmem:[#allocation2 + $0x190] sm:$0xff] %v912
        %1114 = vst [vmem:[#allocation2 + $0x198] sm:$0xff] %v914
        %1115 = vst [vmem:[#allocation2 + $0x1a0] sm:$0xff] %v1025
        %1116 = vst [vmem:[#allocation2 + $0x1a8] sm:$0xff] %v1027
        %1117 = vst [vmem:[#allocation2 + $0x1b0] sm:$0xff] %v803
        %1118 = vst [vmem:[#allocation2 + $0x1b8] sm:$0xff] %v805
        %1119 = vst [vmem:[#allocation2 + $0x1c0] sm:$0xff] %v916
        %1120 = vst [vmem:[#allocation2 + $0x1c8] sm:$0xff] %v918
        %1121 = vst [vmem:[#allocation2 + $0x1d0] sm:$0xff] %v1029
        %1122 = vst [vmem:[#allocation2 + $0x1d8] sm:$0xff] %v1031
        %1123 = vst [vmem:[#allocation2 + $0x1e0] sm:$0xff] %v809
        %1124 = vst [vmem:[#allocation2 + $0x1e8] sm:$0xff] %v811
        %1125 = vst [vmem:[#allocation2 + $0x1f0] sm:$0xff] %v922
        %1126 = vst [vmem:[#allocation2 + $0x1f8] sm:$0xff] %v924
        %1127 = vst [vmem:[#allocation2 + $0x200] sm:$0xff] %v1035
        %1128 = vst [vmem:[#allocation2 + $0x208] sm:$0xff] %v1037
        %1129 = vst [vmem:[#allocation2 + $0x210] sm:$0xff] %v813
        %1130 = vst [vmem:[#allocation2 + $0x218] sm:$0xff] %v815
        %1131 = vst [vmem:[#allocation2 + $0x220] sm:$0xff] %v926
        %1132 = vst [vmem:[#allocation2 + $0x228] sm:$0xff] %v928
        %1133 = vst [vmem:[#allocation2 + $0x230] sm:$0xff] %v1039
        %1134 = vst [vmem:[#allocation2 + $0x238] sm:$0xff] %v1041
        %1135 = vst [vmem:[#allocation2 + $0x240] sm:$0xff] %v819
        %1136 = vst [vmem:[#allocation2 + $0x248] sm:$0xff] %v821
        %1137 = vst [vmem:[#allocation2 + $0x250] sm:$0xff] %v932
        %1138 = vst [vmem:[#allocation2 + $0x258] sm:$0xff] %v934
        %1139 = vst [vmem:[#allocation2 + $0x260] sm:$0xff] %v1045
        %1140 = vst [vmem:[#allocation2 + $0x268] sm:$0xff] %v1047
        %1141 = vst [vmem:[#allocation2 + $0x270] sm:$0xff] %v823
        %1142 = vst [vmem:[#allocation2 + $0x278] sm:$0xff] %v825
        %1143 = vst [vmem:[#allocation2 + $0x280] sm:$0xff] %v936
        %1144 = vst [vmem:[#allocation2 + $0x288] sm:$0xff] %v938
        %1145 = vst [vmem:[#allocation2 + $0x290] sm:$0xff] %v1049
        %1146 = vst [vmem:[#allocation2 + $0x298] sm:$0xff] %v1051
        %1147 = vst [vmem:[#allocation2 + $0x2a0] sm:$0xff] %v829
        %1148 = vst [vmem:[#allocation2 + $0x2a8] sm:$0xff] %v831
        %1149 = vst [vmem:[#allocation2 + $0x2b0] sm:$0xff] %v942
        %1150 = vst [vmem:[#allocation2 + $0x2b8] sm:$0xff] %v944
        %1151 = vst [vmem:[#allocation2 + $0x2c0] sm:$0xff] %v1055
        %1152 = vst [vmem:[#allocation2 + $0x2c8] sm:$0xff] %v1057
        %1153 = vst [vmem:[#allocation2 + $0x2d0] sm:$0xff] %v833
        %1154 = vst [vmem:[#allocation2 + $0x2d8] sm:$0xff] %v835
        %1155 = vst [vmem:[#allocation2 + $0x2e0] sm:$0xff] %v946
        %1156 = vst [vmem:[#allocation2 + $0x2e8] sm:$0xff] %v948
        %1157 = vst [vmem:[#allocation2 + $0x2f0] sm:$0xff] %v1059
        %1158 = vst [vmem:[#allocation2 + $0x2f8] sm:$0xff] %v1061
        %v1159 = vld [vmem:[%s533] sm:$0xff]
        %v1160 = vld [vmem:[%s533 + $0x8] sm:$0xff]
        %v1161 = vpack.c.bf16 %v1160, %v1159
        %v1162 = vld [vmem:[%s2] sm:$0xf]
        %v1163 = vld [vmem:[%s2 + $0x4] sm:$0xf]
        %v1166 = vunpack.c.l.b16 %v1162
        %v1167 = vunpack.c.l.b16 %v1163
        %v1168 = vpack.c.b16 %v1167, %v1166
        %vm1169 = vcmask 130048
        %v1171 = vsel %vm1169, %v1168, 0
        %1173 = vmatprep.subr.bf16.mxu0 0
        %1174 = vmatpush1.bf16.msra.mxu0 %v1161
        %1175 = vmatprep.subr.bf16.mxu0 0
        %1176 = vmatpush1.bf16.msra.mxu0 0
        %1177 = vmatprep.subr.bf16.mxu0 0
        %1178 = vmatpush1.bf16.msra.mxu0 0
        %1179 = vmatprep.subr.bf16.mxu0 0
        %1180 = vmatpush1.bf16.msra.mxu0 0
        %1181 = vmatprep.subr.bf16.mxu0 0
        %1182 = vmatpush1.bf16.msra.mxu0 0
        %1183 = vmatprep.subr.bf16.mxu0 0
        %1184 = vmatpush1.bf16.msra.mxu0 0
        %1185 = vmatprep.subr.bf16.mxu0 0
        %1186 = vmatpush1.bf16.msra.mxu0 0
        %1187 = vmatprep.subr.bf16.mxu0 0
        %1188 = vmatpush1.bf16.msra.mxu0 0
        %1189 = vmatprep.subr.bf16.mxu0 0
        %1190 = vmatpush1.bf16.msra.mxu0 0
        %1191 = vmatprep.subr.bf16.mxu0 0
        %1192 = vmatpush1.bf16.msra.mxu0 0
        %1193 = vmatprep.subr.bf16.mxu0 0
        %1194 = vmatpush1.bf16.msra.mxu0 0
        %1195 = vmatprep.subr.bf16.mxu0 0
        %1196 = vmatpush1.bf16.msra.mxu0 0
        %1197 = vmatprep.subr.bf16.mxu0 0
        %1198 = vmatpush1.bf16.msra.mxu0 0
        %1199 = vmatprep.subr.bf16.mxu0 0
        %1200 = vmatpush1.bf16.msra.mxu0 0
        %1201 = vmatprep.subr.bf16.mxu0 0
        %1202 = vmatpush1.bf16.msra.mxu0 0
        %1203 = vmatprep.subr.bf16.mxu0 0
        %1204 = vmatpush1.bf16.msra.mxu0 0
        %1205 = vmatprep.mubr.bf16.mxu0 0
        %1206 = vmatmul.mubr.bf16.gmra.mrb[0].mxu0 %v1171
        %v1207 = vpop.f32.mrb[0].mxu0
        %v1208 = vadd.f32 0.0, %v1207
        %v1209 = vpop.f32.mrb[0].mxu0
        %v1210 = vpop.f32.mrb[0].mxu0
        %v1211 = vadd.f32 0.0, %v1210
        %v1212 = vpop.f32.mrb[0].mxu0
        %1213 = vdwg.mxu0
        %v1214 = vpack.c.bf16 %v1211, %v1208
        %1216 = vrot.lane.b32.xlu0 %v1214, 32
        %v1217 = vpop.permute.xlu0 %1216
        %vm1218 = vcmask 261120
        %v1221 = vsel %vm1218, %v1161, %v1217
        loop: start=0, step=1, limit=8
        $region119: #{encoder_forward.1} parent=113 // loop_pre_header
          _
        $region120: #{encoder_forward.1} parent=113 // loop_header
          %s1224 = sphi 0, %s1228
          %p1225 = scmp.ge.s32.totalorder %s1224, 8
          %v1229 = vphi %v1159, %v1810
          %v1230 = vphi %v1160, %v1812
          %v1231 = vphi %v1221, %v1800
        $region121: #{encoder_forward.1} parent=113 // loop_header_branch
          %1227 = sbr.rel (%p1225) target = $region125
        $region122: #{encoder_forward.1} parent=113 // loop_body
          %s1232 = smul.u32 %s1224, 16
          %s1233 = sshra.s32 %s1232, 3
          %s1234 = sand.u32 %s1232, 7
          %s1235 = smul.u32 %s1233, 6
          %s1236 = smul.addr %s1235, 8
          %s1237 = scalar_lea.vmem [#allocation2], %s1236
          %v1238 = vld [vmem:[%s1237] sm:$0xff]
          %v1239 = vld [vmem:[%s1237 + $0x8] sm:$0xff]
          %v1240 = vld [vmem:[%s1237 + $0x10] sm:$0xff]
          %v1241 = vld [vmem:[%s1237 + $0x18] sm:$0xff]
          %v1242 = vld [vmem:[%s1237 + $0x20] sm:$0xff]
          %v1243 = vld [vmem:[%s1237 + $0x28] sm:$0xff]
          %v1244 = vld [vmem:[%s1237 + $0x30] sm:$0xff]
          %v1245 = vld [vmem:[%s1237 + $0x38] sm:$0xff]
          %v1246 = vld [vmem:[%s1237 + $0x40] sm:$0xff]
          %v1247 = vld [vmem:[%s1237 + $0x48] sm:$0xff]
          %v1248 = vld [vmem:[%s1237 + $0x50] sm:$0xff]
          %v1249 = vld [vmem:[%s1237 + $0x58] sm:$0xff]
          %v1250 = vld [vmem:[%s6] sm:$0xff]
          %v1251 = vld [vmem:[%s6 + $0x8] sm:$0xff]
          %v1252 = vld [vmem:[%s6 + $0x10] sm:$0xff]
          %v1253 = vld [vmem:[%s6 + $0x18] sm:$0xff]
          %v1254 = vld [vmem:[%s6 + $0x20] sm:$0xff]
          %v1255 = vld [vmem:[%s6 + $0x28] sm:$0xff]
          %v1256 = vld [vmem:[%s6 + $0x30] sm:$0xff]
          %v1257 = vld [vmem:[%s6 + $0x38] sm:$0xff]
          %v1258 = vld [vmem:[%s6 + $0x40] sm:$0xff]
          %v1259 = vld [vmem:[%s6 + $0x48] sm:$0xff]
          %v1260 = vld [vmem:[%s6 + $0x50] sm:$0xff]
          %v1261 = vld [vmem:[%s6 + $0x58] sm:$0xff]
          %v1262 = vld [vmem:[%s6 + $0x60] sm:$0xff]
          %v1263 = vld [vmem:[%s6 + $0x68] sm:$0xff]
          %v1264 = vld [vmem:[%s6 + $0x70] sm:$0xff]
          %v1265 = vld [vmem:[%s6 + $0x78] sm:$0xff]
          %v1282 = vunpack.c.l.b16 %v1250
          %v1283 = vunpack.c.h.b16 %v1250
          %v1284 = vunpack.c.l.b16 %v1251
          %v1285 = vunpack.c.h.b16 %v1251
          %v1286 = vunpack.c.l.b16 %v1252
          %v1287 = vunpack.c.h.b16 %v1252
          %v1288 = vunpack.c.l.b16 %v1253
          %v1289 = vunpack.c.h.b16 %v1253
          %v1290 = vunpack.c.l.b16 %v1254
          %v1291 = vunpack.c.h.b16 %v1254
          %v1292 = vunpack.c.l.b16 %v1255
          %v1293 = vunpack.c.h.b16 %v1255
          %v1294 = vunpack.c.l.b16 %v1256
          %v1295 = vunpack.c.h.b16 %v1256
          %v1296 = vunpack.c.l.b16 %v1257
          %v1297 = vunpack.c.h.b16 %v1257
          %v1298 = vunpack.c.l.b16 %v1258
          %v1299 = vunpack.c.h.b16 %v1258
          %v1300 = vunpack.c.l.b16 %v1259
          %v1301 = vunpack.c.h.b16 %v1259
          %v1302 = vunpack.c.l.b16 %v1260
          %v1303 = vunpack.c.h.b16 %v1260
          %v1304 = vunpack.c.l.b16 %v1261
          %v1305 = vunpack.c.h.b16 %v1261
          %v1306 = vunpack.c.l.b16 %v1262
          %v1307 = vunpack.c.h.b16 %v1262
          %v1308 = vunpack.c.l.b16 %v1263
          %v1309 = vunpack.c.h.b16 %v1263
          %v1310 = vunpack.c.l.b16 %v1264
          %v1311 = vunpack.c.h.b16 %v1264
          %v1312 = vunpack.c.l.b16 %v1265
          %v1313 = vunpack.c.h.b16 %v1265
          %v1314 = vpack.c.b16 %v1286, %v1282
          %v1315 = vpack.c.b16 %v1287, %v1283
          %v1316 = vpack.c.b16 %v1288, %v1284
          %v1317 = vpack.c.b16 %v1289, %v1285
          %v1318 = vpack.c.b16 %v1294, %v1290
          %v1319 = vpack.c.b16 %v1295, %v1291
          %v1320 = vpack.c.b16 %v1296, %v1292
          %v1321 = vpack.c.b16 %v1297, %v1293
          %v1322 = vpack.c.b16 %v1302, %v1298
          %v1323 = vpack.c.b16 %v1303, %v1299
          %v1324 = vpack.c.b16 %v1304, %v1300
          %v1325 = vpack.c.b16 %v1305, %v1301
          %v1326 = vpack.c.b16 %v1310, %v1306
          %v1327 = vpack.c.b16 %v1311, %v1307
          %v1328 = vpack.c.b16 %v1312, %v1308
          %v1329 = vpack.c.b16 %v1313, %v1309
          %vm1346 = vcmask 523264
          %v1348 = vsel %vm1346, %v1231, 0
          %1350 = vmatprep.subr.bf16.mxu0 %v1315
          %1351 = vmatpush1.bf16.msra.mxu0 %v1314
          %1352 = vmatprep.subr.bf16.mxu0 %v1319
          %1353 = vmatpush1.bf16.msra.mxu0 %v1318
          %1354 = vmatprep.subr.bf16.mxu0 %v1323
          %1355 = vmatpush1.bf16.msra.mxu0 %v1322
          %1356 = vmatprep.subr.bf16.mxu0 %v1327
          %1357 = vmatpush1.bf16.msra.mxu0 %v1326
          %1358 = vmatprep.subr.bf16.mxu0 0
          %1359 = vmatpush1.bf16.msra.mxu0 0
          %1360 = vmatprep.subr.bf16.mxu0 0
          %1361 = vmatpush1.bf16.msra.mxu0 0
          %1362 = vmatprep.subr.bf16.mxu0 0
          %1363 = vmatpush1.bf16.msra.mxu0 0
          %1364 = vmatprep.subr.bf16.mxu0 0
          %1365 = vmatpush1.bf16.msra.mxu0 0
          %1366 = vmatprep.subr.bf16.mxu0 0
          %1367 = vmatpush1.bf16.msra.mxu0 0
          %1368 = vmatprep.subr.bf16.mxu0 0
          %1369 = vmatpush1.bf16.msra.mxu0 0
          %1370 = vmatprep.subr.bf16.mxu0 0
          %1371 = vmatpush1.bf16.msra.mxu0 0
          %1372 = vmatprep.subr.bf16.mxu0 0
          %1373 = vmatpush1.bf16.msra.mxu0 0
          %1374 = vmatprep.subr.bf16.mxu0 0
          %1375 = vmatpush1.bf16.msra.mxu0 0
          %1376 = vmatprep.subr.bf16.mxu0 0
          %1377 = vmatpush1.bf16.msra.mxu0 0
          %1378 = vmatprep.subr.bf16.mxu0 0
          %1379 = vmatpush1.bf16.msra.mxu0 0
          %1380 = vmatprep.subr.bf16.mxu0 0
          %1381 = vmatpush1.bf16.msra.mxu0 0
          %1382 = vmatprep.mubr.bf16.mxu0 0
          %1383 = vmatmul.mubr.bf16.gmra.mrb[0].mxu0 %v1348
          %v1384 = vpop.f32.mrb[0].mxu0
          %v1385 = vadd.f32 0.0, %v1384
          %v1386 = vpop.f32.mrb[0].mxu0
          %v1387 = vadd.f32 0.0, %v1386
          %v1388 = vpop.f32.mrb[0].mxu0
          %v1389 = vadd.f32 0.0, %v1388
          %v1390 = vpop.f32.mrb[0].mxu0
          %v1391 = vadd.f32 0.0, %v1390
          %1392 = vdwg.mxu0
          %1393 = vmatprep.subr.bf16.mxu0 %v1317
          %1394 = vmatpush1.bf16.msra.mxu0 %v1316
          %1395 = vmatprep.subr.bf16.mxu0 %v1321
          %1396 = vmatpush1.bf16.msra.mxu0 %v1320
          %1397 = vmatprep.subr.bf16.mxu0 %v1325
          %1398 = vmatpush1.bf16.msra.mxu0 %v1324
          %1399 = vmatprep.subr.bf16.mxu0 %v1329
          %1400 = vmatpush1.bf16.msra.mxu0 %v1328
          %1401 = vmatprep.subr.bf16.mxu0 0
          %1402 = vmatpush1.bf16.msra.mxu0 0
          %1403 = vmatprep.subr.bf16.mxu0 0
          %1404 = vmatpush1.bf16.msra.mxu0 0
          %1405 = vmatprep.subr.bf16.mxu0 0
          %1406 = vmatpush1.bf16.msra.mxu0 0
          %1407 = vmatprep.subr.bf16.mxu0 0
          %1408 = vmatpush1.bf16.msra.mxu0 0
          %1409 = vmatprep.subr.bf16.mxu0 0
          %1410 = vmatpush1.bf16.msra.mxu0 0
          %1411 = vmatprep.subr.bf16.mxu0 0
          %1412 = vmatpush1.bf16.msra.mxu0 0
          %1413 = vmatprep.subr.bf16.mxu0 0
          %1414 = vmatpush1.bf16.msra.mxu0 0
          %1415 = vmatprep.subr.bf16.mxu0 0
          %1416 = vmatpush1.bf16.msra.mxu0 0
          %1417 = vmatprep.subr.bf16.mxu0 0
          %1418 = vmatpush1.bf16.msra.mxu0 0
          %1419 = vmatprep.subr.bf16.mxu0 0
          %1420 = vmatpush1.bf16.msra.mxu0 0
          %1421 = vmatprep.subr.bf16.mxu0 0
          %1422 = vmatpush1.bf16.msra.mxu0 0
          %1423 = vmatprep.subr.bf16.mxu0 0
          %1424 = vmatpush1.bf16.msra.mxu0 0
          %1425 = vmatprep.mubr.bf16.mxu0 0
          %1426 = vmatmul.mubr.bf16.gmra.mrb[0].mxu0 %v1348
          %v1427 = vpop.f32.mrb[0].mxu0
          %v1428 = vadd.f32 0.0, %v1427
          %v1429 = vpop.f32.mrb[0].mxu0
          %v1430 = vadd.f32 0.0, %v1429
          %v1431 = vpop.f32.mrb[0].mxu0
          %v1432 = vadd.f32 0.0, %v1431
          %v1433 = vpop.f32.mrb[0].mxu0
          %v1434 = vadd.f32 0.0, %v1433
          %1435 = vdwg.mxu0
          %v1436 = vadd.f32 %v1238, %v1385
          %v1437 = vadd.f32 %v1239, %v1387
          %v1438 = vadd.f32 %v1240, %v1428
          %v1439 = vadd.f32 %v1241, %v1430
          %v1440 = vadd.f32 %v1244, %v1389
          %v1441 = vadd.f32 %v1245, %v1391
          %v1442 = vadd.f32 %v1246, %v1432
          %v1443 = vadd.f32 %v1247, %v1434
          %v1444 = vld [vmem:[%s8] sm:$0xff]
          %v1445 = vld [vmem:[%s8 + $0x8] sm:$0xff]
          %v1446 = vld [vmem:[%s3] sm:$0xff]
          %v1447 = vld [vmem:[%s3 + $0x8] sm:$0xff]
          %v1448 = vld [vmem:[%s3 + $0x10] sm:$0xff]
          %v1449 = vld [vmem:[%s3 + $0x18] sm:$0xff]
          %v1450 = vld [vmem:[%s3 + $0x20] sm:$0xff]
          %v1451 = vld [vmem:[%s3 + $0x28] sm:$0xff]
          %v1452 = vld [vmem:[%s3 + $0x30] sm:$0xff]
          %v1453 = vld [vmem:[%s3 + $0x38] sm:$0xff]
          %v1454 = vmul.f32 %v1436, %v1446
          %v1455 = vmul.f32 %v1437, %v1447
          %v1456 = vmul.f32 %v1438, %v1448
          %v1457 = vmul.f32 %v1439, %v1449
          %v1458 = vmul.f32 %v1440, %v1450
          %v1459 = vmul.f32 %v1441, %v1451
          %v1460 = vmul.f32 %v1442, %v1452
          %v1461 = vmul.f32 %v1443, %v1453
          %1462 = vrot.lane.b32.xlu0 %v1454, 64
          %v1463 = vpop.permute.xlu0 %1462
          %1464 = vrot.lane.b32.xlu0 %v1458, 64
          %v1465 = vpop.permute.xlu0 %1464
          %1466 = vrot.lane.b32.xlu0 %v1455, 64
          %v1467 = vpop.permute.xlu0 %1466
          %1468 = vrot.lane.b32.xlu0 %v1459, 64
          %v1469 = vpop.permute.xlu0 %1468
          %1470 = vrot.lane.b32.xlu0 %v1456, 64
          %v1471 = vpop.permute.xlu0 %1470
          %1472 = vrot.lane.b32.xlu0 %v1460, 64
          %v1473 = vpop.permute.xlu0 %1472
          %1474 = vrot.lane.b32.xlu0 %v1457, 64
          %v1475 = vpop.permute.xlu0 %1474
          %1476 = vrot.lane.b32.xlu0 %v1461, 64
          %v1477 = vpop.permute.xlu0 %1476
          %v1478 = vlaneseq
          %v1479 = vand.u32 %v1478, 127
          %vm1480 = vcmp.lt.s32.totalorder %v1479, 64
          %v1481 = vsel %vm1480, %v1471, %v1475
          %v1482 = vsel %vm1480, %v1473, %v1477
          %v1483 = vsel %vm1480, %v1467, %v1471
          %v1484 = vsel %vm1480, %v1469, %v1473
          %v1485 = vsel %vm1480, %v1463, %v1467
          %v1486 = vsel %vm1480, %v1465, %v1469
          %v1487 = vsel %vm1480, %v1475, %v1463
          %v1488 = vsel %vm1480, %v1477, %v1465
          %v1489 = vadd.f32 %v1454, %v1487
          %v1490 = vadd.f32 %v1455, %v1485
          %v1491 = vadd.f32 %v1456, %v1483
          %v1492 = vadd.f32 %v1457, %v1481
          %v1493 = vadd.f32 %v1458, %v1488
          %v1494 = vadd.f32 %v1459, %v1486
          %v1495 = vadd.f32 %v1460, %v1484
          %v1496 = vadd.f32 %v1461, %v1482
          %v1497 = vadd.f32 %v1489, %v1492
          %v1498 = vadd.f32 %v1491, %v1490
          %v1499 = vadd.f32 %v1493, %v1496
          %v1500 = vadd.f32 %v1495, %v1494
          %v1501 = vadd.f32 %v1497, %v1498
          %v1502 = vadd.f32 %v1499, %v1500
          %v1503 = vadd.f32 %v1444, %v1501
          %v1504 = vadd.f32 %v1445, %v1502
          %v1505 = vxor.u32 %v1503, 2147483648
          %v1506 = vxor.u32 %v1504, 2147483648
          %v1507 = vmul.f32 %v1505, 1.442695
          %v1508 = vpow.pop %v1507
          %v1509 = vmul.f32 %v1506, 1.442695
          %v1510 = vpow.pop %v1509
          %v1511 = vadd.f32 %v1508, 1.0
          %v1512 = vadd.f32 %v1510, 1.0
          %v1513 = vrcp.pop %v1511
          %v1514 = vmul.f32 1.0, %v1513
          %v1515 = vrcp.pop %v1512
          %v1516 = vmul.f32 1.0, %v1515
          %v1517 = vmul.f32 %v1514, %v1229
          %v1518 = vmul.f32 %v1516, %v1230
          %v1519 = vpack.c.bf16 %v1518, %v1517
          %v1520 = vld [vmem:[%s2] sm:$0xf]
          %v1521 = vld [vmem:[%s2 + $0x4] sm:$0xf]
          %v1524 = vunpack.c.l.b16 %v1520
          %v1525 = vunpack.c.l.b16 %v1521
          %v1526 = vpack.c.b16 %v1525, %v1524
          %v1528 = vsel %vm1169, %v1526, 0
          %1530 = vmatprep.subr.bf16.mxu0 0
          %1531 = vmatpush1.bf16.msra.mxu0 %v1519
          %1532 = vmatprep.subr.bf16.mxu0 0
          %1533 = vmatpush1.bf16.msra.mxu0 0
          %1534 = vmatprep.subr.bf16.mxu0 0
          %1535 = vmatpush1.bf16.msra.mxu0 0
          %1536 = vmatprep.subr.bf16.mxu0 0
          %1537 = vmatpush1.bf16.msra.mxu0 0
          %1538 = vmatprep.subr.bf16.mxu0 0
          %1539 = vmatpush1.bf16.msra.mxu0 0
          %1540 = vmatprep.subr.bf16.mxu0 0
          %1541 = vmatpush1.bf16.msra.mxu0 0
          %1542 = vmatprep.subr.bf16.mxu0 0
          %1543 = vmatpush1.bf16.msra.mxu0 0
          %1544 = vmatprep.subr.bf16.mxu0 0
          %1545 = vmatpush1.bf16.msra.mxu0 0
          %1546 = vmatprep.subr.bf16.mxu0 0
          %1547 = vmatpush1.bf16.msra.mxu0 0
          %1548 = vmatprep.subr.bf16.mxu0 0
          %1549 = vmatpush1.bf16.msra.mxu0 0
          %1550 = vmatprep.subr.bf16.mxu0 0
          %1551 = vmatpush1.bf16.msra.mxu0 0
          %1552 = vmatprep.subr.bf16.mxu0 0
          %1553 = vmatpush1.bf16.msra.mxu0 0
          %1554 = vmatprep.subr.bf16.mxu0 0
          %1555 = vmatpush1.bf16.msra.mxu0 0
          %1556 = vmatprep.subr.bf16.mxu0 0
          %1557 = vmatpush1.bf16.msra.mxu0 0
          %1558 = vmatprep.subr.bf16.mxu0 0
          %1559 = vmatpush1.bf16.msra.mxu0 0
          %1560 = vmatprep.subr.bf16.mxu0 0
          %1561 = vmatpush1.bf16.msra.mxu0 0
          %1562 = vmatprep.mubr.bf16.mxu0 0
          %1563 = vmatmul.mubr.bf16.gmra.mrb[0].mxu0 %v1528
          %v1564 = vpop.f32.mrb[0].mxu0
          %v1565 = vadd.f32 0.0, %v1564
          %v1566 = vpop.f32.mrb[0].mxu0
          %v1567 = vpop.f32.mrb[0].mxu0
          %v1568 = vadd.f32 0.0, %v1567
          %v1569 = vpop.f32.mrb[0].mxu0
          %1570 = vdwg.mxu0
          %v1571 = vpack.c.bf16 %v1568, %v1565
          %1573 = vrot.lane.b32.xlu0 %v1571, 32
          %v1574 = vpop.permute.xlu0 %1573
          %v1577 = vsel %vm1218, %v1519, %v1574
          %v1578 = vld [vmem:[%s7] sm:$0xff]
          %v1579 = vld [vmem:[%s7 + $0x8] sm:$0xff]
          %v1580 = vld [vmem:[%s7 + $0x10] sm:$0xff]
          %v1581 = vld [vmem:[%s7 + $0x18] sm:$0xff]
          %v1582 = vld [vmem:[%s7 + $0x20] sm:$0xff]
          %v1583 = vld [vmem:[%s7 + $0x28] sm:$0xff]
          %v1584 = vld [vmem:[%s7 + $0x30] sm:$0xff]
          %v1585 = vld [vmem:[%s7 + $0x38] sm:$0xff]
          %v1594 = vunpack.c.l.b16 %v1578
          %v1595 = vunpack.c.h.b16 %v1578
          %v1596 = vunpack.c.l.b16 %v1579
          %v1597 = vunpack.c.h.b16 %v1579
          %v1598 = vunpack.c.l.b16 %v1580
          %v1599 = vunpack.c.h.b16 %v1580
          %v1600 = vunpack.c.l.b16 %v1581
          %v1601 = vunpack.c.h.b16 %v1581
          %v1602 = vunpack.c.l.b16 %v1582
          %v1603 = vunpack.c.h.b16 %v1582
          %v1604 = vunpack.c.l.b16 %v1583
          %v1605 = vunpack.c.h.b16 %v1583
          %v1606 = vunpack.c.l.b16 %v1584
          %v1607 = vunpack.c.h.b16 %v1584
          %v1608 = vunpack.c.l.b16 %v1585
          %v1609 = vunpack.c.h.b16 %v1585
          %v1610 = vpack.c.b16 %v1596, %v1594
          %v1611 = vpack.c.b16 %v1597, %v1595
          %v1612 = vpack.c.b16 %v1600, %v1598
          %v1613 = vpack.c.b16 %v1601, %v1599
          %v1614 = vpack.c.b16 %v1604, %v1602
          %v1615 = vpack.c.b16 %v1605, %v1603
          %v1616 = vpack.c.b16 %v1608, %v1606
          %v1617 = vpack.c.b16 %v1609, %v1607
          %v1626 = vsel %vm1346, %v1577, 0
          %1628 = vmatprep.subr.bf16.mxu0 %v1611
          %1629 = vmatpush1.bf16.msra.mxu0 %v1610
          %1630 = vmatprep.subr.bf16.mxu0 %v1613
          %1631 = vmatpush1.bf16.msra.mxu0 %v1612
          %1632 = vmatprep.subr.bf16.mxu0 %v1615
          %1633 = vmatpush1.bf16.msra.mxu0 %v1614
          %1634 = vmatprep.subr.bf16.mxu0 %v1617
          %1635 = vmatpush1.bf16.msra.mxu0 %v1616
          %1636 = vmatprep.subr.bf16.mxu0 0
          %1637 = vmatpush1.bf16.msra.mxu0 0
          %1638 = vmatprep.subr.bf16.mxu0 0
          %1639 = vmatpush1.bf16.msra.mxu0 0
          %1640 = vmatprep.subr.bf16.mxu0 0
          %1641 = vmatpush1.bf16.msra.mxu0 0
          %1642 = vmatprep.subr.bf16.mxu0 0
          %1643 = vmatpush1.bf16.msra.mxu0 0
          %1644 = vmatprep.subr.bf16.mxu0 0
          %1645 = vmatpush1.bf16.msra.mxu0 0
          %1646 = vmatprep.subr.bf16.mxu0 0
          %1647 = vmatpush1.bf16.msra.mxu0 0
          %1648 = vmatprep.subr.bf16.mxu0 0
          %1649 = vmatpush1.bf16.msra.mxu0 0
          %1650 = vmatprep.subr.bf16.mxu0 0
          %1651 = vmatpush1.bf16.msra.mxu0 0
          %1652 = vmatprep.subr.bf16.mxu0 0
          %1653 = vmatpush1.bf16.msra.mxu0 0
          %1654 = vmatprep.subr.bf16.mxu0 0
          %1655 = vmatpush1.bf16.msra.mxu0 0
          %1656 = vmatprep.subr.bf16.mxu0 0
          %1657 = vmatpush1.bf16.msra.mxu0 0
          %1658 = vmatprep.subr.bf16.mxu0 0
          %1659 = vmatpush1.bf16.msra.mxu0 0
          %1660 = vmatprep.mubr.bf16.mxu0 0
          %1661 = vmatmul.mubr.bf16.gmra.mrb[0].mxu0 %v1626
          %v1662 = vpop.f32.mrb[0].mxu0
          %v1663 = vadd.f32 0.0, %v1662
          %v1664 = vpop.f32.mrb[0].mxu0
          %v1665 = vadd.f32 0.0, %v1664
          %v1666 = vpop.f32.mrb[0].mxu0
          %v1667 = vadd.f32 0.0, %v1666
          %v1668 = vpop.f32.mrb[0].mxu0
          %v1669 = vadd.f32 0.0, %v1668
          %1670 = vdwg.mxu0
          %v1671 = vadd.f32 %v1242, %v1663
          %v1672 = vadd.f32 %v1243, %v1665
          %v1673 = vadd.f32 %v1248, %v1667
          %v1674 = vadd.f32 %v1249, %v1669
          %v1675 = vld [vmem:[%s9] sm:$0xff]
          %v1676 = vld [vmem:[%s9 + $0x8] sm:$0xff]
          %v1677 = vld [vmem:[%s4] sm:$0xff]
          %v1678 = vld [vmem:[%s4 + $0x8] sm:$0xff]
          %v1679 = vld [vmem:[%s4 + $0x10] sm:$0xff]
          %v1680 = vld [vmem:[%s4 + $0x18] sm:$0xff]
          %v1681 = vmul.f32 %v1671, %v1677
          %v1682 = vmul.f32 %v1672, %v1678
          %v1683 = vmul.f32 %v1673, %v1679
          %v1684 = vmul.f32 %v1674, %v1680
          %1685 = vrot.lane.b32.xlu0 %v1681, 32
          %v1686 = vpop.permute.xlu0 %1685
          %1687 = vrot.lane.b32.xlu0 %v1683, 32
          %v1688 = vpop.permute.xlu0 %1687
          %1689 = vrot.lane.b32.xlu0 %v1682, 32
          %v1690 = vpop.permute.xlu0 %1689
          %1691 = vrot.lane.b32.xlu0 %v1684, 32
          %v1692 = vpop.permute.xlu0 %1691
          %vm1693 = vcmp.lt.s32.totalorder %v1479, 32
          %v1694 = vsel %vm1693, %v1686, %v1690
          %v1695 = vsel %vm1693, %v1688, %v1692
          %v1696 = vsel %vm1693, %v1690, %v1686
          %v1697 = vsel %vm1693, %v1692, %v1688
          %v1698 = vadd.f32 %v1681, %v1696
          %v1699 = vadd.f32 %v1682, %v1694
          %v1700 = vadd.f32 %v1683, %v1697
          %v1701 = vadd.f32 %v1684, %v1695
          %1702 = vrot.lane.b32.xlu0 %v1698, 64
          %v1703 = vpop.permute.xlu0 %1702
          %1704 = vrot.lane.b32.xlu0 %v1700, 64
          %v1705 = vpop.permute.xlu0 %1704
          %1706 = vrot.lane.b32.xlu0 %v1699, 64
          %v1707 = vpop.permute.xlu0 %1706
          %1708 = vrot.lane.b32.xlu0 %v1701, 64
          %v1709 = vpop.permute.xlu0 %1708
          %v1710 = vsel %vm1480, %v1703, %v1707
          %v1711 = vsel %vm1480, %v1705, %v1709
          %v1712 = vsel %vm1480, %v1707, %v1703
          %v1713 = vsel %vm1480, %v1709, %v1705
          %v1714 = vadd.f32 %v1698, %v1712
          %v1715 = vadd.f32 %v1699, %v1710
          %v1716 = vadd.f32 %v1700, %v1713
          %v1717 = vadd.f32 %v1701, %v1711
          %v1718 = vadd.f32 %v1714, %v1715
          %v1719 = vadd.f32 %v1716, %v1717
          %v1720 = vadd.f32 %v1675, %v1718
          %v1721 = vadd.f32 %v1676, %v1719
          %v1722 = vtanh.pop %v1720
          %v1723 = vtanh.pop %v1721
          %1726 = vrot.lane.b32.xlu0 %v1229, 32
          %v1727 = vpop.permute.xlu0 %1726
          %1728 = vrot.lane.b32.xlu0 %v1230, 32
          %v1729 = vpop.permute.xlu0 %1728
          %v1732 = vmul.f32 %v1514, %v1727
          %v1733 = vmul.f32 %v1516, %v1729
          %v1734 = vsub.f32 1.0, %v1514
          %v1735 = vsub.f32 1.0, %v1516
          %1738 = vrot.lane.b32.xlu0 %v1722, 32
          %v1739 = vpop.permute.xlu0 %1738
          %1740 = vrot.lane.b32.xlu0 %v1723, 32
          %v1741 = vpop.permute.xlu0 %1740
          %v1744 = vmul.f32 %v1734, %v1739
          %v1745 = vmul.f32 %v1735, %v1741
          %v1746 = vadd.f32 %v1732, %v1744
          %v1747 = vadd.f32 %v1733, %v1745
          %v1748 = vpack.c.bf16 %v1747, %v1746
          %1750 = vrot.lane.b32.xlu0 %v1748, 96
          %v1751 = vpop.permute.xlu0 %1750
          %1753 = vmatprep.subr.bf16.mxu0 0
          %1754 = vmatpush1.bf16.msra.mxu0 %v1751
          %1755 = vmatprep.subr.bf16.mxu0 0
          %1756 = vmatpush1.bf16.msra.mxu0 0
          %1757 = vmatprep.subr.bf16.mxu0 0
          %1758 = vmatpush1.bf16.msra.mxu0 0
          %1759 = vmatprep.subr.bf16.mxu0 0
          %1760 = vmatpush1.bf16.msra.mxu0 0
          %1761 = vmatprep.subr.bf16.mxu0 0
          %1762 = vmatpush1.bf16.msra.mxu0 0
          %1763 = vmatprep.subr.bf16.mxu0 0
          %1764 = vmatpush1.bf16.msra.mxu0 0
          %1765 = vmatprep.subr.bf16.mxu0 0
          %1766 = vmatpush1.bf16.msra.mxu0 0
          %1767 = vmatprep.subr.bf16.mxu0 0
          %1768 = vmatpush1.bf16.msra.mxu0 0
          %1769 = vmatprep.subr.bf16.mxu0 0
          %1770 = vmatpush1.bf16.msra.mxu0 0
          %1771 = vmatprep.subr.bf16.mxu0 0
          %1772 = vmatpush1.bf16.msra.mxu0 0
          %1773 = vmatprep.subr.bf16.mxu0 0
          %1774 = vmatpush1.bf16.msra.mxu0 0
          %1775 = vmatprep.subr.bf16.mxu0 0
          %1776 = vmatpush1.bf16.msra.mxu0 0
          %1777 = vmatprep.subr.bf16.mxu0 0
          %1778 = vmatpush1.bf16.msra.mxu0 0
          %1779 = vmatprep.subr.bf16.mxu0 0
          %1780 = vmatpush1.bf16.msra.mxu0 0
          %1781 = vmatprep.subr.bf16.mxu0 0
          %1782 = vmatpush1.bf16.msra.mxu0 0
          %1783 = vmatprep.subr.bf16.mxu0 0
          %1784 = vmatpush1.bf16.msra.mxu0 0
          %1785 = vmatprep.mubr.bf16.mxu0 0
          %1786 = vmatmul.mubr.bf16.gmra.mrb[0].mxu0 %v1528
          %v1787 = vpop.f32.mrb[0].mxu0
          %v1788 = vadd.f32 0.0, %v1787
          %v1789 = vpop.f32.mrb[0].mxu0
          %v1790 = vpop.f32.mrb[0].mxu0
          %v1791 = vadd.f32 0.0, %v1790
          %v1792 = vpop.f32.mrb[0].mxu0
          %1793 = vdwg.mxu0
          %v1794 = vpack.c.bf16 %v1791, %v1788
          %1796 = vrot.lane.b32.xlu0 %v1794, 32
          %v1797 = vpop.permute.xlu0 %1796
          %v1800 = vsel %vm1218, %v1751, %v1797
          %s1802 = sshra.s32 %s1232, 4
          %s1803 = sand.u32 %s1232, 15
          %s1804 = smul.addr %s1802, 8
          %s1805 = scalar_lea.vmem [#allocation3], %s1804
          %1806 = vst.msk [vmem:[%s1805] sm:$0xff] %vm1346, %v1800
          %1809 = vrot.lane.b32.xlu0 %v1746, 96
          %v1810 = vpop.permute.xlu0 %1809
          %1811 = vrot.lane.b32.xlu0 %v1747, 96
          %v1812 = vpop.permute.xlu0 %1811
        $region123: #{encoder_forward.1} parent=113 // loop_footer
          %s1228 = sadd.s32 1, %s1224
        $region124: #{encoder_forward.1} parent=113 // loop_footer_branch
          %1223 = sbr.rel target = $region120
        $region125: #{encoder_forward.1} parent=113 // loop_exit
          _
        %1815 = vst.msk [vmem:[%s588] sm:$0xff] %vm1218, %v1229
        %1816 = vst.msk [vmem:[%s588 + $0x8] sm:$0xff] %vm1218, %v1230
        %v1817 = vld [vmem:[#allocation3] sm:$0xff]
        %v1818 = vld [vmem:[#allocation3 + $0x8] sm:$0xff]
        %v1819 = vld [vmem:[#allocation3 + $0x10] sm:$0xff]
        %v1820 = vld [vmem:[#allocation3 + $0x18] sm:$0xff]
        %v1821 = vld [vmem:[#allocation3 + $0x20] sm:$0xff]
        %v1822 = vld [vmem:[#allocation3 + $0x28] sm:$0xff]
        %v1823 = vld [vmem:[#allocation3 + $0x30] sm:$0xff]
        %v1824 = vld [vmem:[#allocation3 + $0x38] sm:$0xff]
        %v1825 = vld [vmem:[%s10] sm:$0xff]
        %v1826 = vld [vmem:[%s10 + $0x8] sm:$0xff]
        %v1827 = vld [vmem:[%s10 + $0x10] sm:$0xff]
        %v1828 = vld [vmem:[%s10 + $0x18] sm:$0xff]
        %v1829 = vld [vmem:[%s10 + $0x20] sm:$0xff]
        %v1830 = vld [vmem:[%s10 + $0x28] sm:$0xff]
        %v1831 = vld [vmem:[%s10 + $0x30] sm:$0xff]
        %v1832 = vld [vmem:[%s10 + $0x38] sm:$0xff]
        %v1833 = vld [vmem:[%s10 + $0x40] sm:$0xff]
        %v1834 = vld [vmem:[%s10 + $0x48] sm:$0xff]
        %v1835 = vld [vmem:[%s10 + $0x50] sm:$0xff]
        %v1836 = vld [vmem:[%s10 + $0x58] sm:$0xff]
        %v1837 = vld [vmem:[%s10 + $0x60] sm:$0xff]
        %v1838 = vld [vmem:[%s10 + $0x68] sm:$0xff]
        %v1839 = vld [vmem:[%s10 + $0x70] sm:$0xff]
        %v1840 = vld [vmem:[%s10 + $0x78] sm:$0xff]
        %v1841 = vld [vmem:[%s10 + $0x80] sm:$0xff]
        %v1842 = vld [vmem:[%s10 + $0x88] sm:$0xff]
        %v1843 = vld [vmem:[%s10 + $0x90] sm:$0xff]
        %v1844 = vld [vmem:[%s10 + $0x98] sm:$0xff]
        %v1845 = vld [vmem:[%s10 + $0xa0] sm:$0xff]
        %v1846 = vld [vmem:[%s10 + $0xa8] sm:$0xff]
        %v1847 = vld [vmem:[%s10 + $0xb0] sm:$0xff]
        %v1848 = vld [vmem:[%s10 + $0xb8] sm:$0xff]
        %v1873 = vunpack.c.l.b16 %v1825
        %v1874 = vunpack.c.h.b16 %v1825
        %v1875 = vunpack.c.l.b16 %v1826
        %v1876 = vunpack.c.h.b16 %v1826
        %v1877 = vunpack.c.l.b16 %v1827
        %v1878 = vunpack.c.h.b16 %v1827
        %v1879 = vunpack.c.l.b16 %v1828
        %v1880 = vunpack.c.h.b16 %v1828
        %v1881 = vunpack.c.l.b16 %v1829
        %v1882 = vunpack.c.h.b16 %v1829
        %v1883 = vunpack.c.l.b16 %v1830
        %v1884 = vunpack.c.h.b16 %v1830
        %v1885 = vunpack.c.l.b16 %v1831
        %v1886 = vunpack.c.h.b16 %v1831
        %v1887 = vunpack.c.l.b16 %v1832
        %v1888 = vunpack.c.h.b16 %v1832
        %v1889 = vunpack.c.l.b16 %v1833
        %v1890 = vunpack.c.h.b16 %v1833
        %v1891 = vunpack.c.l.b16 %v1834
        %v1892 = vunpack.c.h.b16 %v1834
        %v1893 = vunpack.c.l.b16 %v1835
        %v1894 = vunpack.c.h.b16 %v1835
        %v1895 = vunpack.c.l.b16 %v1836
        %v1896 = vunpack.c.h.b16 %v1836
        %v1897 = vunpack.c.l.b16 %v1837
        %v1898 = vunpack.c.h.b16 %v1837
        %v1899 = vunpack.c.l.b16 %v1838
        %v1900 = vunpack.c.h.b16 %v1838
        %v1901 = vunpack.c.l.b16 %v1839
        %v1902 = vunpack.c.h.b16 %v1839
        %v1903 = vunpack.c.l.b16 %v1840
        %v1904 = vunpack.c.h.b16 %v1840
        %v1905 = vunpack.c.l.b16 %v1841
        %v1906 = vunpack.c.h.b16 %v1841
        %v1907 = vunpack.c.l.b16 %v1842
        %v1908 = vunpack.c.h.b16 %v1842
        %v1909 = vunpack.c.l.b16 %v1843
        %v1910 = vunpack.c.h.b16 %v1843
        %v1911 = vunpack.c.l.b16 %v1844
        %v1912 = vunpack.c.h.b16 %v1844
        %v1913 = vunpack.c.l.b16 %v1845
        %v1914 = vunpack.c.h.b16 %v1845
        %v1915 = vunpack.c.l.b16 %v1846
        %v1916 = vunpack.c.h.b16 %v1846
        %v1917 = vunpack.c.l.b16 %v1847
        %v1918 = vunpack.c.h.b16 %v1847
        %v1919 = vunpack.c.l.b16 %v1848
        %v1920 = vunpack.c.h.b16 %v1848
        %v1921 = vpack.c.b16 %v1879, %v1873
        %v1922 = vpack.c.b16 %v1880, %v1874
        %v1923 = vpack.c.b16 %v1881, %v1875
        %v1924 = vpack.c.b16 %v1882, %v1876
        %v1925 = vpack.c.b16 %v1883, %v1877
        %v1926 = vpack.c.b16 %v1884, %v1878
        %v1927 = vpack.c.b16 %v1891, %v1885
        %v1928 = vpack.c.b16 %v1892, %v1886
        %v1929 = vpack.c.b16 %v1893, %v1887
        %v1930 = vpack.c.b16 %v1894, %v1888
        %v1931 = vpack.c.b16 %v1895, %v1889
        %v1932 = vpack.c.b16 %v1896, %v1890
        %v1933 = vpack.c.b16 %v1903, %v1897
        %v1934 = vpack.c.b16 %v1904, %v1898
        %v1935 = vpack.c.b16 %v1905, %v1899
        %v1936 = vpack.c.b16 %v1906, %v1900
        %v1937 = vpack.c.b16 %v1907, %v1901
        %v1938 = vpack.c.b16 %v1908, %v1902
        %v1939 = vpack.c.b16 %v1915, %v1909
        %v1940 = vpack.c.b16 %v1916, %v1910
        %v1941 = vpack.c.b16 %v1917, %v1911
        %v1942 = vpack.c.b16 %v1918, %v1912
        %v1943 = vpack.c.b16 %v1919, %v1913
        %v1944 = vpack.c.b16 %v1920, %v1914
        %vm1969 = vcmask 523264
        %v1971 = vsel %vm1969, %v1817, 0
        %v1974 = vsel %vm1969, %v1818, 0
        %v1977 = vsel %vm1969, %v1819, 0
        %v1980 = vsel %vm1969, %v1820, 0
        %v1983 = vsel %vm1969, %v1821, 0
        %v1986 = vsel %vm1969, %v1822, 0
        %v1989 = vsel %vm1969, %v1823, 0
        %v1992 = vsel %vm1969, %v1824, 0
        %1994 = vmatprep.subr.bf16.mxu0 %v1922
        %1995 = vmatpush1.bf16.msra.mxu0 %v1921
        %1996 = vmatprep.subr.bf16.mxu0 %v1928
        %1997 = vmatpush1.bf16.msra.mxu0 %v1927
        %1998 = vmatprep.subr.bf16.mxu0 %v1934
        %1999 = vmatpush1.bf16.msra.mxu0 %v1933
        %2000 = vmatprep.subr.bf16.mxu0 %v1940
        %2001 = vmatpush1.bf16.msra.mxu0 %v1939
        %2002 = vmatprep.subr.bf16.mxu0 0
        %2003 = vmatpush1.bf16.msra.mxu0 0
        %2004 = vmatprep.subr.bf16.mxu0 0
        %2005 = vmatpush1.bf16.msra.mxu0 0
        %2006 = vmatprep.subr.bf16.mxu0 0
        %2007 = vmatpush1.bf16.msra.mxu0 0
        %2008 = vmatprep.subr.bf16.mxu0 0
        %2009 = vmatpush1.bf16.msra.mxu0 0
        %2010 = vmatprep.subr.bf16.mxu0 0
        %2011 = vmatpush1.bf16.msra.mxu0 0
        %2012 = vmatprep.subr.bf16.mxu0 0
        %2013 = vmatpush1.bf16.msra.mxu0 0
        %2014 = vmatprep.subr.bf16.mxu0 0
        %2015 = vmatpush1.bf16.msra.mxu0 0
        %2016 = vmatprep.subr.bf16.mxu0 0
        %2017 = vmatpush1.bf16.msra.mxu0 0
        %2018 = vmatprep.subr.bf16.mxu0 0
        %2019 = vmatpush1.bf16.msra.mxu0 0
        %2020 = vmatprep.subr.bf16.mxu0 0
        %2021 = vmatpush1.bf16.msra.mxu0 0
        %2022 = vmatprep.subr.bf16.mxu0 0
        %2023 = vmatpush1.bf16.msra.mxu0 0
        %2024 = vmatprep.subr.bf16.mxu0 0
        %2025 = vmatpush1.bf16.msra.mxu0 0
        %2026 = vmatprep.mubr.bf16.mxu0 0
        %2027 = vmatmul.mubr.bf16.gmra.mrb[0].mxu0 %v1971
        %v2028 = vpop.f32.mrb[0].mxu0
        %v2029 = vadd.f32 0.0, %v2028
        %v2030 = vpop.f32.mrb[0].mxu0
        %v2031 = vadd.f32 0.0, %v2030
        %v2032 = vpop.f32.mrb[0].mxu0
        %v2033 = vadd.f32 0.0, %v2032
        %v2034 = vpop.f32.mrb[0].mxu0
        %v2035 = vadd.f32 0.0, %v2034
        %2036 = vmatprep.mubr.bf16.mxu0 0
        %2037 = vmatmul.mubr.bf16.gmra.mrb[0].mxu0 %v1974
        %v2038 = vpop.f32.mrb[0].mxu0
        %v2039 = vadd.f32 0.0, %v2038
        %v2040 = vpop.f32.mrb[0].mxu0
        %v2041 = vadd.f32 0.0, %v2040
        %v2042 = vpop.f32.mrb[0].mxu0
        %v2043 = vadd.f32 0.0, %v2042
        %v2044 = vpop.f32.mrb[0].mxu0
        %v2045 = vadd.f32 0.0, %v2044
        %2046 = vmatprep.mubr.bf16.mxu0 0
        %2047 = vmatmul.mubr.bf16.gmra.mrb[0].mxu0 %v1977
        %v2048 = vpop.f32.mrb[0].mxu0
        %v2049 = vadd.f32 0.0, %v2048
        %v2050 = vpop.f32.mrb[0].mxu0
        %v2051 = vadd.f32 0.0, %v2050
        %v2052 = vpop.f32.mrb[0].mxu0
        %v2053 = vadd.f32 0.0, %v2052
        %v2054 = vpop.f32.mrb[0].mxu0
        %v2055 = vadd.f32 0.0, %v2054
        %2056 = vmatprep.mubr.bf16.mxu0 0
        %2057 = vmatmul.mubr.bf16.gmra.mrb[0].mxu0 %v1980
        %v2058 = vpop.f32.mrb[0].mxu0
        %v2059 = vadd.f32 0.0, %v2058
        %v2060 = vpop.f32.mrb[0].mxu0
        %v2061 = vadd.f32 0.0, %v2060
        %v2062 = vpop.f32.mrb[0].mxu0
        %v2063 = vadd.f32 0.0, %v2062
        %v2064 = vpop.f32.mrb[0].mxu0
        %v2065 = vadd.f32 0.0, %v2064
        %2066 = vmatprep.mubr.bf16.mxu0 0
        %2067 = vmatmul.mubr.bf16.gmra.mrb[0].mxu0 %v1983
        %v2068 = vpop.f32.mrb[0].mxu0
        %v2069 = vadd.f32 0.0, %v2068
        %v2070 = vpop.f32.mrb[0].mxu0
        %v2071 = vadd.f32 0.0, %v2070
        %v2072 = vpop.f32.mrb[0].mxu0
        %v2073 = vadd.f32 0.0, %v2072
        %v2074 = vpop.f32.mrb[0].mxu0
        %v2075 = vadd.f32 0.0, %v2074
        %2076 = vmatprep.mubr.bf16.mxu0 0
        %2077 = vmatmul.mubr.bf16.gmra.mrb[0].mxu0 %v1986
        %v2078 = vpop.f32.mrb[0].mxu0
        %v2079 = vadd.f32 0.0, %v2078
        %v2080 = vpop.f32.mrb[0].mxu0
        %v2081 = vadd.f32 0.0, %v2080
        %v2082 = vpop.f32.mrb[0].mxu0
        %v2083 = vadd.f32 0.0, %v2082
        %v2084 = vpop.f32.mrb[0].mxu0
        %v2085 = vadd.f32 0.0, %v2084
        %2086 = vmatprep.mubr.bf16.mxu0 0
        %2087 = vmatmul.mubr.bf16.gmra.mrb[0].mxu0 %v1989
        %v2088 = vpop.f32.mrb[0].mxu0
        %v2089 = vadd.f32 0.0, %v2088
        %v2090 = vpop.f32.mrb[0].mxu0
        %v2091 = vadd.f32 0.0, %v2090
        %v2092 = vpop.f32.mrb[0].mxu0
        %v2093 = vadd.f32 0.0, %v2092
        %v2094 = vpop.f32.mrb[0].mxu0
        %v2095 = vadd.f32 0.0, %v2094
        %2096 = vmatprep.mubr.bf16.mxu0 0
        %2097 = vmatmul.mubr.bf16.gmra.mrb[0].mxu0 %v1992
        %v2098 = vpop.f32.mrb[0].mxu0
        %v2099 = vadd.f32 0.0, %v2098
        %v2100 = vpop.f32.mrb[0].mxu0
        %v2101 = vadd.f32 0.0, %v2100
        %v2102 = vpop.f32.mrb[0].mxu0
        %v2103 = vadd.f32 0.0, %v2102
        %v2104 = vpop.f32.mrb[0].mxu0
        %v2105 = vadd.f32 0.0, %v2104
        %2106 = vdwg.mxu0
        %2107 = vmatprep.subr.bf16.mxu0 %v1924
        %2108 = vmatpush1.bf16.msra.mxu0 %v1923
        %2109 = vmatprep.subr.bf16.mxu0 %v1930
        %2110 = vmatpush1.bf16.msra.mxu0 %v1929
        %2111 = vmatprep.subr.bf16.mxu0 %v1936
        %2112 = vmatpush1.bf16.msra.mxu0 %v1935
        %2113 = vmatprep.subr.bf16.mxu0 %v1942
        %2114 = vmatpush1.bf16.msra.mxu0 %v1941
        %2115 = vmatprep.subr.bf16.mxu0 0
        %2116 = vmatpush1.bf16.msra.mxu0 0
        %2117 = vmatprep.subr.bf16.mxu0 0
        %2118 = vmatpush1.bf16.msra.mxu0 0
        %2119 = vmatprep.subr.bf16.mxu0 0
        %2120 = vmatpush1.bf16.msra.mxu0 0
        %2121 = vmatprep.subr.bf16.mxu0 0
        %2122 = vmatpush1.bf16.msra.mxu0 0
        %2123 = vmatprep.subr.bf16.mxu0 0
        %2124 = vmatpush1.bf16.msra.mxu0 0
        %2125 = vmatprep.subr.bf16.mxu0 0
        %2126 = vmatpush1.bf16.msra.mxu0 0
        %2127 = vmatprep.subr.bf16.mxu0 0
        %2128 = vmatpush1.bf16.msra.mxu0 0
        %2129 = vmatprep.subr.bf16.mxu0 0
        %2130 = vmatpush1.bf16.msra.mxu0 0
        %2131 = vmatprep.subr.bf16.mxu0 0
        %2132 = vmatpush1.bf16.msra.mxu0 0
        %2133 = vmatprep.subr.bf16.mxu0 0
        %2134 = vmatpush1.bf16.msra.mxu0 0
        %2135 = vmatprep.subr.bf16.mxu0 0
        %2136 = vmatpush1.bf16.msra.mxu0 0
        %2137 = vmatprep.subr.bf16.mxu0 0
        %2138 = vmatpush1.bf16.msra.mxu0 0
        %2139 = vmatprep.mubr.bf16.mxu0 0
        %2140 = vmatmul.mubr.bf16.gmra.mrb[0].mxu0 %v1971
        %v2141 = vpop.f32.mrb[0].mxu0
        %v2142 = vadd.f32 0.0, %v2141
        %v2143 = vpop.f32.mrb[0].mxu0
        %v2144 = vadd.f32 0.0, %v2143
        %v2145 = vpop.f32.mrb[0].mxu0
        %v2146 = vadd.f32 0.0, %v2145
        %v2147 = vpop.f32.mrb[0].mxu0
        %v2148 = vadd.f32 0.0, %v2147
        %2149 = vmatprep.mubr.bf16.mxu0 0
        %2150 = vmatmul.mubr.bf16.gmra.mrb[0].mxu0 %v1974
        %v2151 = vpop.f32.mrb[0].mxu0
        %v2152 = vadd.f32 0.0, %v2151
        %v2153 = vpop.f32.mrb[0].mxu0
        %v2154 = vadd.f32 0.0, %v2153
        %v2155 = vpop.f32.mrb[0].mxu0
        %v2156 = vadd.f32 0.0, %v2155
        %v2157 = vpop.f32.mrb[0].mxu0
        %v2158 = vadd.f32 0.0, %v2157
        %2159 = vmatprep.mubr.bf16.mxu0 0
        %2160 = vmatmul.mubr.bf16.gmra.mrb[0].mxu0 %v1977
        %v2161 = vpop.f32.mrb[0].mxu0
        %v2162 = vadd.f32 0.0, %v2161
        %v2163 = vpop.f32.mrb[0].mxu0
        %v2164 = vadd.f32 0.0, %v2163
        %v2165 = vpop.f32.mrb[0].mxu0
        %v2166 = vadd.f32 0.0, %v2165
        %v2167 = vpop.f32.mrb[0].mxu0
        %v2168 = vadd.f32 0.0, %v2167
        %2169 = vmatprep.mubr.bf16.mxu0 0
        %2170 = vmatmul.mubr.bf16.gmra.mrb[0].mxu0 %v1980
        %v2171 = vpop.f32.mrb[0].mxu0
        %v2172 = vadd.f32 0.0, %v2171
        %v2173 = vpop.f32.mrb[0].mxu0
        %v2174 = vadd.f32 0.0, %v2173
        %v2175 = vpop.f32.mrb[0].mxu0
        %v2176 = vadd.f32 0.0, %v2175
        %v2177 = vpop.f32.mrb[0].mxu0
        %v2178 = vadd.f32 0.0, %v2177
        %2179 = vmatprep.mubr.bf16.mxu0 0
        %2180 = vmatmul.mubr.bf16.gmra.mrb[0].mxu0 %v1983
        %v2181 = vpop.f32.mrb[0].mxu0
        %v2182 = vadd.f32 0.0, %v2181
        %v2183 = vpop.f32.mrb[0].mxu0
        %v2184 = vadd.f32 0.0, %v2183
        %v2185 = vpop.f32.mrb[0].mxu0
        %v2186 = vadd.f32 0.0, %v2185
        %v2187 = vpop.f32.mrb[0].mxu0
        %v2188 = vadd.f32 0.0, %v2187
        %2189 = vmatprep.mubr.bf16.mxu0 0
        %2190 = vmatmul.mubr.bf16.gmra.mrb[0].mxu0 %v1986
        %v2191 = vpop.f32.mrb[0].mxu0
        %v2192 = vadd.f32 0.0, %v2191
        %v2193 = vpop.f32.mrb[0].mxu0
        %v2194 = vadd.f32 0.0, %v2193
        %v2195 = vpop.f32.mrb[0].mxu0
        %v2196 = vadd.f32 0.0, %v2195
        %v2197 = vpop.f32.mrb[0].mxu0
        %v2198 = vadd.f32 0.0, %v2197
        %2199 = vmatprep.mubr.bf16.mxu0 0
        %2200 = vmatmul.mubr.bf16.gmra.mrb[0].mxu0 %v1989
        %v2201 = vpop.f32.mrb[0].mxu0
        %v2202 = vadd.f32 0.0, %v2201
        %v2203 = vpop.f32.mrb[0].mxu0
        %v2204 = vadd.f32 0.0, %v2203
        %v2205 = vpop.f32.mrb[0].mxu0
        %v2206 = vadd.f32 0.0, %v2205
        %v2207 = vpop.f32.mrb[0].mxu0
        %v2208 = vadd.f32 0.0, %v2207
        %2209 = vmatprep.mubr.bf16.mxu0 0
        %2210 = vmatmul.mubr.bf16.gmra.mrb[0].mxu0 %v1992
        %v2211 = vpop.f32.mrb[0].mxu0
        %v2212 = vadd.f32 0.0, %v2211
        %v2213 = vpop.f32.mrb[0].mxu0
        %v2214 = vadd.f32 0.0, %v2213
        %v2215 = vpop.f32.mrb[0].mxu0
        %v2216 = vadd.f32 0.0, %v2215
        %v2217 = vpop.f32.mrb[0].mxu0
        %v2218 = vadd.f32 0.0, %v2217
        %2219 = vdwg.mxu0
        %2220 = vmatprep.subr.bf16.mxu0 %v1926
        %2221 = vmatpush1.bf16.msra.mxu0 %v1925
        %2222 = vmatprep.subr.bf16.mxu0 %v1932
        %2223 = vmatpush1.bf16.msra.mxu0 %v1931
        %2224 = vmatprep.subr.bf16.mxu0 %v1938
        %2225 = vmatpush1.bf16.msra.mxu0 %v1937
        %2226 = vmatprep.subr.bf16.mxu0 %v1944
        %2227 = vmatpush1.bf16.msra.mxu0 %v1943
        %2228 = vmatprep.subr.bf16.mxu0 0
        %2229 = vmatpush1.bf16.msra.mxu0 0
        %2230 = vmatprep.subr.bf16.mxu0 0
        %2231 = vmatpush1.bf16.msra.mxu0 0
        %2232 = vmatprep.subr.bf16.mxu0 0
        %2233 = vmatpush1.bf16.msra.mxu0 0
        %2234 = vmatprep.subr.bf16.mxu0 0
        %2235 = vmatpush1.bf16.msra.mxu0 0
        %2236 = vmatprep.subr.bf16.mxu0 0
        %2237 = vmatpush1.bf16.msra.mxu0 0
        %2238 = vmatprep.subr.bf16.mxu0 0
        %2239 = vmatpush1.bf16.msra.mxu0 0
        %2240 = vmatprep.subr.bf16.mxu0 0
        %2241 = vmatpush1.bf16.msra.mxu0 0
        %2242 = vmatprep.subr.bf16.mxu0 0
        %2243 = vmatpush1.bf16.msra.mxu0 0
        %2244 = vmatprep.subr.bf16.mxu0 0
        %2245 = vmatpush1.bf16.msra.mxu0 0
        %2246 = vmatprep.subr.bf16.mxu0 0
        %2247 = vmatpush1.bf16.msra.mxu0 0
        %2248 = vmatprep.subr.bf16.mxu0 0
        %2249 = vmatpush1.bf16.msra.mxu0 0
        %2250 = vmatprep.subr.bf16.mxu0 0
        %2251 = vmatpush1.bf16.msra.mxu0 0
        %2252 = vmatprep.mubr.bf16.mxu0 0
        %2253 = vmatmul.mubr.bf16.gmra.mrb[0].mxu0 %v1971
        %v2254 = vpop.f32.mrb[0].mxu0
        %v2255 = vadd.f32 0.0, %v2254
        %v2256 = vpop.f32.mrb[0].mxu0
        %v2257 = vadd.f32 0.0, %v2256
        %v2258 = vpop.f32.mrb[0].mxu0
        %v2259 = vadd.f32 0.0, %v2258
        %v2260 = vpop.f32.mrb[0].mxu0
        %v2261 = vadd.f32 0.0, %v2260
        %2262 = vmatprep.mubr.bf16.mxu0 0
        %2263 = vmatmul.mubr.bf16.gmra.mrb[0].mxu0 %v1974
        %v2264 = vpop.f32.mrb[0].mxu0
        %v2265 = vadd.f32 0.0, %v2264
        %v2266 = vpop.f32.mrb[0].mxu0
        %v2267 = vadd.f32 0.0, %v2266
        %v2268 = vpop.f32.mrb[0].mxu0
        %v2269 = vadd.f32 0.0, %v2268
        %v2270 = vpop.f32.mrb[0].mxu0
        %v2271 = vadd.f32 0.0, %v2270
        %2272 = vmatprep.mubr.bf16.mxu0 0
        %2273 = vmatmul.mubr.bf16.gmra.mrb[0].mxu0 %v1977
        %v2274 = vpop.f32.mrb[0].mxu0
        %v2275 = vadd.f32 0.0, %v2274
        %v2276 = vpop.f32.mrb[0].mxu0
        %v2277 = vadd.f32 0.0, %v2276
        %v2278 = vpop.f32.mrb[0].mxu0
        %v2279 = vadd.f32 0.0, %v2278
        %v2280 = vpop.f32.mrb[0].mxu0
        %v2281 = vadd.f32 0.0, %v2280
        %2282 = vmatprep.mubr.bf16.mxu0 0
        %2283 = vmatmul.mubr.bf16.gmra.mrb[0].mxu0 %v1980
        %v2284 = vpop.f32.mrb[0].mxu0
        %v2285 = vadd.f32 0.0, %v2284
        %v2286 = vpop.f32.mrb[0].mxu0
        %v2287 = vadd.f32 0.0, %v2286
        %v2288 = vpop.f32.mrb[0].mxu0
        %v2289 = vadd.f32 0.0, %v2288
        %v2290 = vpop.f32.mrb[0].mxu0
        %v2291 = vadd.f32 0.0, %v2290
        %2292 = vmatprep.mubr.bf16.mxu0 0
        %2293 = vmatmul.mubr.bf16.gmra.mrb[0].mxu0 %v1983
        %v2294 = vpop.f32.mrb[0].mxu0
        %v2295 = vadd.f32 0.0, %v2294
        %v2296 = vpop.f32.mrb[0].mxu0
        %v2297 = vadd.f32 0.0, %v2296
        %v2298 = vpop.f32.mrb[0].mxu0
        %v2299 = vadd.f32 0.0, %v2298
        %v2300 = vpop.f32.mrb[0].mxu0
        %v2301 = vadd.f32 0.0, %v2300
        %2302 = vmatprep.mubr.bf16.mxu0 0
        %2303 = vmatmul.mubr.bf16.gmra.mrb[0].mxu0 %v1986
        %v2304 = vpop.f32.mrb[0].mxu0
        %v2305 = vadd.f32 0.0, %v2304
        %v2306 = vpop.f32.mrb[0].mxu0
        %v2307 = vadd.f32 0.0, %v2306
        %v2308 = vpop.f32.mrb[0].mxu0
        %v2309 = vadd.f32 0.0, %v2308
        %v2310 = vpop.f32.mrb[0].mxu0
        %v2311 = vadd.f32 0.0, %v2310
        %2312 = vmatprep.mubr.bf16.mxu0 0
        %2313 = vmatmul.mubr.bf16.gmra.mrb[0].mxu0 %v1989
        %v2314 = vpop.f32.mrb[0].mxu0
        %v2315 = vadd.f32 0.0, %v2314
        %v2316 = vpop.f32.mrb[0].mxu0
        %v2317 = vadd.f32 0.0, %v2316
        %v2318 = vpop.f32.mrb[0].mxu0
        %v2319 = vadd.f32 0.0, %v2318
        %v2320 = vpop.f32.mrb[0].mxu0
        %v2321 = vadd.f32 0.0, %v2320
        %2322 = vmatprep.mubr.bf16.mxu0 0
        %2323 = vmatmul.mubr.bf16.gmra.mrb[0].mxu0 %v1992
        %v2324 = vpop.f32.mrb[0].mxu0
        %v2325 = vadd.f32 0.0, %v2324
        %v2326 = vpop.f32.mrb[0].mxu0
        %v2327 = vadd.f32 0.0, %v2326
        %v2328 = vpop.f32.mrb[0].mxu0
        %v2329 = vadd.f32 0.0, %v2328
        %v2330 = vpop.f32.mrb[0].mxu0
        %v2331 = vadd.f32 0.0, %v2330
        %2332 = vdwg.mxu0
        %2333 = vst [vmem:[#allocation2] sm:$0xff] %v2029
        %2334 = vst [vmem:[#allocation2 + $0x8] sm:$0xff] %v2031
        %2335 = vst [vmem:[#allocation2 + $0x10] sm:$0xff] %v2142
        %2336 = vst [vmem:[#allocation2 + $0x18] sm:$0xff] %v2144
        %2337 = vst [vmem:[#allocation2 + $0x20] sm:$0xff] %v2255
        %2338 = vst [vmem:[#allocation2 + $0x28] sm:$0xff] %v2257
        %2339 = vst [vmem:[#allocation2 + $0x30] sm:$0xff] %v2033
        %2340 = vst [vmem:[#allocation2 + $0x38] sm:$0xff] %v2035
        %2341 = vst [vmem:[#allocation2 + $0x40] sm:$0xff] %v2146
        %2342 = vst [vmem:[#allocation2 + $0x48] sm:$0xff] %v2148
        %2343 = vst [vmem:[#allocation2 + $0x50] sm:$0xff] %v2259
        %2344 = vst [vmem:[#allocation2 + $0x58] sm:$0xff] %v2261
        %2345 = vst [vmem:[#allocation2 + $0x60] sm:$0xff] %v2039
        %2346 = vst [vmem:[#allocation2 + $0x68] sm:$0xff] %v2041
        %2347 = vst [vmem:[#allocation2 + $0x70] sm:$0xff] %v2152
        %2348 = vst [vmem:[#allocation2 + $0x78] sm:$0xff] %v2154
        %2349 = vst [vmem:[#allocation2 + $0x80] sm:$0xff] %v2265
        %2350 = vst [vmem:[#allocation2 + $0x88] sm:$0xff] %v2267
        %2351 = vst [vmem:[#allocation2 + $0x90] sm:$0xff] %v2043
        %2352 = vst [vmem:[#allocation2 + $0x98] sm:$0xff] %v2045
        %2353 = vst [vmem:[#allocation2 + $0xa0] sm:$0xff] %v2156
        %2354 = vst [vmem:[#allocation2 + $0xa8] sm:$0xff] %v2158
        %2355 = vst [vmem:[#allocation2 + $0xb0] sm:$0xff] %v2269
        %2356 = vst [vmem:[#allocation2 + $0xb8] sm:$0xff] %v2271
        %2357 = vst [vmem:[#allocation2 + $0xc0] sm:$0xff] %v2049
        %2358 = vst [vmem:[#allocation2 + $0xc8] sm:$0xff] %v2051
        %2359 = vst [vmem:[#allocation2 + $0xd0] sm:$0xff] %v2162
        %2360 = vst [vmem:[#allocation2 + $0xd8] sm:$0xff] %v2164
        %2361 = vst [vmem:[#allocation2 + $0xe0] sm:$0xff] %v2275
        %2362 = vst [vmem:[#allocation2 + $0xe8] sm:$0xff] %v2277
        %2363 = vst [vmem:[#allocation2 + $0xf0] sm:$0xff] %v2053
        %2364 = vst [vmem:[#allocation2 + $0xf8] sm:$0xff] %v2055
        %2365 = vst [vmem:[#allocation2 + $0x100] sm:$0xff] %v2166
        %2366 = vst [vmem:[#allocation2 + $0x108] sm:$0xff] %v2168
        %2367 = vst [vmem:[#allocation2 + $0x110] sm:$0xff] %v2279
        %2368 = vst [vmem:[#allocation2 + $0x118] sm:$0xff] %v2281
        %2369 = vst [vmem:[#allocation2 + $0x120] sm:$0xff] %v2059
        %2370 = vst [vmem:[#allocation2 + $0x128] sm:$0xff] %v2061
        %2371 = vst [vmem:[#allocation2 + $0x130] sm:$0xff] %v2172
        %2372 = vst [vmem:[#allocation2 + $0x138] sm:$0xff] %v2174
        %2373 = vst [vmem:[#allocation2 + $0x140] sm:$0xff] %v2285
        %2374 = vst [vmem:[#allocation2 + $0x148] sm:$0xff] %v2287
        %2375 = vst [vmem:[#allocation2 + $0x150] sm:$0xff] %v2063
        %2376 = vst [vmem:[#allocation2 + $0x158] sm:$0xff] %v2065
        %2377 = vst [vmem:[#allocation2 + $0x160] sm:$0xff] %v2176
        %2378 = vst [vmem:[#allocation2 + $0x168] sm:$0xff] %v2178
        %2379 = vst [vmem:[#allocation2 + $0x170] sm:$0xff] %v2289
        %2380 = vst [vmem:[#allocation2 + $0x178] sm:$0xff] %v2291
        %2381 = vst [vmem:[#allocation2 + $0x180] sm:$0xff] %v2069
        %2382 = vst [vmem:[#allocation2 + $0x188] sm:$0xff] %v2071
        %2383 = vst [vmem:[#allocation2 + $0x190] sm:$0xff] %v2182
        %2384 = vst [vmem:[#allocation2 + $0x198] sm:$0xff] %v2184
        %2385 = vst [vmem:[#allocation2 + $0x1a0] sm:$0xff] %v2295
        %2386 = vst [vmem:[#allocation2 + $0x1a8] sm:$0xff] %v2297
        %2387 = vst [vmem:[#allocation2 + $0x1b0] sm:$0xff] %v2073
        %2388 = vst [vmem:[#allocation2 + $0x1b8] sm:$0xff] %v2075
        %2389 = vst [vmem:[#allocation2 + $0x1c0] sm:$0xff] %v2186
        %2390 = vst [vmem:[#allocation2 + $0x1c8] sm:$0xff] %v2188
        %2391 = vst [vmem:[#allocation2 + $0x1d0] sm:$0xff] %v2299
        %2392 = vst [vmem:[#allocation2 + $0x1d8] sm:$0xff] %v2301
        %2393 = vst [vmem:[#allocation2 + $0x1e0] sm:$0xff] %v2079
        %2394 = vst [vmem:[#allocation2 + $0x1e8] sm:$0xff] %v2081
        %2395 = vst [vmem:[#allocation2 + $0x1f0] sm:$0xff] %v2192
        %2396 = vst [vmem:[#allocation2 + $0x1f8] sm:$0xff] %v2194
        %2397 = vst [vmem:[#allocation2 + $0x200] sm:$0xff] %v2305
        %2398 = vst [vmem:[#allocation2 + $0x208] sm:$0xff] %v2307
        %2399 = vst [vmem:[#allocation2 + $0x210] sm:$0xff] %v2083
        %2400 = vst [vmem:[#allocation2 + $0x218] sm:$0xff] %v2085
        %2401 = vst [vmem:[#allocation2 + $0x220] sm:$0xff] %v2196
        %2402 = vst [vmem:[#allocation2 + $0x228] sm:$0xff] %v2198
        %2403 = vst [vmem:[#allocation2 + $0x230] sm:$0xff] %v2309
        %2404 = vst [vmem:[#allocation2 + $0x238] sm:$0xff] %v2311
        %2405 = vst [vmem:[#allocation2 + $0x240] sm:$0xff] %v2089
        %2406 = vst [vmem:[#allocation2 + $0x248] sm:$0xff] %v2091
        %2407 = vst [vmem:[#allocation2 + $0x250] sm:$0xff] %v2202
        %2408 = vst [vmem:[#allocation2 + $0x258] sm:$0xff] %v2204
        %2409 = vst [vmem:[#allocation2 + $0x260] sm:$0xff] %v2315
        %2410 = vst [vmem:[#allocation2 + $0x268] sm:$0xff] %v2317
        %2411 = vst [vmem:[#allocation2 + $0x270] sm:$0xff] %v2093
        %2412 = vst [vmem:[#allocation2 + $0x278] sm:$0xff] %v2095
        %2413 = vst [vmem:[#allocation2 + $0x280] sm:$0xff] %v2206
        %2414 = vst [vmem:[#allocation2 + $0x288] sm:$0xff] %v2208
        %2415 = vst [vmem:[#allocation2 + $0x290] sm:$0xff] %v2319
        %2416 = vst [vmem:[#allocation2 + $0x298] sm:$0xff] %v2321
        %2417 = vst [vmem:[#allocation2 + $0x2a0] sm:$0xff] %v2099
        %2418 = vst [vmem:[#allocation2 + $0x2a8] sm:$0xff] %v2101
        %2419 = vst [vmem:[#allocation2 + $0x2b0] sm:$0xff] %v2212
        %2420 = vst [vmem:[#allocation2 + $0x2b8] sm:$0xff] %v2214
        %2421 = vst [vmem:[#allocation2 + $0x2c0] sm:$0xff] %v2325
        %2422 = vst [vmem:[#allocation2 + $0x2c8] sm:$0xff] %v2327
        %2423 = vst [vmem:[#allocation2 + $0x2d0] sm:$0xff] %v2103
        %2424 = vst [vmem:[#allocation2 + $0x2d8] sm:$0xff] %v2105
        %2425 = vst [vmem:[#allocation2 + $0x2e0] sm:$0xff] %v2216
        %2426 = vst [vmem:[#allocation2 + $0x2e8] sm:$0xff] %v2218
        %2427 = vst [vmem:[#allocation2 + $0x2f0] sm:$0xff] %v2329
        %2428 = vst [vmem:[#allocation2 + $0x2f8] sm:$0xff] %v2331
        %s2429 = scalar_lea.vmem %s533, 16 [#allocation4]
        %v2430 = vld [vmem:[%s2429] sm:$0xff]
        %v2431 = vld [vmem:[%s2429 + $0x8] sm:$0xff]
        %v2432 = vpack.c.bf16 %v2431, %v2430
        %v2433 = vld [vmem:[%s2] sm:$0xf]
        %v2434 = vld [vmem:[%s2 + $0x4] sm:$0xf]
        %v2437 = vunpack.c.l.b16 %v2433
        %v2438 = vunpack.c.l.b16 %v2434
        %v2439 = vpack.c.b16 %v2438, %v2437
        %v2441 = vsel %vm1169, %v2439, 0
        %2443 = vmatprep.subr.bf16.mxu0 0
        %2444 = vmatpush1.bf16.msra.mxu0 %v2432
        %2445 = vmatprep.subr.bf16.mxu0 0
        %2446 = vmatpush1.bf16.msra.mxu0 0
        %2447 = vmatprep.subr.bf16.mxu0 0
        %2448 = vmatpush1.bf16.msra.mxu0 0
        %2449 = vmatprep.subr.bf16.mxu0 0
        %2450 = vmatpush1.bf16.msra.mxu0 0
        %2451 = vmatprep.subr.bf16.mxu0 0
        %2452 = vmatpush1.bf16.msra.mxu0 0
        %2453 = vmatprep.subr.bf16.mxu0 0
        %2454 = vmatpush1.bf16.msra.mxu0 0
        %2455 = vmatprep.subr.bf16.mxu0 0
        %2456 = vmatpush1.bf16.msra.mxu0 0
        %2457 = vmatprep.subr.bf16.mxu0 0
        %2458 = vmatpush1.bf16.msra.mxu0 0
        %2459 = vmatprep.subr.bf16.mxu0 0
        %2460 = vmatpush1.bf16.msra.mxu0 0
        %2461 = vmatprep.subr.bf16.mxu0 0
        %2462 = vmatpush1.bf16.msra.mxu0 0
        %2463 = vmatprep.subr.bf16.mxu0 0
        %2464 = vmatpush1.bf16.msra.mxu0 0
        %2465 = vmatprep.subr.bf16.mxu0 0
        %2466 = vmatpush1.bf16.msra.mxu0 0
        %2467 = vmatprep.subr.bf16.mxu0 0
        %2468 = vmatpush1.bf16.msra.mxu0 0
        %2469 = vmatprep.subr.bf16.mxu0 0
        %2470 = vmatpush1.bf16.msra.mxu0 0
        %2471 = vmatprep.subr.bf16.mxu0 0
        %2472 = vmatpush1.bf16.msra.mxu0 0
        %2473 = vmatprep.subr.bf16.mxu0 0
        %2474 = vmatpush1.bf16.msra.mxu0 0
        %2475 = vmatprep.mubr.bf16.mxu0 0
        %2476 = vmatmul.mubr.bf16.gmra.mrb[0].mxu0 %v2441
        %v2477 = vpop.f32.mrb[0].mxu0
        %v2478 = vadd.f32 0.0, %v2477
        %v2479 = vpop.f32.mrb[0].mxu0
        %v2480 = vpop.f32.mrb[0].mxu0
        %v2481 = vadd.f32 0.0, %v2480
        %v2482 = vpop.f32.mrb[0].mxu0
        %2483 = vdwg.mxu0
        %v2484 = vpack.c.bf16 %v2481, %v2478
        %2486 = vrot.lane.b32.xlu0 %v2484, 32
        %v2487 = vpop.permute.xlu0 %2486
        %v2490 = vsel %vm1218, %v2432, %v2487
        loop: start=0, step=1, limit=8
        $region126: #{encoder_forward.1} parent=113 // loop_pre_header
          _
        $region127: #{encoder_forward.1} parent=113 // loop_header
          %s2493 = sphi 0, %s2497
          %p2494 = scmp.ge.s32.totalorder %s2493, 8
          %v2498 = vphi %v2430, %v3073
          %v2499 = vphi %v2431, %v3075
          %v2500 = vphi %v2490, %v3068
        $region128: #{encoder_forward.1} parent=113 // loop_header_branch
          %2496 = sbr.rel (%p2494) target = $region132
        $region129: #{encoder_forward.1} parent=113 // loop_body
          %s2501 = smul.u32 %s2493, 16
          %s2502 = sshra.s32 %s2501, 3
          %s2503 = sand.u32 %s2501, 7
          %s2504 = smul.u32 %s2502, 6
          %s2505 = smul.addr %s2504, 8
          %s2506 = scalar_lea.vmem [#allocation2], %s2505
          %v2507 = vld [vmem:[%s2506] sm:$0xff]
          %v2508 = vld [vmem:[%s2506 + $0x8] sm:$0xff]
          %v2509 = vld [vmem:[%s2506 + $0x10] sm:$0xff]
          %v2510 = vld [vmem:[%s2506 + $0x18] sm:$0xff]
          %v2511 = vld [vmem:[%s2506 + $0x20] sm:$0xff]
          %v2512 = vld [vmem:[%s2506 + $0x28] sm:$0xff]
          %v2513 = vld [vmem:[%s2506 + $0x30] sm:$0xff]
          %v2514 = vld [vmem:[%s2506 + $0x38] sm:$0xff]
          %v2515 = vld [vmem:[%s2506 + $0x40] sm:$0xff]
          %v2516 = vld [vmem:[%s2506 + $0x48] sm:$0xff]
          %v2517 = vld [vmem:[%s2506 + $0x50] sm:$0xff]
          %v2518 = vld [vmem:[%s2506 + $0x58] sm:$0xff]
          %v2519 = vld [vmem:[%s11] sm:$0xff]
          %v2520 = vld [vmem:[%s11 + $0x8] sm:$0xff]
          %v2521 = vld [vmem:[%s11 + $0x10] sm:$0xff]
          %v2522 = vld [vmem:[%s11 + $0x18] sm:$0xff]
          %v2523 = vld [vmem:[%s11 + $0x20] sm:$0xff]
          %v2524 = vld [vmem:[%s11 + $0x28] sm:$0xff]
          %v2525 = vld [vmem:[%s11 + $0x30] sm:$0xff]
          %v2526 = vld [vmem:[%s11 + $0x38] sm:$0xff]
          %v2527 = vld [vmem:[%s11 + $0x40] sm:$0xff]
          %v2528 = vld [vmem:[%s11 + $0x48] sm:$0xff]
          %v2529 = vld [vmem:[%s11 + $0x50] sm:$0xff]
          %v2530 = vld [vmem:[%s11 + $0x58] sm:$0xff]
          %v2531 = vld [vmem:[%s11 + $0x60] sm:$0xff]
          %v2532 = vld [vmem:[%s11 + $0x68] sm:$0xff]
          %v2533 = vld [vmem:[%s11 + $0x70] sm:$0xff]
          %v2534 = vld [vmem:[%s11 + $0x78] sm:$0xff]
          %v2551 = vunpack.c.l.b16 %v2519
          %v2552 = vunpack.c.h.b16 %v2519
          %v2553 = vunpack.c.l.b16 %v2520
          %v2554 = vunpack.c.h.b16 %v2520
          %v2555 = vunpack.c.l.b16 %v2521
          %v2556 = vunpack.c.h.b16 %v2521
          %v2557 = vunpack.c.l.b16 %v2522
          %v2558 = vunpack.c.h.b16 %v2522
          %v2559 = vunpack.c.l.b16 %v2523
          %v2560 = vunpack.c.h.b16 %v2523
          %v2561 = vunpack.c.l.b16 %v2524
          %v2562 = vunpack.c.h.b16 %v2524
          %v2563 = vunpack.c.l.b16 %v2525
          %v2564 = vunpack.c.h.b16 %v2525
          %v2565 = vunpack.c.l.b16 %v2526
          %v2566 = vunpack.c.h.b16 %v2526
          %v2567 = vunpack.c.l.b16 %v2527
          %v2568 = vunpack.c.h.b16 %v2527
          %v2569 = vunpack.c.l.b16 %v2528
          %v2570 = vunpack.c.h.b16 %v2528
          %v2571 = vunpack.c.l.b16 %v2529
          %v2572 = vunpack.c.h.b16 %v2529
          %v2573 = vunpack.c.l.b16 %v2530
          %v2574 = vunpack.c.h.b16 %v2530
          %v2575 = vunpack.c.l.b16 %v2531
          %v2576 = vunpack.c.h.b16 %v2531
          %v2577 = vunpack.c.l.b16 %v2532
          %v2578 = vunpack.c.h.b16 %v2532
          %v2579 = vunpack.c.l.b16 %v2533
          %v2580 = vunpack.c.h.b16 %v2533
          %v2581 = vunpack.c.l.b16 %v2534
          %v2582 = vunpack.c.h.b16 %v2534
          %v2583 = vpack.c.b16 %v2555, %v2551
          %v2584 = vpack.c.b16 %v2556, %v2552
          %v2585 = vpack.c.b16 %v2557, %v2553
          %v2586 = vpack.c.b16 %v2558, %v2554
          %v2587 = vpack.c.b16 %v2563, %v2559
          %v2588 = vpack.c.b16 %v2564, %v2560
          %v2589 = vpack.c.b16 %v2565, %v2561
          %v2590 = vpack.c.b16 %v2566, %v2562
          %v2591 = vpack.c.b16 %v2571, %v2567
          %v2592 = vpack.c.b16 %v2572, %v2568
          %v2593 = vpack.c.b16 %v2573, %v2569
          %v2594 = vpack.c.b16 %v2574, %v2570
          %v2595 = vpack.c.b16 %v2579, %v2575
          %v2596 = vpack.c.b16 %v2580, %v2576
          %v2597 = vpack.c.b16 %v2581, %v2577
          %v2598 = vpack.c.b16 %v2582, %v2578
          %v2616 = vsel %vm1969, %v2500, 0
          %2618 = vmatprep.subr.bf16.mxu0 %v2584
          %2619 = vmatpush1.bf16.msra.mxu0 %v2583
          %2620 = vmatprep.subr.bf16.mxu0 %v2588
          %2621 = vmatpush1.bf16.msra.mxu0 %v2587
          %2622 = vmatprep.subr.bf16.mxu0 %v2592
          %2623 = vmatpush1.bf16.msra.mxu0 %v2591
          %2624 = vmatprep.subr.bf16.mxu0 %v2596
          %2625 = vmatpush1.bf16.msra.mxu0 %v2595
          %2626 = vmatprep.subr.bf16.mxu0 0
          %2627 = vmatpush1.bf16.msra.mxu0 0
          %2628 = vmatprep.subr.bf16.mxu0 0
          %2629 = vmatpush1.bf16.msra.mxu0 0
          %2630 = vmatprep.subr.bf16.mxu0 0
          %2631 = vmatpush1.bf16.msra.mxu0 0
          %2632 = vmatprep.subr.bf16.mxu0 0
          %2633 = vmatpush1.bf16.msra.mxu0 0
          %2634 = vmatprep.subr.bf16.mxu0 0
          %2635 = vmatpush1.bf16.msra.mxu0 0
          %2636 = vmatprep.subr.bf16.mxu0 0
          %2637 = vmatpush1.bf16.msra.mxu0 0
          %2638 = vmatprep.subr.bf16.mxu0 0
          %2639 = vmatpush1.bf16.msra.mxu0 0
          %2640 = vmatprep.subr.bf16.mxu0 0
          %2641 = vmatpush1.bf16.msra.mxu0 0
          %2642 = vmatprep.subr.bf16.mxu0 0
          %2643 = vmatpush1.bf16.msra.mxu0 0
          %2644 = vmatprep.subr.bf16.mxu0 0
          %2645 = vmatpush1.bf16.msra.mxu0 0
          %2646 = vmatprep.subr.bf16.mxu0 0
          %2647 = vmatpush1.bf16.msra.mxu0 0
          %2648 = vmatprep.subr.bf16.mxu0 0
          %2649 = vmatpush1.bf16.msra.mxu0 0
          %2650 = vmatprep.mubr.bf16.mxu0 0
          %2651 = vmatmul.mubr.bf16.gmra.mrb[0].mxu0 %v2616
          %v2652 = vpop.f32.mrb[0].mxu0
          %v2653 = vadd.f32 0.0, %v2652
          %v2654 = vpop.f32.mrb[0].mxu0
          %v2655 = vadd.f32 0.0, %v2654
          %v2656 = vpop.f32.mrb[0].mxu0
          %v2657 = vadd.f32 0.0, %v2656
          %v2658 = vpop.f32.mrb[0].mxu0
          %v2659 = vadd.f32 0.0, %v2658
          %2660 = vdwg.mxu0
          %2661 = vmatprep.subr.bf16.mxu0 %v2586
          %2662 = vmatpush1.bf16.msra.mxu0 %v2585
          %2663 = vmatprep.subr.bf16.mxu0 %v2590
          %2664 = vmatpush1.bf16.msra.mxu0 %v2589
          %2665 = vmatprep.subr.bf16.mxu0 %v2594
          %2666 = vmatpush1.bf16.msra.mxu0 %v2593
          %2667 = vmatprep.subr.bf16.mxu0 %v2598
          %2668 = vmatpush1.bf16.msra.mxu0 %v2597
          %2669 = vmatprep.subr.bf16.mxu0 0
          %2670 = vmatpush1.bf16.msra.mxu0 0
          %2671 = vmatprep.subr.bf16.mxu0 0
          %2672 = vmatpush1.bf16.msra.mxu0 0
          %2673 = vmatprep.subr.bf16.mxu0 0
          %2674 = vmatpush1.bf16.msra.mxu0 0
          %2675 = vmatprep.subr.bf16.mxu0 0
          %2676 = vmatpush1.bf16.msra.mxu0 0
          %2677 = vmatprep.subr.bf16.mxu0 0
          %2678 = vmatpush1.bf16.msra.mxu0 0
          %2679 = vmatprep.subr.bf16.mxu0 0
          %2680 = vmatpush1.bf16.msra.mxu0 0
          %2681 = vmatprep.subr.bf16.mxu0 0
          %2682 = vmatpush1.bf16.msra.mxu0 0
          %2683 = vmatprep.subr.bf16.mxu0 0
          %2684 = vmatpush1.bf16.msra.mxu0 0
          %2685 = vmatprep.subr.bf16.mxu0 0
          %2686 = vmatpush1.bf16.msra.mxu0 0
          %2687 = vmatprep.subr.bf16.mxu0 0
          %2688 = vmatpush1.bf16.msra.mxu0 0
          %2689 = vmatprep.subr.bf16.mxu0 0
          %2690 = vmatpush1.bf16.msra.mxu0 0
          %2691 = vmatprep.subr.bf16.mxu0 0
          %2692 = vmatpush1.bf16.msra.mxu0 0
          %2693 = vmatprep.mubr.bf16.mxu0 0
          %2694 = vmatmul.mubr.bf16.gmra.mrb[0].mxu0 %v2616
          %v2695 = vpop.f32.mrb[0].mxu0
          %v2696 = vadd.f32 0.0, %v2695
          %v2697 = vpop.f32.mrb[0].mxu0
          %v2698 = vadd.f32 0.0, %v2697
          %v2699 = vpop.f32.mrb[0].mxu0
          %v2700 = vadd.f32 0.0, %v2699
          %v2701 = vpop.f32.mrb[0].mxu0
          %v2702 = vadd.f32 0.0, %v2701
          %2703 = vdwg.mxu0
          %v2704 = vadd.f32 %v2507, %v2653
          %v2705 = vadd.f32 %v2508, %v2655
          %v2706 = vadd.f32 %v2509, %v2696
          %v2707 = vadd.f32 %v2510, %v2698
          %v2708 = vadd.f32 %v2513, %v2657
          %v2709 = vadd.f32 %v2514, %v2659
          %v2710 = vadd.f32 %v2515, %v2700
          %v2711 = vadd.f32 %v2516, %v2702
          %v2712 = vld [vmem:[%s13] sm:$0xff]
          %v2713 = vld [vmem:[%s13 + $0x8] sm:$0xff]
          %v2714 = vld [vmem:[%s3] sm:$0xff]
          %v2715 = vld [vmem:[%s3 + $0x8] sm:$0xff]
          %v2716 = vld [vmem:[%s3 + $0x10] sm:$0xff]
          %v2717 = vld [vmem:[%s3 + $0x18] sm:$0xff]
          %v2718 = vld [vmem:[%s3 + $0x20] sm:$0xff]
          %v2719 = vld [vmem:[%s3 + $0x28] sm:$0xff]
          %v2720 = vld [vmem:[%s3 + $0x30] sm:$0xff]
          %v2721 = vld [vmem:[%s3 + $0x38] sm:$0xff]
          %v2722 = vmul.f32 %v2704, %v2714
          %v2723 = vmul.f32 %v2705, %v2715
          %v2724 = vmul.f32 %v2706, %v2716
          %v2725 = vmul.f32 %v2707, %v2717
          %v2726 = vmul.f32 %v2708, %v2718
          %v2727 = vmul.f32 %v2709, %v2719
          %v2728 = vmul.f32 %v2710, %v2720
          %v2729 = vmul.f32 %v2711, %v2721
          %2730 = vrot.lane.b32.xlu0 %v2722, 64
          %v2731 = vpop.permute.xlu0 %2730
          %2732 = vrot.lane.b32.xlu0 %v2726, 64
          %v2733 = vpop.permute.xlu0 %2732
          %2734 = vrot.lane.b32.xlu0 %v2723, 64
          %v2735 = vpop.permute.xlu0 %2734
          %2736 = vrot.lane.b32.xlu0 %v2727, 64
          %v2737 = vpop.permute.xlu0 %2736
          %2738 = vrot.lane.b32.xlu0 %v2724, 64
          %v2739 = vpop.permute.xlu0 %2738
          %2740 = vrot.lane.b32.xlu0 %v2728, 64
          %v2741 = vpop.permute.xlu0 %2740
          %2742 = vrot.lane.b32.xlu0 %v2725, 64
          %v2743 = vpop.permute.xlu0 %2742
          %2744 = vrot.lane.b32.xlu0 %v2729, 64
          %v2745 = vpop.permute.xlu0 %2744
          %v2746 = vlaneseq
          %v2747 = vand.u32 %v2746, 127
          %vm2748 = vcmp.lt.s32.totalorder %v2747, 64
          %v2749 = vsel %vm2748, %v2739, %v2743
          %v2750 = vsel %vm2748, %v2741, %v2745
          %v2751 = vsel %vm2748, %v2735, %v2739
          %v2752 = vsel %vm2748, %v2737, %v2741
          %v2753 = vsel %vm2748, %v2731, %v2735
          %v2754 = vsel %vm2748, %v2733, %v2737
          %v2755 = vsel %vm2748, %v2743, %v2731
          %v2756 = vsel %vm2748, %v2745, %v2733
          %v2757 = vadd.f32 %v2722, %v2755
          %v2758 = vadd.f32 %v2723, %v2753
          %v2759 = vadd.f32 %v2724, %v2751
          %v2760 = vadd.f32 %v2725, %v2749
          %v2761 = vadd.f32 %v2726, %v2756
          %v2762 = vadd.f32 %v2727, %v2754
          %v2763 = vadd.f32 %v2728, %v2752
          %v2764 = vadd.f32 %v2729, %v2750
          %v2765 = vadd.f32 %v2757, %v2760
          %v2766 = vadd.f32 %v2759, %v2758
          %v2767 = vadd.f32 %v2761, %v2764
          %v2768 = vadd.f32 %v2763, %v2762
          %v2769 = vadd.f32 %v2765, %v2766
          %v2770 = vadd.f32 %v2767, %v2768
          %v2771 = vadd.f32 %v2712, %v2769
          %v2772 = vadd.f32 %v2713, %v2770
          %v2773 = vxor.u32 %v2771, 2147483648
          %v2774 = vxor.u32 %v2772, 2147483648
          %v2775 = vmul.f32 %v2773, 1.442695
          %v2776 = vpow.pop %v2775
          %v2777 = vmul.f32 %v2774, 1.442695
          %v2778 = vpow.pop %v2777
          %v2779 = vadd.f32 %v2776, 1.0
          %v2780 = vadd.f32 %v2778, 1.0
          %v2781 = vrcp.pop %v2779
          %v2782 = vmul.f32 1.0, %v2781
          %v2783 = vrcp.pop %v2780
          %v2784 = vmul.f32 1.0, %v2783
          %v2785 = vmul.f32 %v2782, %v2498
          %v2786 = vmul.f32 %v2784, %v2499
          %v2787 = vpack.c.bf16 %v2786, %v2785
          %v2788 = vld [vmem:[%s2] sm:$0xf]
          %v2789 = vld [vmem:[%s2 + $0x4] sm:$0xf]
          %v2792 = vunpack.c.l.b16 %v2788
          %v2793 = vunpack.c.l.b16 %v2789
          %v2794 = vpack.c.b16 %v2793, %v2792
          %v2796 = vsel %vm1169, %v2794, 0
          %2798 = vmatprep.subr.bf16.mxu0 0
          %2799 = vmatpush1.bf16.msra.mxu0 %v2787
          %2800 = vmatprep.subr.bf16.mxu0 0
          %2801 = vmatpush1.bf16.msra.mxu0 0
          %2802 = vmatprep.subr.bf16.mxu0 0
          %2803 = vmatpush1.bf16.msra.mxu0 0
          %2804 = vmatprep.subr.bf16.mxu0 0
          %2805 = vmatpush1.bf16.msra.mxu0 0
          %2806 = vmatprep.subr.bf16.mxu0 0
          %2807 = vmatpush1.bf16.msra.mxu0 0
          %2808 = vmatprep.subr.bf16.mxu0 0
          %2809 = vmatpush1.bf16.msra.mxu0 0
          %2810 = vmatprep.subr.bf16.mxu0 0
          %2811 = vmatpush1.bf16.msra.mxu0 0
          %2812 = vmatprep.subr.bf16.mxu0 0
          %2813 = vmatpush1.bf16.msra.mxu0 0
          %2814 = vmatprep.subr.bf16.mxu0 0
          %2815 = vmatpush1.bf16.msra.mxu0 0
          %2816 = vmatprep.subr.bf16.mxu0 0
          %2817 = vmatpush1.bf16.msra.mxu0 0
          %2818 = vmatprep.subr.bf16.mxu0 0
          %2819 = vmatpush1.bf16.msra.mxu0 0
          %2820 = vmatprep.subr.bf16.mxu0 0
          %2821 = vmatpush1.bf16.msra.mxu0 0
          %2822 = vmatprep.subr.bf16.mxu0 0
          %2823 = vmatpush1.bf16.msra.mxu0 0
          %2824 = vmatprep.subr.bf16.mxu0 0
          %2825 = vmatpush1.bf16.msra.mxu0 0
          %2826 = vmatprep.subr.bf16.mxu0 0
          %2827 = vmatpush1.bf16.msra.mxu0 0
          %2828 = vmatprep.subr.bf16.mxu0 0
          %2829 = vmatpush1.bf16.msra.mxu0 0
          %2830 = vmatprep.mubr.bf16.mxu0 0
          %2831 = vmatmul.mubr.bf16.gmra.mrb[0].mxu0 %v2796
          %v2832 = vpop.f32.mrb[0].mxu0
          %v2833 = vadd.f32 0.0, %v2832
          %v2834 = vpop.f32.mrb[0].mxu0
          %v2835 = vpop.f32.mrb[0].mxu0
          %v2836 = vadd.f32 0.0, %v2835
          %v2837 = vpop.f32.mrb[0].mxu0
          %2838 = vdwg.mxu0
          %v2839 = vpack.c.bf16 %v2836, %v2833
          %2841 = vrot.lane.b32.xlu0 %v2839, 32
          %v2842 = vpop.permute.xlu0 %2841
          %v2845 = vsel %vm1218, %v2787, %v2842
          %v2846 = vld [vmem:[%s12] sm:$0xff]
          %v2847 = vld [vmem:[%s12 + $0x8] sm:$0xff]
          %v2848 = vld [vmem:[%s12 + $0x10] sm:$0xff]
          %v2849 = vld [vmem:[%s12 + $0x18] sm:$0xff]
          %v2850 = vld [vmem:[%s12 + $0x20] sm:$0xff]
          %v2851 = vld [vmem:[%s12 + $0x28] sm:$0xff]
          %v2852 = vld [vmem:[%s12 + $0x30] sm:$0xff]
          %v2853 = vld [vmem:[%s12 + $0x38] sm:$0xff]
          %v2862 = vunpack.c.l.b16 %v2846
          %v2863 = vunpack.c.h.b16 %v2846
          %v2864 = vunpack.c.l.b16 %v2847
          %v2865 = vunpack.c.h.b16 %v2847
          %v2866 = vunpack.c.l.b16 %v2848
          %v2867 = vunpack.c.h.b16 %v2848
          %v2868 = vunpack.c.l.b16 %v2849
          %v2869 = vunpack.c.h.b16 %v2849
          %v2870 = vunpack.c.l.b16 %v2850
          %v2871 = vunpack.c.h.b16 %v2850
          %v2872 = vunpack.c.l.b16 %v2851
          %v2873 = vunpack.c.h.b16 %v2851
          %v2874 = vunpack.c.l.b16 %v2852
          %v2875 = vunpack.c.h.b16 %v2852
          %v2876 = vunpack.c.l.b16 %v2853
          %v2877 = vunpack.c.h.b16 %v2853
          %v2878 = vpack.c.b16 %v2864, %v2862
          %v2879 = vpack.c.b16 %v2865, %v2863
          %v2880 = vpack.c.b16 %v2868, %v2866
          %v2881 = vpack.c.b16 %v2869, %v2867
          %v2882 = vpack.c.b16 %v2872, %v2870
          %v2883 = vpack.c.b16 %v2873, %v2871
          %v2884 = vpack.c.b16 %v2876, %v2874
          %v2885 = vpack.c.b16 %v2877, %v2875
          %v2894 = vsel %vm1969, %v2845, 0
          %2896 = vmatprep.subr.bf16.mxu0 %v2879
          %2897 = vmatpush1.bf16.msra.mxu0 %v2878
          %2898 = vmatprep.subr.bf16.mxu0 %v2881
          %2899 = vmatpush1.bf16.msra.mxu0 %v2880
          %2900 = vmatprep.subr.bf16.mxu0 %v2883
          %2901 = vmatpush1.bf16.msra.mxu0 %v2882
          %2902 = vmatprep.subr.bf16.mxu0 %v2885
          %2903 = vmatpush1.bf16.msra.mxu0 %v2884
          %2904 = vmatprep.subr.bf16.mxu0 0
          %2905 = vmatpush1.bf16.msra.mxu0 0
          %2906 = vmatprep.subr.bf16.mxu0 0
          %2907 = vmatpush1.bf16.msra.mxu0 0
          %2908 = vmatprep.subr.bf16.mxu0 0
          %2909 = vmatpush1.bf16.msra.mxu0 0
          %2910 = vmatprep.subr.bf16.mxu0 0
          %2911 = vmatpush1.bf16.msra.mxu0 0
          %2912 = vmatprep.subr.bf16.mxu0 0
          %2913 = vmatpush1.bf16.msra.mxu0 0
          %2914 = vmatprep.subr.bf16.mxu0 0
          %2915 = vmatpush1.bf16.msra.mxu0 0
          %2916 = vmatprep.subr.bf16.mxu0 0
          %2917 = vmatpush1.bf16.msra.mxu0 0
          %2918 = vmatprep.subr.bf16.mxu0 0
          %2919 = vmatpush1.bf16.msra.mxu0 0
          %2920 = vmatprep.subr.bf16.mxu0 0
          %2921 = vmatpush1.bf16.msra.mxu0 0
          %2922 = vmatprep.subr.bf16.mxu0 0
          %2923 = vmatpush1.bf16.msra.mxu0 0
          %2924 = vmatprep.subr.bf16.mxu0 0
          %2925 = vmatpush1.bf16.msra.mxu0 0
          %2926 = vmatprep.subr.bf16.mxu0 0
          %2927 = vmatpush1.bf16.msra.mxu0 0
          %2928 = vmatprep.mubr.bf16.mxu0 0
          %2929 = vmatmul.mubr.bf16.gmra.mrb[0].mxu0 %v2894
          %v2930 = vpop.f32.mrb[0].mxu0
          %v2931 = vadd.f32 0.0, %v2930
          %v2932 = vpop.f32.mrb[0].mxu0
          %v2933 = vadd.f32 0.0, %v2932
          %v2934 = vpop.f32.mrb[0].mxu0
          %v2935 = vadd.f32 0.0, %v2934
          %v2936 = vpop.f32.mrb[0].mxu0
          %v2937 = vadd.f32 0.0, %v2936
          %2938 = vdwg.mxu0
          %v2939 = vadd.f32 %v2511, %v2931
          %v2940 = vadd.f32 %v2512, %v2933
          %v2941 = vadd.f32 %v2517, %v2935
          %v2942 = vadd.f32 %v2518, %v2937
          %v2943 = vld [vmem:[%s14] sm:$0xff]
          %v2944 = vld [vmem:[%s14 + $0x8] sm:$0xff]
          %v2945 = vld [vmem:[%s4] sm:$0xff]
          %v2946 = vld [vmem:[%s4 + $0x8] sm:$0xff]
          %v2947 = vld [vmem:[%s4 + $0x10] sm:$0xff]
          %v2948 = vld [vmem:[%s4 + $0x18] sm:$0xff]
          %v2949 = vmul.f32 %v2939, %v2945
          %v2950 = vmul.f32 %v2940, %v2946
          %v2951 = vmul.f32 %v2941, %v2947
          %v2952 = vmul.f32 %v2942, %v2948
          %2953 = vrot.lane.b32.xlu0 %v2949, 32
          %v2954 = vpop.permute.xlu0 %2953
          %2955 = vrot.lane.b32.xlu0 %v2951, 32
          %v2956 = vpop.permute.xlu0 %2955
          %2957 = vrot.lane.b32.xlu0 %v2950, 32
          %v2958 = vpop.permute.xlu0 %2957
          %2959 = vrot.lane.b32.xlu0 %v2952, 32
          %v2960 = vpop.permute.xlu0 %2959
          %vm2961 = vcmp.lt.s32.totalorder %v2747, 32
          %v2962 = vsel %vm2961, %v2954, %v2958
          %v2963 = vsel %vm2961, %v2956, %v2960
          %v2964 = vsel %vm2961, %v2958, %v2954
          %v2965 = vsel %vm2961, %v2960, %v2956
          %v2966 = vadd.f32 %v2949, %v2964
          %v2967 = vadd.f32 %v2950, %v2962
          %v2968 = vadd.f32 %v2951, %v2965
          %v2969 = vadd.f32 %v2952, %v2963
          %2970 = vrot.lane.b32.xlu0 %v2966, 64
          %v2971 = vpop.permute.xlu0 %2970
          %2972 = vrot.lane.b32.xlu0 %v2968, 64
          %v2973 = vpop.permute.xlu0 %2972
          %2974 = vrot.lane.b32.xlu0 %v2967, 64
          %v2975 = vpop.permute.xlu0 %2974
          %2976 = vrot.lane.b32.xlu0 %v2969, 64
          %v2977 = vpop.permute.xlu0 %2976
          %v2978 = vsel %vm2748, %v2971, %v2975
          %v2979 = vsel %vm2748, %v2973, %v2977
          %v2980 = vsel %vm2748, %v2975, %v2971
          %v2981 = vsel %vm2748, %v2977, %v2973
          %v2982 = vadd.f32 %v2966, %v2980
          %v2983 = vadd.f32 %v2967, %v2978
          %v2984 = vadd.f32 %v2968, %v2981
          %v2985 = vadd.f32 %v2969, %v2979
          %v2986 = vadd.f32 %v2982, %v2983
          %v2987 = vadd.f32 %v2984, %v2985
          %v2988 = vadd.f32 %v2943, %v2986
          %v2989 = vadd.f32 %v2944, %v2987
          %v2990 = vtanh.pop %v2988
          %v2991 = vtanh.pop %v2989
          %2994 = vrot.lane.b32.xlu0 %v2498, 32
          %v2995 = vpop.permute.xlu0 %2994
          %2996 = vrot.lane.b32.xlu0 %v2499, 32
          %v2997 = vpop.permute.xlu0 %2996
          %v3000 = vmul.f32 %v2782, %v2995
          %v3001 = vmul.f32 %v2784, %v2997
          %v3002 = vsub.f32 1.0, %v2782
          %v3003 = vsub.f32 1.0, %v2784
          %3006 = vrot.lane.b32.xlu0 %v2990, 32
          %v3007 = vpop.permute.xlu0 %3006
          %3008 = vrot.lane.b32.xlu0 %v2991, 32
          %v3009 = vpop.permute.xlu0 %3008
          %v3012 = vmul.f32 %v3002, %v3007
          %v3013 = vmul.f32 %v3003, %v3009
          %v3014 = vadd.f32 %v3000, %v3012
          %v3015 = vadd.f32 %v3001, %v3013
          %v3016 = vpack.c.bf16 %v3015, %v3014
          %3018 = vrot.lane.b32.xlu0 %v3016, 96
          %v3019 = vpop.permute.xlu0 %3018
          %3021 = vmatprep.subr.bf16.mxu0 0
          %3022 = vmatpush1.bf16.msra.mxu0 %v3019
          %3023 = vmatprep.subr.bf16.mxu0 0
          %3024 = vmatpush1.bf16.msra.mxu0 0
          %3025 = vmatprep.subr.bf16.mxu0 0
          %3026 = vmatpush1.bf16.msra.mxu0 0
          %3027 = vmatprep.subr.bf16.mxu0 0
          %3028 = vmatpush1.bf16.msra.mxu0 0
          %3029 = vmatprep.subr.bf16.mxu0 0
          %3030 = vmatpush1.bf16.msra.mxu0 0
          %3031 = vmatprep.subr.bf16.mxu0 0
          %3032 = vmatpush1.bf16.msra.mxu0 0
          %3033 = vmatprep.subr.bf16.mxu0 0
          %3034 = vmatpush1.bf16.msra.mxu0 0
          %3035 = vmatprep.subr.bf16.mxu0 0
          %3036 = vmatpush1.bf16.msra.mxu0 0
          %3037 = vmatprep.subr.bf16.mxu0 0
          %3038 = vmatpush1.bf16.msra.mxu0 0
          %3039 = vmatprep.subr.bf16.mxu0 0
          %3040 = vmatpush1.bf16.msra.mxu0 0
          %3041 = vmatprep.subr.bf16.mxu0 0
          %3042 = vmatpush1.bf16.msra.mxu0 0
          %3043 = vmatprep.subr.bf16.mxu0 0
          %3044 = vmatpush1.bf16.msra.mxu0 0
          %3045 = vmatprep.subr.bf16.mxu0 0
          %3046 = vmatpush1.bf16.msra.mxu0 0
          %3047 = vmatprep.subr.bf16.mxu0 0
          %3048 = vmatpush1.bf16.msra.mxu0 0
          %3049 = vmatprep.subr.bf16.mxu0 0
          %3050 = vmatpush1.bf16.msra.mxu0 0
          %3051 = vmatprep.subr.bf16.mxu0 0
          %3052 = vmatpush1.bf16.msra.mxu0 0
          %3053 = vmatprep.mubr.bf16.mxu0 0
          %3054 = vmatmul.mubr.bf16.gmra.mrb[0].mxu0 %v2796
          %v3055 = vpop.f32.mrb[0].mxu0
          %v3056 = vadd.f32 0.0, %v3055
          %v3057 = vpop.f32.mrb[0].mxu0
          %v3058 = vpop.f32.mrb[0].mxu0
          %v3059 = vadd.f32 0.0, %v3058
          %v3060 = vpop.f32.mrb[0].mxu0
          %3061 = vdwg.mxu0
          %v3062 = vpack.c.bf16 %v3059, %v3056
          %3064 = vrot.lane.b32.xlu0 %v3062, 32
          %v3065 = vpop.permute.xlu0 %3064
          %v3068 = vsel %vm1218, %v3019, %v3065
          %3072 = vrot.lane.b32.xlu0 %v3014, 96
          %v3073 = vpop.permute.xlu0 %3072
          %3074 = vrot.lane.b32.xlu0 %v3015, 96
          %v3075 = vpop.permute.xlu0 %3074
          %s3078 = scalar_lea.vmem %s582, %s2501 [#allocation5]
          %3079 = vst.msk [vmem:[%s3078] sm:$0xff] %vm1218, %v3073
          %3080 = vst.msk [vmem:[%s3078 + $0x8] sm:$0xff] %vm1218, %v3075
        $region130: #{encoder_forward.1} parent=113 // loop_footer
          %s2497 = sadd.s32 1, %s2493
        $region131: #{encoder_forward.1} parent=113 // loop_footer_branch
          %2492 = sbr.rel target = $region127
        $region132: #{encoder_forward.1} parent=113 // loop_exit
          _
        %s3081 = scalar_lea.vmem %s588, 16 [#allocation7]
        %3082 = vst.msk [vmem:[%s3081] sm:$0xff] %vm1218, %v2498
        %3083 = vst.msk [vmem:[%s3081 + $0x8] sm:$0xff] %vm1218, %v2499
        %s3084 = sand.u32 %s364, 1
        %s3085 = scalar_lea.sflag [#allocation6], %s3084
        %s3086 = sand.u32 %s364, 1
        %s3087 = smul.addr %s3086, 128
        %s3088 = scalar_lea.vmem [#allocation5], %s3087
        %s3089 = sand.u32 %s390, 1
        %s3090 = sand.u32 %s390, 1
        %s3091 = smul.addr %s3090, 32
        %s3092 = scalar_lea.vmem [#allocation7], %s3091
        // Predicated region
        $region133: #{encoder_forward.1} parent=113 // pred_check
          %p3093 = pneg %p374
        $region134: #{encoder_forward.1} parent=113 // pred_check_branch
          %3095 = sbr.rel (%p3093) target = $region136
        $region135: #{encoder_forward.1} parent=113 // pred_region
          %s3097 = ssub.s32 2048, 2048
          %3098 = vsyncadd %s3085, %s3097
          %s3099 = smul.addr %s31, 16
          %s3100 = smul.addr %s3099, 128
          %s3101 = scalar_lea.hbm %s15, %s3100
          %s3102 = sshll.u32 %s3088, 4
          %s3103 = int_to_ptr.vmem [resolvable:$true] %s3102
          %3108 = dma.vmem_to_hbm [thread:$0]  %s3103, 2048, %s3101, %s3085, 128, 128, 8
        $region136: #{encoder_forward.1} parent=113 // pred_fallthru
          _
        // Predicated region
        $region137: #{encoder_forward.1} parent=113 // pred_check
          %p3109 = pneg %p400
        $region138: #{encoder_forward.1} parent=113 // pred_check_branch
          %3111 = sbr.rel (%p3109) target = $region140
        $region139: #{encoder_forward.1} parent=113 // pred_region
          %s3112 = smul.addr %s31, 2
          %s3113 = smul.addr %s3112, 8
          %s3114 = scalar_lea.vmem %s16, %s3113
          // Predicated region
          $region141: #{encoder_forward.1} parent=139 // pred_check
            _
          $region142: #{encoder_forward.1} parent=139 // pred_check_branch
            %3116 = sbr.rel (0) target = $region144
          $region143: #{encoder_forward.1} parent=139 // pred_region
            // Predicated region
            $region145: #{encoder_forward.1} parent=143 // pred_check
              _
            $region146: #{encoder_forward.1} parent=143 // pred_check_branch
              %3118 = sbr.rel (0) target = $region148
            $region147: #{encoder_forward.1} parent=143 // pred_region
              // Predicated region
              $region160: #{encoder_forward.1} parent=147 // pred_check
                _
              $region161: #{encoder_forward.1} parent=147 // pred_check_branch
                %3139 = sbr.rel (0) target = $region163
              $region162: #{encoder_forward.1} parent=147 // pred_region
                loop: start=0, step=1, limit=1
                $region164: #{encoder_forward.1} parent=162 // loop_pre_header
                  _
                $region165: #{encoder_forward.1} parent=162 // loop_header
                  %s3141 = sphi 0, %s3145
                  %p3142 = scmp.ge.s32.totalorder %s3141, 1
                  %s3146 = sphi %s3092, %s3092
                  %s3147 = sphi %s3114, %s3114
                $region166: #{encoder_forward.1} parent=162 // loop_header_branch
                  %3144 = sbr.rel (%p3142) target = $region170
                $region167: #{encoder_forward.1} parent=162 // loop_body
                  %v3148 = vld [vmem:[%s3146] sm:$0xff]
                  %3149 = vst [vmem:[%s3147] sm:$0xff] %v3148
                  %v3150 = vld [vmem:[%s3146 + $0x8] sm:$0xff]
                  %3151 = vst [vmem:[%s3147 + $0x8] sm:$0xff] %v3150
                  %v3152 = vld [vmem:[%s3146 + $0x10] sm:$0xff]
                  %3153 = vst [vmem:[%s3147 + $0x20] sm:$0xff] %v3152
                  %v3154 = vld [vmem:[%s3146 + $0x18] sm:$0xff]
                  %3155 = vst [vmem:[%s3147 + $0x28] sm:$0xff] %v3154
                $region168: #{encoder_forward.1} parent=162 // loop_footer
                  %s3145 = sadd.s32 1, %s3141
                $region169: #{encoder_forward.1} parent=162 // loop_footer_branch
                  %3140 = sbr.rel target = $region165
                $region170: #{encoder_forward.1} parent=162 // loop_exit
                  _
              $region163: #{encoder_forward.1} parent=147 // pred_fallthru
                _
              // Predicated region
              $region171: #{encoder_forward.1} parent=147 // pred_check
                _
              $region172: #{encoder_forward.1} parent=147 // pred_check_branch
                %3157 = sbr.rel target = $region174
              $region173: #{encoder_forward.1} parent=147 // pred_region
                _
              $region174: #{encoder_forward.1} parent=147 // pred_fallthru
                _
            $region148: #{encoder_forward.1} parent=143 // pred_fallthru
              _
            // Predicated region
            $region149: #{encoder_forward.1} parent=143 // pred_check
              _
            $region150: #{encoder_forward.1} parent=143 // pred_check_branch
              %3120 = sbr.rel target = $region152
            $region151: #{encoder_forward.1} parent=143 // pred_region
              loop: start=0, step=1, limit=1
              $region153: #{encoder_forward.1} parent=151 // loop_pre_header
                _
              $region154: #{encoder_forward.1} parent=151 // loop_header
                %s3123 = sphi 0, %s3127
                %p3124 = scmp.ge.s32.totalorder %s3123, 1
                %s3128 = sphi %s3092, %s3092
                %s3129 = sphi %s3114, %s3114
              $region155: #{encoder_forward.1} parent=151 // loop_header_branch
                %3126 = sbr.rel (%p3124) target = $region159
              $region156: #{encoder_forward.1} parent=151 // loop_body
                %v3130 = vld [vmem:[%s3128] sm:$0xff]
                %3131 = vst [vmem:[%s3129] sm:$0xff] %v3130
                %v3132 = vld [vmem:[%s3128 + $0x8] sm:$0xff]
                %3133 = vst [vmem:[%s3129 + $0x8] sm:$0xff] %v3132
                %v3134 = vld [vmem:[%s3128 + $0x10] sm:$0xff]
                %3135 = vst [vmem:[%s3129 + $0x20] sm:$0xff] %v3134
                %v3136 = vld [vmem:[%s3128 + $0x18] sm:$0xff]
                %3137 = vst [vmem:[%s3129 + $0x28] sm:$0xff] %v3136
              $region157: #{encoder_forward.1} parent=151 // loop_footer
                %s3127 = sadd.s32 1, %s3123
              $region158: #{encoder_forward.1} parent=151 // loop_footer_branch
                %3122 = sbr.rel target = $region154
              $region159: #{encoder_forward.1} parent=151 // loop_exit
                _
            $region152: #{encoder_forward.1} parent=143 // pred_fallthru
              _
          $region144: #{encoder_forward.1} parent=139 // pred_fallthru
            _
          %3158 = vnop
        $region140: #{encoder_forward.1} parent=113 // pred_fallthru
          _
      $region114: #{encoder_forward.1} parent=5 // pred_fallthru
        _
      %p3159 = scmp.le.s32.totalorder 2, %s26
      // Predicated region
      $region175: #{encoder_forward.1} parent=5 // pred_check
        %p3160 = pneg %p3159
      $region176: #{encoder_forward.1} parent=5 // pred_check_branch
        %3162 = sbr.rel (%p3160) target = $region178
      $region177: #{encoder_forward.1} parent=5 // pred_region
        %s3163 = ssub.s32 %s26, 2
        // Predicated region
        $region179: #{encoder_forward.1} parent=177 // pred_check
          %p3164 = pneg %p380
        $region180: #{encoder_forward.1} parent=177 // pred_check_branch
          %3166 = sbr.rel (%p3164) target = $region182
        $region181: #{encoder_forward.1} parent=177 // pred_region
          %s3167 = sand.u32 %s365, 1
          %s3168 = scalar_lea.sflag [#allocation6], %s3167
          %s3169 = sand.u32 %s365, 1
          %s3170 = smul.addr %s3169, 128
          %s3171 = scalar_lea.vmem [#allocation5], %s3170
          %3172 = dma.done %s3168, 2048
        $region182: #{encoder_forward.1} parent=177 // pred_fallthru
          _
        // Predicated region
        $region183: #{encoder_forward.1} parent=177 // pred_check
          %p3173 = pneg %p406
        $region184: #{encoder_forward.1} parent=177 // pred_check_branch
          %3175 = sbr.rel (%p3173) target = $region186
        $region185: #{encoder_forward.1} parent=177 // pred_region
          %s3176 = sand.u32 %s391, 1
          %s3177 = sand.u32 %s391, 1
          %s3178 = smul.addr %s3177, 32
          %s3179 = scalar_lea.vmem [#allocation7], %s3178
        $region186: #{encoder_forward.1} parent=177 // pred_fallthru
          _
      $region178: #{encoder_forward.1} parent=5 // pred_fallthru
        _
    $region6: #{encoder_forward.1} parent=1 // loop_footer
      %s30 = sadd.s32 1, %s26
    $region7: #{encoder_forward.1} parent=1 // loop_footer_branch
      %25 = sbr.rel target = $region3
    $region8: #{encoder_forward.1} parent=1 // loop_exit
      _
    %3180 = vsyncpa [#allocation6], 1
    %s3181 = scalar_lea.sflag [#allocation6], 1
    %3182 = vsyncpa %s3181, 1

</llo_original>
